<compile_context>
chip_gen: v5e
topology: v5e:2x2
jax: 0.10.0
libtpu: 0.0.40
codegen_flags: <defaults>
</compile_context>

<pallas_src>
import functools
import math

import jax
import jax.numpy as jnp
from jax.experimental import pallas as pl
from jax.experimental.pallas import tpu as pltpu


def _leaky_relu(x, slope=0.2):
    return jnp.where(x >= 0, x, slope * x)


def _round_up(x, m):
    return ((x + m - 1) // m) * m


# ---------------------------------------------------------------------------
# Kernel
# ---------------------------------------------------------------------------
def discriminator_kernel(x_ref,
                         w1_ref, b1_ref,
                         w2_ref, b2_ref,
                         w3_ref, b3_ref,
                         w4_ref, b4_ref,
                         o_ref,
                         acc_ref,
                         *, feat, tk):
    """One (tb, tk) batch/K tile.  Grid = (batch tiles, layer-1 K tiles).

    Layer 1 accumulates x @ w1 over the K grid axis into an f32 VMEM scratch;
    on the last K step the remaining (small) layers run and the output tile
    is stored.
    """
    k = pl.program_id(1)
    nk = pl.num_programs(1)

    @pl.when(k == 0)
    def _init():
        acc_ref[...] = jnp.zeros_like(acc_ref)

    xb = x_ref[...]                                   # (tb, tk)  bf16
    w1b = w1_ref[...]                                 # (tk, 512) bf16
    if feat % tk != 0:
        # Static ragged-K case: the last K block reads past F.  Out-of-bounds
        # VMEM contents are unspecified (could be NaN/Inf), so zero BOTH
        # operand tails before they reach the MXU accumulator.
        limit = jnp.where(k == nk - 1, feat - (nk - 1) * tk, tk)
        col = jax.lax.broadcasted_iota(jnp.int32, xb.shape, 1)
        row = jax.lax.broadcasted_iota(jnp.int32, w1b.shape, 0)
        xb = jnp.where(col < limit, xb, jnp.zeros_like(xb))
        w1b = jnp.where(row < limit, w1b, jnp.zeros_like(w1b))

    acc_ref[...] += jnp.dot(xb, w1b, preferred_element_type=jnp.float32)

    @pl.when(k == nk - 1)
    def _finish():
        h = _leaky_relu(acc_ref[...] + b1_ref[...])                  # (tb,512) f32

        h = jnp.dot(h.astype(w2_ref.dtype), w2_ref[...],
                    preferred_element_type=jnp.float32)
        h = _leaky_relu(h + b2_ref[...])                             # (tb,256) f32

        h = jnp.dot(h.astype(w3_ref.dtype), w3_ref[...],
                    preferred_element_type=jnp.float32)
        h = _leaky_relu(h + b3_ref[...])                             # (tb,128) f32

        # Final Linear(128, 1): an out_features==1 MXU matmul would fill one
        # systolic column, so do a VPU multiply + cross-lane (XLU) reduce
        # in f32 instead and keep the MXU free for the real layers.
        y = jnp.sum(h * w4_ref[...], axis=-1, keepdims=True) + b4_ref[...]
        o_ref[...] = y.astype(o_ref.dtype)


# ---------------------------------------------------------------------------
# Generation-aware tiling / VMEM budgeting
# ---------------------------------------------------------------------------
def _tpu_vmem_info():
    try:
        cap = int(pltpu.get_tpu_info().vmem_capacity_bytes)
    except Exception:
        cap = 64 * 1024 * 1024          # conservative default (v7x per-TC VMEM)
    try:
        kind = jax.devices()[0].device_kind.lower()
    except Exception:
        kind = ""
    return cap, kind


def _choose_tiles(batch, feat, vmem_cap, kind):
    """Pick (tb, tk) so the whole double-buffered working set fits VMEM."""
    budget = int(vmem_cap * 0.55)        # leave headroom for Mosaic scratch

    # K tile for layer 1: single step if the double-buffered bf16 w1 tile is
    # comfortably small, otherwise a multiple of 128 bounded by the budget.
    w1_bytes = feat * 512 * 2            # bf16
    if 2 * w1_bytes <= budget // 2:
        tk = feat
    else:
        tk = (budget // 2) // (2 * 512 * 2) // 128 * 128
        tk = max(128, min(feat, tk))

    # Batch tile: 128 on v5e (4x128x128 MXU, slower HBM), 256 elsewhere.
    is_v5e = ("v5e" in kind) or ("v5 lite" in kind) or ("v5lite" in kind)
    tb = 128 if is_v5e else 256
    if batch <= tb:
        tb = batch                       # full-dim block (always layout-legal)

    def working_set(tb_, tk_):
        x_t = 2 * tb_ * tk_ * 2                          # 2x bf16 x tile
        w1_t = 2 * tk_ * 512 * 2                         # 2x bf16 w1 tile
        rest = 2 * ((512 * 256 + 256 * 128) * 2          # 2x bf16 w2, w3
                    + (512 + 256 + 128 + 128 + 1) * 4)   # f32 biases + w4 row
        acc = tb_ * 512 * 4                              # f32 accumulator
        act = tb_ * (512 + 256 + 128) * 4                # f32 intermediates
        out = 2 * tb_ * 4
        return x_t + w1_t + rest + acc + act + out

    while tb > 8 and working_set(tb, tk) > budget:
        tb = max(8, (tb // 2) // 8 * 8)

    # >=4 grid steps over the batch when it is big enough, so each v7x
    # TensorCore gets >=2 pipelined steps (DMA overlaps compute).
    if tb > 128 and batch > 128 and pl.cdiv(batch, tb) < 4:
        tb = 128
    return tb, tk


# ---------------------------------------------------------------------------
# Wrapper
# ---------------------------------------------------------------------------
@functools.partial(jax.jit, static_argnames=("tb", "tk", "vmem_limit"))
def _forward_impl(x_img, params, *, tb, tk, vmem_limit):
    B = x_img.shape[0]
    x = x_img.reshape(B, -1)             # same flatten order as torch .view
    F = x.shape[1]
    (w1, b1), (w2, b2), (w3, b3), (w4, b4) = params

    # bf16 operands for the three MXU matmuls; fp32 accumulation in-kernel.
    xb = x.astype(jnp.bfloat16)
    w1b = w1.astype(jnp.bfloat16)
    w2b = w2.astype(jnp.bfloat16)
    w3b = w3.astype(jnp.bfloat16)
    w4_row = w4.reshape(1, -1).astype(jnp.float32)   # (1, 128) row, VPU reduce
    b4r = b4.reshape(1, 1).astype(jnp.float32)

    kernel = functools.partial(discriminator_kernel, feat=F, tk=tk)
    inv = lambda i, k: (0, 0)            # grid-invariant weight/bias blocks

    out = pl.pallas_call(
        kernel,
        out_shape=jax.ShapeDtypeStruct((B, 1), jnp.float32),
        grid_spec=pltpu.PrefetchScalarGridSpec(
            num_scalar_prefetch=0,
            # Reduction (K) axis last; batch tiles are independent.
            grid=(pl.cdiv(B, tb), pl.cdiv(F, tk)),
            in_specs=[
                pl.BlockSpec((tb, tk), lambda i, k: (i, k)),    # x tile
                pl.BlockSpec((tk, 512), lambda i, k: (k, 0)),   # w1 K-slice
                pl.BlockSpec((1, 512), inv),                    # b1
                pl.BlockSpec((512, 256), inv),                  # w2
                pl.BlockSpec((1, 256), inv),                    # b2
                pl.BlockSpec((256, 128), inv),                  # w3
                pl.BlockSpec((1, 128), inv),                    # b3
                pl.BlockSpec((1, 128), inv),                    # w4 row
                pl.BlockSpec((1, 1), inv),                      # b4
            ],
            out_specs=pl.BlockSpec((tb, 1), lambda i, k: (i, 0)),
            scratch_shapes=[pltpu.VMEM((tb, 512), jnp.float32)],
        ),
        compiler_params=pltpu.CompilerParams(
            dimension_semantics=("parallel", "arbitrary"),
            vmem_limit_bytes=vmem_limit,
        ),
    )(xb, w1b, b1, w2b, b2, w3b, b3, w4_row, b4r)
    return out


def discriminator_forward(x_img, params):
    """x_img: (B, C, H, W) float32.  Returns (B, 1) float32."""
    B = x_img.shape[0]
    F = math.prod(x_img.shape[1:])
    vmem_cap, kind = _tpu_vmem_info()
    tb, tk = _choose_tiles(B, F, vmem_cap, kind)
    vmem_limit = int(vmem_cap * 0.75)    # ~48 MiB on v7x, ~96 MiB on v5e/v6e
    return _forward_impl(x_img, params, tb=tb, tk=tk, vmem_limit=vmem_limit)


# ---------------------------------------------------------------------------
# Params / reference
# ---------------------------------------------------------------------------
def init_params(key, in_features):
    """Deterministic synthetic params, stored as (in, out) + (1, out) bias."""
    dims = [in_features, 512, 256, 128, 1]
    params = []
    for li in range(4):
        kin, kout = dims[li], dims[li + 1]
        key, kw, kb = jax.random.split(key, 3)
        bound = 1.0 / jnp.sqrt(kin)      # matches torch.nn.Linear default init
        w = jax.random.uniform(kw, (kin, kout), jnp.float32, -bound, bound)
        b = jax.random.uniform(kb, (1, kout), jnp.float32, -bound, bound)
        params.append((w, b))
    return tuple(params)


def reference_forward(x_img, params):
    x = x_img.reshape(x_img.shape[0], -1)
    (w1, b1), (w2, b2), (w3, b3), (w4, b4) = params
    h = _leaky_relu(x @ w1 + b1)
    h = _leaky_relu(h @ w2 + b2)
    h = _leaky_relu(h @ w3 + b3)
    return h @ w4 + b4


if __name__ == "__main__":
    key = jax.random.PRNGKey(0)
    img_shape = (3, 16, 16)              # C, H, W -> F = 768
    B = 300                              # not a multiple of the batch tile:
                                         # exercises the no-pad ragged path

    k_x, k_p = jax.random.split(key)
    x_img = jax.random.normal(k_x, (B,) + img_shape, jnp.float32)
    params = init_params(k_p, math.prod(img_shape))

    y = discriminator_forward(x_img, params)
    y = jax.block_until_ready(y)

    y_ref = reference_forward(x_img, params)
    assert y.shape == (B, 1), y.shape
    max_err = float(jnp.max(jnp.abs(y - y_ref)))
    # bf16 matmul operands vs. the f32 reference -> loosened tolerance.
    assert jnp.allclose(y, y_ref, atol=2e-2, rtol=2e-2), (
        f"mismatch vs JAX reference, max abs err = {max_err}")

    print("KERNEL_OK")
</pallas_src>

<mosaic_0001>
module attributes {stable_mosaic.version = 11 : i64} {
  func.func @discriminator_kernel(%arg0: i32, %arg1: i32, %arg2: memref<128x768xbf16, #tpu.memory_space<vmem>>, %arg3: memref<768x512xbf16, #tpu.memory_space<vmem>>, %arg4: memref<1x512xf32, #tpu.memory_space<vmem>>, %arg5: memref<512x256xbf16, #tpu.memory_space<vmem>>, %arg6: memref<1x256xf32, #tpu.memory_space<vmem>>, %arg7: memref<256x128xbf16, #tpu.memory_space<vmem>>, %arg8: memref<1x128xf32, #tpu.memory_space<vmem>>, %arg9: memref<1x128xf32, #tpu.memory_space<vmem>>, %arg10: memref<1x1xf32, #tpu.memory_space<vmem>>, %arg11: memref<128x1xf32, #tpu.memory_space<vmem>>, %arg12: memref<128x512xf32, #tpu.memory_space<vmem>>) attributes {dimension_semantics = [#tpu.dimension_semantics<parallel>, #tpu.dimension_semantics<arbitrary>], iteration_bounds = array<i64: 3, 1>, scalar_prefetch = 0 : i64, scratch_operands = 1 : i64, tpu.core_type = #tpu.core_type<tc>, window_params = [{transform_indices = @transform_0, window_bounds = array<i64: 128, 768>}, {transform_indices = @transform_1, window_bounds = array<i64: 768, 512>}, {pipeline_mode = #tpu.pipeline_mode<synchronous>, transform_indices = @transform_2, window_bounds = array<i64: 1, 512>}, {pipeline_mode = #tpu.pipeline_mode<synchronous>, transform_indices = @transform_3, window_bounds = array<i64: 512, 256>}, {pipeline_mode = #tpu.pipeline_mode<synchronous>, transform_indices = @transform_4, window_bounds = array<i64: 1, 256>}, {pipeline_mode = #tpu.pipeline_mode<synchronous>, transform_indices = @transform_5, window_bounds = array<i64: 256, 128>}, {pipeline_mode = #tpu.pipeline_mode<synchronous>, transform_indices = @transform_6, window_bounds = array<i64: 1, 128>}, {pipeline_mode = #tpu.pipeline_mode<synchronous>, transform_indices = @transform_7, window_bounds = array<i64: 1, 128>}, {pipeline_mode = #tpu.pipeline_mode<synchronous>, transform_indices = @transform_8, window_bounds = array<i64: 1, 1>}, {transform_indices = @transform_9, window_bounds = array<i64: 128, 1>}]} {
    %c0_i32 = arith.constant 0 : i32
    %0 = arith.cmpi eq, %arg1, %c0_i32 : i32
    %1 = arith.extui %0 : i1 to i32
    %c0_i32_0 = arith.constant 0 : i32
    %2 = arith.cmpi ne, %1, %c0_i32_0 : i32
    scf.if %2 {
      %cst_10 = arith.constant 0.000000e+00 : f32
      %12 = vector.broadcast %cst_10 : f32 to vector<128x512xf32>
      %c0_11 = arith.constant 0 : index
      %c0_12 = arith.constant 0 : index
      %13 = vector.load %arg12[%c0_11, %c0_12] : memref<128x512xf32, #tpu.memory_space<vmem>>, vector<128x512xf32>
      tpu.vector_store %arg12[%c0_11, %c0_12], %12 {strides = array<i32>} : memref<128x512xf32, #tpu.memory_space<vmem>>, vector<128x512xf32>,
    } else {
    }
    %c0 = arith.constant 0 : index
    %c0_1 = arith.constant 0 : index
    %3 = vector.load %arg2[%c0, %c0_1] : memref<128x768xbf16, #tpu.memory_space<vmem>>, vector<128x768xbf16>
    %c0_2 = arith.constant 0 : index
    %c0_3 = arith.constant 0 : index
    %4 = vector.load %arg3[%c0_2, %c0_3] : memref<768x512xbf16, #tpu.memory_space<vmem>>, vector<768x512xbf16>
    %c0_4 = arith.constant 0 : index
    %c0_5 = arith.constant 0 : index
    %5 = vector.load %arg12[%c0_4, %c0_5] : memref<128x512xf32, #tpu.memory_space<vmem>>, vector<128x512xf32>
    %cst = arith.constant dense<0.000000e+00> : vector<128x512xf32>
    %6 = tpu.matmul %3, %4, %cst {dimension_numbers = #tpu.dot_dimension_numbers<[1], [0], [0], [1], [0, 0, 1, 1], [], []>} : vector<128x768xbf16>, vector<768x512xbf16>, vector<128x512xf32> -> vector<128x512xf32>
    %7 = arith.addf %5, %6 : vector<128x512xf32>
    %c0_6 = arith.constant 0 : index
    %c0_7 = arith.constant 0 : index
    %8 = vector.load %arg12[%c0_6, %c0_7] : memref<128x512xf32, #tpu.memory_space<vmem>>, vector<128x512xf32>
    tpu.vector_store %arg12[%c0_6, %c0_7], %7 {strides = array<i32>} : memref<128x512xf32, #tpu.memory_space<vmem>>, vector<128x512xf32>,
    %c0_i32_8 = arith.constant 0 : i32
    %9 = arith.cmpi eq, %arg1, %c0_i32_8 : i32
    %10 = arith.extui %9 : i1 to i32
    %c0_i32_9 = arith.constant 0 : i32
    %11 = arith.cmpi ne, %10, %c0_i32_9 : i32
    scf.if %11 {
      %c0_10 = arith.constant 0 : index
      %c0_11 = arith.constant 0 : index
      %12 = vector.load %arg12[%c0_10, %c0_11] : memref<128x512xf32, #tpu.memory_space<vmem>>, vector<128x512xf32>
      %c0_12 = arith.constant 0 : index
      %c0_13 = arith.constant 0 : index
      %13 = vector.load %arg4[%c0_12, %c0_13] : memref<1x512xf32, #tpu.memory_space<vmem>>, vector<1x512xf32>
      %14 = vector.broadcast %13 : vector<1x512xf32> to vector<128x512xf32>
      %15 = arith.addf %12, %14 : vector<128x512xf32>
      %cst_14 = arith.constant 0.000000e+00 : f32
      %16 = vector.broadcast %cst_14 : f32 to vector<128x512xf32>
      %17 = arith.cmpf oge, %15, %16 : vector<128x512xf32>
      %cst_15 = arith.constant 2.000000e-01 : f32
      %18 = vector.broadcast %cst_15 : f32 to vector<128x512xf32>
      %19 = arith.mulf %18, %15 : vector<128x512xf32>
      %20 = arith.select %17, %15, %19 : vector<128x512xi1>, vector<128x512xf32>
      %21 = arith.truncf %20 : vector<128x512xf32> to vector<128x512xbf16>
      %c0_16 = arith.constant 0 : index
      %c0_17 = arith.constant 0 : index
      %22 = vector.load %arg5[%c0_16, %c0_17] : memref<512x256xbf16, #tpu.memory_space<vmem>>, vector<512x256xbf16>
      %cst_18 = arith.constant dense<0.000000e+00> : vector<128x256xf32>
      %23 = tpu.matmul %21, %22, %cst_18 {dimension_numbers = #tpu.dot_dimension_numbers<[1], [0], [0], [1], [0, 0, 1, 1], [], []>} : vector<128x512xbf16>, vector<512x256xbf16>, vector<128x256xf32> -> vector<128x256xf32>
      %c0_19 = arith.constant 0 : index
      %c0_20 = arith.constant 0 : index
      %24 = vector.load %arg6[%c0_19, %c0_20] : memref<1x256xf32, #tpu.memory_space<vmem>>, vector<1x256xf32>
      %25 = vector.broadcast %24 : vector<1x256xf32> to vector<128x256xf32>
      %26 = arith.addf %23, %25 : vector<128x256xf32>
      %cst_21 = arith.constant 0.000000e+00 : f32
      %27 = vector.broadcast %cst_21 : f32 to vector<128x256xf32>
      %28 = arith.cmpf oge, %26, %27 : vector<128x256xf32>
      %cst_22 = arith.constant 2.000000e-01 : f32
      %29 = vector.broadcast %cst_22 : f32 to vector<128x256xf32>
      %30 = arith.mulf %29, %26 : vector<128x256xf32>
      %31 = arith.select %28, %26, %30 : vector<128x256xi1>, vector<128x256xf32>
      %32 = arith.truncf %31 : vector<128x256xf32> to vector<128x256xbf16>
      %c0_23 = arith.constant 0 : index
      %c0_24 = arith.constant 0 : index
      %33 = vector.load %arg7[%c0_23, %c0_24] : memref<256x128xbf16, #tpu.memory_space<vmem>>, vector<256x128xbf16>
      %cst_25 = arith.constant dense<0.000000e+00> : vector<128x128xf32>
      %34 = tpu.matmul %32, %33, %cst_25 {dimension_numbers = #tpu.dot_dimension_numbers<[1], [0], [0], [1], [0, 0, 1, 1], [], []>} : vector<128x256xbf16>, vector<256x128xbf16>, vector<128x128xf32> -> vector<128x128xf32>
      %c0_26 = arith.constant 0 : index
      %c0_27 = arith.constant 0 : index
      %35 = vector.load %arg8[%c0_26, %c0_27] : memref<1x128xf32, #tpu.memory_space<vmem>>, vector<1x128xf32>
      %36 = vector.broadcast %35 : vector<1x128xf32> to vector<128x128xf32>
      %37 = arith.addf %34, %36 : vector<128x128xf32>
      %cst_28 = arith.constant 0.000000e+00 : f32
      %38 = vector.broadcast %cst_28 : f32 to vector<128x128xf32>
      %39 = arith.cmpf oge, %37, %38 : vector<128x128xf32>
      %cst_29 = arith.constant 2.000000e-01 : f32
      %40 = vector.broadcast %cst_29 : f32 to vector<128x128xf32>
      %41 = arith.mulf %40, %37 : vector<128x128xf32>
      %42 = arith.select %39, %37, %41 : vector<128x128xi1>, vector<128x128xf32>
      %c0_30 = arith.constant 0 : index
      %c0_31 = arith.constant 0 : index
      %43 = vector.load %arg9[%c0_30, %c0_31] : memref<1x128xf32, #tpu.memory_space<vmem>>, vector<1x128xf32>
      %44 = vector.broadcast %43 : vector<1x128xf32> to vector<128x128xf32>
      %45 = arith.mulf %42, %44 : vector<128x128xf32>
      %cst_32 = arith.constant dense<0.000000e+00> : vector<128xf32>
      %46 = vector.multi_reduction <add>, %45, %cst_32 [1] : vector<128x128xf32> to vector<128xf32>
      %47 = vector.shape_cast %46 : vector<128xf32> to vector<128x1xf32>
      %c0_33 = arith.constant 0 : index
      %c0_34 = arith.constant 0 : index
      %48 = vector.load %arg10[%c0_33, %c0_34] : memref<1x1xf32, #tpu.memory_space<vmem>>, vector<1x1xf32>
      %49 = vector.broadcast %48 : vector<1x1xf32> to vector<128x1xf32>
      %50 = arith.addf %47, %49 : vector<128x1xf32>
      %c0_35 = arith.constant 0 : index
      %c0_36 = arith.constant 0 : index
      %51 = vector.load %arg11[%c0_35, %c0_36] : memref<128x1xf32, #tpu.memory_space<vmem>>, vector<128x1xf32>
      tpu.vector_store %arg11[%c0_35, %c0_36], %50 {strides = array<i32>} : memref<128x1xf32, #tpu.memory_space<vmem>>, vector<128x1xf32>,
    } else {
    }
    return
  }
  func.func @transform_0(%arg0: i32, %arg1: i32) -> (i32, i32) {
    %c0_i32 = arith.constant 0 : i32
    return %arg0, %arg1 : i32, i32
  }
  func.func @transform_1(%arg0: i32, %arg1: i32) -> (i32, i32) {
    %c0_i32 = arith.constant 0 : i32
    %c0_i32_0 = arith.constant 0 : i32
    return %arg1, %c0_i32 : i32, i32
  }
  func.func @transform_2(%arg0: i32, %arg1: i32) -> (i32, i32) {
    %c0_i32 = arith.constant 0 : i32
    %c0_i32_0 = arith.constant 0 : i32
    %c0_i32_1 = arith.constant 0 : i32
    return %c0_i32, %c0_i32_0 : i32, i32
  }
  func.func @transform_3(%arg0: i32, %arg1: i32) -> (i32, i32) {
    %c0_i32 = arith.constant 0 : i32
    %c0_i32_0 = arith.constant 0 : i32
    %c0_i32_1 = arith.constant 0 : i32
    return %c0_i32, %c0_i32_0 : i32, i32
  }
  func.func @transform_4(%arg0: i32, %arg1: i32) -> (i32, i32) {
    %c0_i32 = arith.constant 0 : i32
    %c0_i32_0 = arith.constant 0 : i32
    %c0_i32_1 = arith.constant 0 : i32
    return %c0_i32, %c0_i32_0 : i32, i32
  }
  func.func @transform_5(%arg0: i32, %arg1: i32) -> (i32, i32) {
    %c0_i32 = arith.constant 0 : i32
    %c0_i32_0 = arith.constant 0 : i32
    %c0_i32_1 = arith.constant 0 : i32
    return %c0_i32, %c0_i32_0 : i32, i32
  }
  func.func @transform_6(%arg0: i32, %arg1: i32) -> (i32, i32) {
    %c0_i32 = arith.constant 0 : i32
    %c0_i32_0 = arith.constant 0 : i32
    %c0_i32_1 = arith.constant 0 : i32
    return %c0_i32, %c0_i32_0 : i32, i32
  }
  func.func @transform_7(%arg0: i32, %arg1: i32) -> (i32, i32) {
    %c0_i32 = arith.constant 0 : i32
    %c0_i32_0 = arith.constant 0 : i32
    %c0_i32_1 = arith.constant 0 : i32
    return %c0_i32, %c0_i32_0 : i32, i32
  }
  func.func @transform_8(%arg0: i32, %arg1: i32) -> (i32, i32) {
    %c0_i32 = arith.constant 0 : i32
    %c0_i32_0 = arith.constant 0 : i32
    %c0_i32_1 = arith.constant 0 : i32
    return %c0_i32, %c0_i32_0 : i32, i32
  }
  func.func @transform_9(%arg0: i32, %arg1: i32) -> (i32, i32) {
    %c0_i32 = arith.constant 0 : i32
    %c0_i32_0 = arith.constant 0 : i32
    return %arg0, %c0_i32 : i32, i32
  }
}

</mosaic_0001>

<llo_original>
// kernel: _forward_impl.1
$region0: #{_forward_impl.1}
  #allocation0 [shape = 'u32[]', space=smem, size = 0x4, offset = 0x4, fixed_abs, tag = 'smem constant byte address 0x4 - core index']
  #allocation1 [shape = 'u32[72,128]{1,0:T(1,128)}', space=vmem, size = 0x9000, scoped, tag = 'internal scratch']
  #allocation2 [shape = 'f32[128,512]{1,0:T(8,128)}', space=vmem, size = 0x40000, scoped, tag = 'scratch operand']
  #allocation3 [shape = 'f32[1,1]{1,0:T(1,128)S(1)}', space=vmem, size = 0x200, scoped, tag = 'scoped memory for _forward_impl.1']
  %s0 = inlined_call_operand.vmem [shape: bf16[300,768], index: 0, kind: input, shape index: {}]
  %s1 = inlined_call_operand.vmem [shape: bf16[768,512], index: 1, kind: input, shape index: {}]
  %s2 = inlined_call_operand.vmem [shape: f32[1,512], index: 2, kind: input, shape index: {}]
  %s3 = inlined_call_operand.vmem [shape: bf16[512,256], index: 3, kind: input, shape index: {}]
  %s4 = inlined_call_operand.vmem [shape: f32[1,256], index: 4, kind: input, shape index: {}]
  %s5 = inlined_call_operand.vmem [shape: bf16[256,128], index: 5, kind: input, shape index: {}]
  %s6 = inlined_call_operand.vmem [shape: f32[1,128], index: 6, kind: input, shape index: {}]
  %s7 = inlined_call_operand.vmem [shape: f32[1,128], index: 7, kind: input, shape index: {}]
  %s8 = inlined_call_operand.<no memory space> [shape: f32[1,1], index: 8, kind: input, shape index: {}]
  %s9 = inlined_call_operand.vmem [shape: f32[300,1], index: 9, kind: output, shape index: {}]
  %s10 = sld [smem:[#allocation0]]
  $region125: #{_forward_impl.1} parent=0
    _
  %s12 = ssub.s32 1, %s10
  %s13 = scalar_select 0, %s12, %s10
  %v14 = vstv %s8
  %15 = vst [vmem:[#allocation3] sm:$0x1] %v14
  $region1: #{_forward_impl.1} parent=0
    #allocation4 [shape = 'u8[131072]{0}', space=vmem, size = 0x20000, scoped, tag = 'output window, operand 0']
    loop: start=0, step=1, limit=5
    $region2: #{_forward_impl.1} parent=1 // loop_pre_header
      _
    $region3: #{_forward_impl.1} parent=1 // loop_header
      %s17 = sphi 0, %s21
      %p18 = scmp.ge.s32.totalorder %s17, 5
      %s24 = sphi 0, %s36
      %s25 = sphi 0, %s32
      %s26 = sphi 0, %s24
      %s27 = sphi 0, %s25
      %s28 = sphi 0, %s26
      %s29 = sphi 0, %s27
      %s41 = sphi 0, %s43
      %s44 = sphi 0, %s41
      %s45 = sphi 0, %s44
      %s61 = sphi 0, %s45
      %s67 = sphi 0, %s69
      %s70 = sphi 0, %s67
      %s71 = sphi 0, %s70
      %s87 = sphi 0, %s71
      %s91 = sphi 0, %s91
      %s93 = sphi 0, %s91
      %s94 = sphi 0, %s93
      %s108 = sphi 0, %s94
      %s112 = sphi 0, %s112
      %s114 = sphi 0, %s112
      %s115 = sphi 0, %s114
      %s129 = sphi 0, %s115
      %s133 = sphi 0, %s133
      %s135 = sphi 0, %s133
      %s136 = sphi 0, %s135
      %s150 = sphi 0, %s136
      %s154 = sphi 0, %s154
      %s156 = sphi 0, %s154
      %s157 = sphi 0, %s156
      %s171 = sphi 0, %s157
      %s175 = sphi 0, %s175
      %s177 = sphi 0, %s175
      %s178 = sphi 0, %s177
      %s192 = sphi 0, %s178
      %s196 = sphi 0, %s196
      %s198 = sphi 0, %s196
      %s199 = sphi 0, %s198
      %s213 = sphi 0, %s199
      %s217 = sphi 0, %s217
      %s219 = sphi 0, %s217
      %s220 = sphi 0, %s219
      %s234 = sphi 0, %s220
      %s240 = sphi 0, %s242
      %s243 = sphi 0, %s240
      %s244 = sphi 0, %s243
      %s260 = sphi 0, %s244
    $region4: #{_forward_impl.1} parent=1 // loop_header_branch
      %20 = sbr.rel (%p18) target = $region8
    $region5: #{_forward_impl.1} parent=1 // loop_body
      %s22 = ssub.s32 %s17, 1
      %s23 = ssub.s32 %s17, 2
      %s30 = sadd.s32 1, %s25
      %p31 = scmp.ge.s32.totalorder %s30, 1
      %s32 = scalar_select %p31, 0, %s30
      %s33 = sadd.s32 1, %s24
      %s34 = scalar_select %p31, %s33, %s24
      %p35 = scmp.ge.s32.totalorder %s34, 3
      %s36 = scalar_select %p35, 0, %s34
      %s37 = ssub.s32 %s24, %s36
      %s38 = ssub.s32 %s25, %s32
      %s39 = sor.u32 %s37, %s38
      %p40 = scmp.eq.s32.totalorder %s39, 0
      %s42 = sadd.s32 %s41, 1
      %s43 = scalar_select %p40, %s41, %s42
      %p46 = pneg %p40
      %p47 = scmp.eq.s32.totalorder %s17, 2
      %p48 = por %p46, %p47
      %p49 = scmp.ne.s32.totalorder %s41, %s44
      %p50 = scmp.eq.s32.totalorder %s17, 0
      %p51 = por %p49, %p50
      %p52 = scmp.ne.s32.totalorder %s41, %s44
      %p53 = scmp.eq.s32.totalorder %s22, 2
      %p54 = por %p52, %p53
      %p55 = scmp.ne.s32.totalorder %s44, %s45
      %p56 = scmp.eq.s32.totalorder %s22, 0
      %p57 = por %p55, %p56
      %p58 = scmp.ne.s32.totalorder %s44, %s45
      %p59 = scmp.eq.s32.totalorder %s23, 2
      %p60 = por %p58, %p59
      %p62 = scmp.ne.s32.totalorder %s45, %s61
      %p63 = scmp.eq.s32.totalorder %s23, 0
      %p64 = por %p62, %p63
      %s65 = ssub.s32 %s25, %s32
      %p66 = scmp.eq.s32.totalorder %s65, 0
      %s68 = sadd.s32 %s67, 1
      %s69 = scalar_select %p66, %s67, %s68
      %p72 = pneg %p66
      %p73 = scmp.eq.s32.totalorder %s17, 2
      %p74 = por %p72, %p73
      %p75 = scmp.ne.s32.totalorder %s67, %s70
      %p76 = scmp.eq.s32.totalorder %s17, 0
      %p77 = por %p75, %p76
      %p78 = scmp.ne.s32.totalorder %s67, %s70
      %p79 = scmp.eq.s32.totalorder %s22, 2
      %p80 = por %p78, %p79
      %p81 = scmp.ne.s32.totalorder %s70, %s71
      %p82 = scmp.eq.s32.totalorder %s22, 0
      %p83 = por %p81, %p82
      %p84 = scmp.ne.s32.totalorder %s70, %s71
      %p85 = scmp.eq.s32.totalorder %s23, 2
      %p86 = por %p84, %p85
      %p88 = scmp.ne.s32.totalorder %s71, %s87
      %p89 = scmp.eq.s32.totalorder %s23, 0
      %p90 = por %p88, %p89
      %s92 = sadd.s32 %s91, 1
      %p95 = scmp.eq.s32.totalorder %s17, 2
      %p96 = scmp.ne.s32.totalorder %s91, %s93
      %p97 = scmp.eq.s32.totalorder %s17, 0
      %p98 = por %p96, %p97
      %p99 = scmp.ne.s32.totalorder %s91, %s93
      %p100 = scmp.eq.s32.totalorder %s22, 2
      %p101 = por %p99, %p100
      %p102 = scmp.ne.s32.totalorder %s93, %s94
      %p103 = scmp.eq.s32.totalorder %s22, 0
      %p104 = por %p102, %p103
      %p105 = scmp.ne.s32.totalorder %s93, %s94
      %p106 = scmp.eq.s32.totalorder %s23, 2
      %p107 = por %p105, %p106
      %p109 = scmp.ne.s32.totalorder %s94, %s108
      %p110 = scmp.eq.s32.totalorder %s23, 0
      %p111 = por %p109, %p110
      %s113 = sadd.s32 %s112, 1
      %p116 = scmp.eq.s32.totalorder %s17, 2
      %p117 = scmp.ne.s32.totalorder %s112, %s114
      %p118 = scmp.eq.s32.totalorder %s17, 0
      %p119 = por %p117, %p118
      %p120 = scmp.ne.s32.totalorder %s112, %s114
      %p121 = scmp.eq.s32.totalorder %s22, 2
      %p122 = por %p120, %p121
      %p123 = scmp.ne.s32.totalorder %s114, %s115
      %p124 = scmp.eq.s32.totalorder %s22, 0
      %p125 = por %p123, %p124
      %p126 = scmp.ne.s32.totalorder %s114, %s115
      %p127 = scmp.eq.s32.totalorder %s23, 2
      %p128 = por %p126, %p127
      %p130 = scmp.ne.s32.totalorder %s115, %s129
      %p131 = scmp.eq.s32.totalorder %s23, 0
      %p132 = por %p130, %p131
      %s134 = sadd.s32 %s133, 1
      %p137 = scmp.eq.s32.totalorder %s17, 2
      %p138 = scmp.ne.s32.totalorder %s133, %s135
      %p139 = scmp.eq.s32.totalorder %s17, 0
      %p140 = por %p138, %p139
      %p141 = scmp.ne.s32.totalorder %s133, %s135
      %p142 = scmp.eq.s32.totalorder %s22, 2
      %p143 = por %p141, %p142
      %p144 = scmp.ne.s32.totalorder %s135, %s136
      %p145 = scmp.eq.s32.totalorder %s22, 0
      %p146 = por %p144, %p145
      %p147 = scmp.ne.s32.totalorder %s135, %s136
      %p148 = scmp.eq.s32.totalorder %s23, 2
      %p149 = por %p147, %p148
      %p151 = scmp.ne.s32.totalorder %s136, %s150
      %p152 = scmp.eq.s32.totalorder %s23, 0
      %p153 = por %p151, %p152
      %s155 = sadd.s32 %s154, 1
      %p158 = scmp.eq.s32.totalorder %s17, 2
      %p159 = scmp.ne.s32.totalorder %s154, %s156
      %p160 = scmp.eq.s32.totalorder %s17, 0
      %p161 = por %p159, %p160
      %p162 = scmp.ne.s32.totalorder %s154, %s156
      %p163 = scmp.eq.s32.totalorder %s22, 2
      %p164 = por %p162, %p163
      %p165 = scmp.ne.s32.totalorder %s156, %s157
      %p166 = scmp.eq.s32.totalorder %s22, 0
      %p167 = por %p165, %p166
      %p168 = scmp.ne.s32.totalorder %s156, %s157
      %p169 = scmp.eq.s32.totalorder %s23, 2
      %p170 = por %p168, %p169
      %p172 = scmp.ne.s32.totalorder %s157, %s171
      %p173 = scmp.eq.s32.totalorder %s23, 0
      %p174 = por %p172, %p173
      %s176 = sadd.s32 %s175, 1
      %p179 = scmp.eq.s32.totalorder %s17, 2
      %p180 = scmp.ne.s32.totalorder %s175, %s177
      %p181 = scmp.eq.s32.totalorder %s17, 0
      %p182 = por %p180, %p181
      %p183 = scmp.ne.s32.totalorder %s175, %s177
      %p184 = scmp.eq.s32.totalorder %s22, 2
      %p185 = por %p183, %p184
      %p186 = scmp.ne.s32.totalorder %s177, %s178
      %p187 = scmp.eq.s32.totalorder %s22, 0
      %p188 = por %p186, %p187
      %p189 = scmp.ne.s32.totalorder %s177, %s178
      %p190 = scmp.eq.s32.totalorder %s23, 2
      %p191 = por %p189, %p190
      %p193 = scmp.ne.s32.totalorder %s178, %s192
      %p194 = scmp.eq.s32.totalorder %s23, 0
      %p195 = por %p193, %p194
      %s197 = sadd.s32 %s196, 1
      %p200 = scmp.eq.s32.totalorder %s17, 2
      %p201 = scmp.ne.s32.totalorder %s196, %s198
      %p202 = scmp.eq.s32.totalorder %s17, 0
      %p203 = por %p201, %p202
      %p204 = scmp.ne.s32.totalorder %s196, %s198
      %p205 = scmp.eq.s32.totalorder %s22, 2
      %p206 = por %p204, %p205
      %p207 = scmp.ne.s32.totalorder %s198, %s199
      %p208 = scmp.eq.s32.totalorder %s22, 0
      %p209 = por %p207, %p208
      %p210 = scmp.ne.s32.totalorder %s198, %s199
      %p211 = scmp.eq.s32.totalorder %s23, 2
      %p212 = por %p210, %p211
      %p214 = scmp.ne.s32.totalorder %s199, %s213
      %p215 = scmp.eq.s32.totalorder %s23, 0
      %p216 = por %p214, %p215
      %s218 = sadd.s32 %s217, 1
      %p221 = scmp.eq.s32.totalorder %s17, 2
      %p222 = scmp.ne.s32.totalorder %s217, %s219
      %p223 = scmp.eq.s32.totalorder %s17, 0
      %p224 = por %p222, %p223
      %p225 = scmp.ne.s32.totalorder %s217, %s219
      %p226 = scmp.eq.s32.totalorder %s22, 2
      %p227 = por %p225, %p226
      %p228 = scmp.ne.s32.totalorder %s219, %s220
      %p229 = scmp.eq.s32.totalorder %s22, 0
      %p230 = por %p228, %p229
      %p231 = scmp.ne.s32.totalorder %s219, %s220
      %p232 = scmp.eq.s32.totalorder %s23, 2
      %p233 = por %p231, %p232
      %p235 = scmp.ne.s32.totalorder %s220, %s234
      %p236 = scmp.eq.s32.totalorder %s23, 0
      %p237 = por %p235, %p236
      %s238 = ssub.s32 %s24, %s36
      %p239 = scmp.eq.s32.totalorder %s238, 0
      %s241 = sadd.s32 %s240, 1
      %s242 = scalar_select %p239, %s240, %s241
      %p245 = pneg %p239
      %p246 = scmp.eq.s32.totalorder %s17, 2
      %p247 = por %p245, %p246
      %p248 = scmp.ne.s32.totalorder %s240, %s243
      %p249 = scmp.eq.s32.totalorder %s17, 0
      %p250 = por %p248, %p249
      %p251 = scmp.ne.s32.totalorder %s240, %s243
      %p252 = scmp.eq.s32.totalorder %s22, 2
      %p253 = por %p251, %p252
      %p254 = scmp.ne.s32.totalorder %s243, %s244
      %p255 = scmp.eq.s32.totalorder %s22, 0
      %p256 = por %p254, %p255
      %p257 = scmp.ne.s32.totalorder %s243, %s244
      %p258 = scmp.eq.s32.totalorder %s23, 2
      %p259 = por %p257, %p258
      %p261 = scmp.ne.s32.totalorder %s244, %s260
      %p262 = scmp.eq.s32.totalorder %s23, 0
      %p263 = por %p261, %p262
      %p264 = scmp.le.s32.totalorder 1, %s17
      %p265 = scmp.lt.s32.totalorder %s17, 4
      %p266 = pnand %p264, %p265
      %p267 = pneg %p266
      // Predicated region
      $region9: #{_forward_impl.1} parent=5 // pred_check
        _
      $region10: #{_forward_impl.1} parent=5 // pred_check_branch
        %269 = sbr.rel (%p266) target = $region12
      $region11: #{_forward_impl.1} parent=5 // pred_region
        %s270 = ssub.s32 %s17, 1
        // Predicated region
        $region13: #{_forward_impl.1} parent=11 // pred_check
          %p271 = pneg %p83
        $region14: #{_forward_impl.1} parent=11 // pred_check_branch
          %273 = sbr.rel (%p271) target = $region16
        $region15: #{_forward_impl.1} parent=11 // pred_region
          %s274 = smul.u32 96, %s27
          %p275 = scmp.lt.s32.totalorder %s274, 95
          %s276 = scalar_select %p275, %s274, 95
          %s277 = smul.addr %s276, 4
          %s278 = smul.addr %s277, 4
          %s279 = scalar_lea.vmem %s1, %s278
          %s280 = smul.u32 96, %s27
        $region16: #{_forward_impl.1} parent=11 // pred_fallthru
          _
        // Predicated region
        $region17: #{_forward_impl.1} parent=11 // pred_check
          %p281 = pneg %p104
        $region18: #{_forward_impl.1} parent=11 // pred_check_branch
          %283 = sbr.rel (%p281) target = $region20
        $region19: #{_forward_impl.1} parent=11 // pred_region
          _
        $region20: #{_forward_impl.1} parent=11 // pred_fallthru
          _
        // Predicated region
        $region21: #{_forward_impl.1} parent=11 // pred_check
          %p284 = pneg %p125
        $region22: #{_forward_impl.1} parent=11 // pred_check_branch
          %286 = sbr.rel (%p284) target = $region24
        $region23: #{_forward_impl.1} parent=11 // pred_region
          _
        $region24: #{_forward_impl.1} parent=11 // pred_fallthru
          _
        // Predicated region
        $region25: #{_forward_impl.1} parent=11 // pred_check
          %p287 = pneg %p146
        $region26: #{_forward_impl.1} parent=11 // pred_check_branch
          %289 = sbr.rel (%p287) target = $region28
        $region27: #{_forward_impl.1} parent=11 // pred_region
          _
        $region28: #{_forward_impl.1} parent=11 // pred_fallthru
          _
        // Predicated region
        $region29: #{_forward_impl.1} parent=11 // pred_check
          %p290 = pneg %p167
        $region30: #{_forward_impl.1} parent=11 // pred_check_branch
          %292 = sbr.rel (%p290) target = $region32
        $region31: #{_forward_impl.1} parent=11 // pred_region
          _
        $region32: #{_forward_impl.1} parent=11 // pred_fallthru
          _
        // Predicated region
        $region33: #{_forward_impl.1} parent=11 // pred_check
          %p293 = pneg %p188
        $region34: #{_forward_impl.1} parent=11 // pred_check_branch
          %295 = sbr.rel (%p293) target = $region36
        $region35: #{_forward_impl.1} parent=11 // pred_region
          _
        $region36: #{_forward_impl.1} parent=11 // pred_fallthru
          _
        // Predicated region
        $region37: #{_forward_impl.1} parent=11 // pred_check
          %p296 = pneg %p209
        $region38: #{_forward_impl.1} parent=11 // pred_check_branch
          %298 = sbr.rel (%p296) target = $region40
        $region39: #{_forward_impl.1} parent=11 // pred_region
          _
        $region40: #{_forward_impl.1} parent=11 // pred_fallthru
          _
        // Predicated region
        $region41: #{_forward_impl.1} parent=11 // pred_check
          %p299 = pneg %p230
        $region42: #{_forward_impl.1} parent=11 // pred_check_branch
          %301 = sbr.rel (%p299) target = $region44
        $region43: #{_forward_impl.1} parent=11 // pred_region
          _
        $region44: #{_forward_impl.1} parent=11 // pred_fallthru
          _
      $region12: #{_forward_impl.1} parent=5 // pred_fallthru
        _
      %p302 = scmp.lt.s32.totalorder %s17, 3
      // Predicated region
      $region45: #{_forward_impl.1} parent=5 // pred_check
        %p303 = pneg %p302
      $region46: #{_forward_impl.1} parent=5 // pred_check_branch
        %305 = sbr.rel (%p303) target = $region48
      $region47: #{_forward_impl.1} parent=5 // pred_region
        // Predicated region
        $region49: #{_forward_impl.1} parent=47 // pred_check
          %p306 = pneg %p51
        $region50: #{_forward_impl.1} parent=47 // pred_check_branch
          %308 = sbr.rel (%p306) target = $region52
        $region51: #{_forward_impl.1} parent=47 // pred_region
          %s309 = smul.u32 16, %s24
          %s310 = smul.u32 6, %s25
          %s311 = ssub.s32 38, %s309
          %p312 = scmp.lt.s32.totalorder %s311, 16
          %s313 = scalar_select %p312, %s311, 16
          %s314 = smul.u32 4, %s313
          %s315 = smul.u32 %s314, 6
          %p316 = scmp.lt.s32.totalorder %s309, 37
          %s317 = scalar_select %p316, %s309, 37
          %p318 = scmp.lt.s32.totalorder %s310, 5
          %s319 = scalar_select %p318, %s310, 5
          %s320 = smul.addr %s317, 6
          %s321 = sadd.s32 %s319, %s320
          %s322 = smul.addr %s321, 4
          %s323 = scalar_lea.vmem %s0, %s322
          %s324 = smul.u32 16, %s24
          %s325 = smul.u32 6, %s25
          %s326 = ssub.s32 38, %s324
          %p327 = scmp.lt.s32.totalorder %s326, 16
          %s328 = scalar_select %p327, %s326, 16
          %s329 = smul.u32 4, %s328
          %s330 = smul.u32 %s329, 6
        $region52: #{_forward_impl.1} parent=47 // pred_fallthru
          _
      $region48: #{_forward_impl.1} parent=5 // pred_fallthru
        _
      %p331 = scmp.le.s32.totalorder 1, %s17
      %p332 = scmp.lt.s32.totalorder %s17, 4
      %p333 = pnand %p331, %p332
      %p334 = pneg %p333
      // Predicated region
      $region53: #{_forward_impl.1} parent=5 // pred_check
        _
      $region54: #{_forward_impl.1} parent=5 // pred_check_branch
        %336 = sbr.rel (%p333) target = $region56
      $region55: #{_forward_impl.1} parent=5 // pred_region
        %s337 = ssub.s32 %s17, 1
        %s338 = smul.u32 16, %s26
        %s339 = smul.u32 6, %s27
        %s340 = ssub.s32 38, %s338
        %p341 = scmp.lt.s32.totalorder %s340, 16
        %s342 = scalar_select %p341, %s340, 16
        %s343 = smul.u32 4, %s342
        %s344 = smul.u32 %s343, 6
        %p345 = scmp.lt.s32.totalorder %s338, 37
        %s346 = scalar_select %p345, %s338, 37
        %p347 = scmp.lt.s32.totalorder %s339, 5
        %s348 = scalar_select %p347, %s339, 5
        %s349 = smul.addr %s346, 6
        %s350 = sadd.s32 %s348, %s349
        %s351 = smul.addr %s350, 4
        %s352 = scalar_lea.vmem %s0, %s351
        %p353 = pneg %p57
        %p354 = pneg %p54
        %s355 = smul.u32 96, %s27
        %p356 = scmp.lt.s32.totalorder %s355, 95
        %s357 = scalar_select %p356, %s355, 95
        %s358 = smul.addr %s357, 4
        %s359 = smul.addr %s358, 4
        %s360 = scalar_lea.vmem %s1, %s359
        %p361 = pneg %p83
        %p362 = pneg %p80
        %p363 = pneg %p104
        %p364 = pneg %p101
        %p365 = pneg %p125
        %p366 = pneg %p122
        %p367 = pneg %p146
        %p368 = pneg %p143
        %p369 = pneg %p167
        %p370 = pneg %p164
        %p371 = pneg %p188
        %p372 = pneg %p185
        %p373 = pneg %p209
        %p374 = pneg %p206
        %p375 = pneg %p230
        %p376 = pneg %p227
        %p377 = pneg %p256
        %p378 = pneg %p253
        %s379 = sand.u32 %s243, 1
        %s380 = sand.u32 %s243, 1
        %s381 = smul.addr %s380, 128
        %s382 = scalar_lea.vmem [#allocation4], %s381
        %s383 = smul.u32 16, %s26
        %s384 = smul.u32 6, %s27
        %s385 = ssub.s32 38, %s383
        %p386 = scmp.lt.s32.totalorder %s385, 16
        %s387 = scalar_select %p386, %s385, 16
        %s388 = smul.u32 4, %s387
        %s389 = smul.u32 %s388, 6
        %p390 = scmp.lt.s32.totalorder %s383, 37
        %s391 = scalar_select %p390, %s383, 37
        %p392 = scmp.lt.s32.totalorder %s384, 5
        %s393 = scalar_select %p392, %s384, 5
        %s394 = smul.addr %s391, 6
        %s395 = sadd.s32 %s393, %s394
        %s396 = smul.addr %s395, 4
        %s397 = scalar_lea.vmem %s0, %s396
        %s398 = smul.u32 16, %s26
        %s399 = smul.u32 6, %s27
        %s400 = ssub.s32 38, %s398
        %p401 = scmp.lt.s32.totalorder %s400, 16
        %s402 = scalar_select %p401, %s400, 16
        %s403 = smul.u32 4, %s402
        %s404 = smul.u32 %s403, 6
        %s405 = smul.u32 96, %s27
        %p406 = scmp.lt.s32.totalorder %s405, 95
        %s407 = scalar_select %p406, %s405, 95
        %s408 = smul.addr %s407, 4
        %s409 = smul.addr %s408, 4
        %s410 = scalar_lea.vmem %s1, %s409
        %s411 = smul.u32 96, %s27
        %s412 = smul.u32 16, %s26
        %s413 = ssub.s32 38, %s412
        %p414 = scmp.lt.s32.totalorder %s413, 16
        %s415 = scalar_select %p414, %s413, 16
        %s416 = smul.u32 8, %s415
        %p417 = scmp.eq.s32.totalorder %s27, 0
        // Predicated region
        $region57: #{_forward_impl.1} parent=55 // pred_check
          %p418 = pneg %p417
        $region58: #{_forward_impl.1} parent=55 // pred_check_branch
          %420 = sbr.rel (%p418) target = $region60
        $region59: #{_forward_impl.1} parent=55 // pred_region
          %421 = vst [vmem:[#allocation2] sm:$0xff] 0.0
          %422 = vst [vmem:[#allocation2 + $0x8] sm:$0xff] 0.0
          %423 = vst [vmem:[#allocation2 + $0x10] sm:$0xff] 0.0
          %424 = vst [vmem:[#allocation2 + $0x18] sm:$0xff] 0.0
          %425 = vst [vmem:[#allocation2 + $0x20] sm:$0xff] 0.0
          %426 = vst [vmem:[#allocation2 + $0x28] sm:$0xff] 0.0
          %427 = vst [vmem:[#allocation2 + $0x30] sm:$0xff] 0.0
          %428 = vst [vmem:[#allocation2 + $0x38] sm:$0xff] 0.0
          %429 = vst [vmem:[#allocation2 + $0x40] sm:$0xff] 0.0
          %430 = vst [vmem:[#allocation2 + $0x48] sm:$0xff] 0.0
          %431 = vst [vmem:[#allocation2 + $0x50] sm:$0xff] 0.0
          %432 = vst [vmem:[#allocation2 + $0x58] sm:$0xff] 0.0
          %433 = vst [vmem:[#allocation2 + $0x60] sm:$0xff] 0.0
          %434 = vst [vmem:[#allocation2 + $0x68] sm:$0xff] 0.0
          %435 = vst [vmem:[#allocation2 + $0x70] sm:$0xff] 0.0
          %436 = vst [vmem:[#allocation2 + $0x78] sm:$0xff] 0.0
          %437 = vst [vmem:[#allocation2 + $0x80] sm:$0xff] 0.0
          %438 = vst [vmem:[#allocation2 + $0x88] sm:$0xff] 0.0
          %439 = vst [vmem:[#allocation2 + $0x90] sm:$0xff] 0.0
          %440 = vst [vmem:[#allocation2 + $0x98] sm:$0xff] 0.0
          %441 = vst [vmem:[#allocation2 + $0xa0] sm:$0xff] 0.0
          %442 = vst [vmem:[#allocation2 + $0xa8] sm:$0xff] 0.0
          %443 = vst [vmem:[#allocation2 + $0xb0] sm:$0xff] 0.0
          %444 = vst [vmem:[#allocation2 + $0xb8] sm:$0xff] 0.0
          %445 = vst [vmem:[#allocation2 + $0xc0] sm:$0xff] 0.0
          %446 = vst [vmem:[#allocation2 + $0xc8] sm:$0xff] 0.0
          %447 = vst [vmem:[#allocation2 + $0xd0] sm:$0xff] 0.0
          %448 = vst [vmem:[#allocation2 + $0xd8] sm:$0xff] 0.0
          %449 = vst [vmem:[#allocation2 + $0xe0] sm:$0xff] 0.0
          %450 = vst [vmem:[#allocation2 + $0xe8] sm:$0xff] 0.0
          %451 = vst [vmem:[#allocation2 + $0xf0] sm:$0xff] 0.0
          %452 = vst [vmem:[#allocation2 + $0xf8] sm:$0xff] 0.0
          %453 = vst [vmem:[#allocation2 + $0x100] sm:$0xff] 0.0
          %454 = vst [vmem:[#allocation2 + $0x108] sm:$0xff] 0.0
          %455 = vst [vmem:[#allocation2 + $0x110] sm:$0xff] 0.0
          %456 = vst [vmem:[#allocation2 + $0x118] sm:$0xff] 0.0
          %457 = vst [vmem:[#allocation2 + $0x120] sm:$0xff] 0.0
          %458 = vst [vmem:[#allocation2 + $0x128] sm:$0xff] 0.0
          %459 = vst [vmem:[#allocation2 + $0x130] sm:$0xff] 0.0
          %460 = vst [vmem:[#allocation2 + $0x138] sm:$0xff] 0.0
          %461 = vst [vmem:[#allocation2 + $0x140] sm:$0xff] 0.0
          %462 = vst [vmem:[#allocation2 + $0x148] sm:$0xff] 0.0
          %463 = vst [vmem:[#allocation2 + $0x150] sm:$0xff] 0.0
          %464 = vst [vmem:[#allocation2 + $0x158] sm:$0xff] 0.0
          %465 = vst [vmem:[#allocation2 + $0x160] sm:$0xff] 0.0
          %466 = vst [vmem:[#allocation2 + $0x168] sm:$0xff] 0.0
          %467 = vst [vmem:[#allocation2 + $0x170] sm:$0xff] 0.0
          %468 = vst [vmem:[#allocation2 + $0x178] sm:$0xff] 0.0
          %469 = vst [vmem:[#allocation2 + $0x180] sm:$0xff] 0.0
          %470 = vst [vmem:[#allocation2 + $0x188] sm:$0xff] 0.0
          %471 = vst [vmem:[#allocation2 + $0x190] sm:$0xff] 0.0
          %472 = vst [vmem:[#allocation2 + $0x198] sm:$0xff] 0.0
          %473 = vst [vmem:[#allocation2 + $0x1a0] sm:$0xff] 0.0
          %474 = vst [vmem:[#allocation2 + $0x1a8] sm:$0xff] 0.0
          %475 = vst [vmem:[#allocation2 + $0x1b0] sm:$0xff] 0.0
          %476 = vst [vmem:[#allocation2 + $0x1b8] sm:$0xff] 0.0
          %477 = vst [vmem:[#allocation2 + $0x1c0] sm:$0xff] 0.0
          %478 = vst [vmem:[#allocation2 + $0x1c8] sm:$0xff] 0.0
          %479 = vst [vmem:[#allocation2 + $0x1d0] sm:$0xff] 0.0
          %480 = vst [vmem:[#allocation2 + $0x1d8] sm:$0xff] 0.0
          %481 = vst [vmem:[#allocation2 + $0x1e0] sm:$0xff] 0.0
          %482 = vst [vmem:[#allocation2 + $0x1e8] sm:$0xff] 0.0
          %483 = vst [vmem:[#allocation2 + $0x1f0] sm:$0xff] 0.0
          %484 = vst [vmem:[#allocation2 + $0x1f8] sm:$0xff] 0.0
        $region60: #{_forward_impl.1} parent=55 // pred_fallthru
          _
        %v485 = vld [vmem:[%s397] sm:$0xff]
        %v486 = vld [vmem:[%s397 + $0x8] sm:$0xff]
        %v487 = vld [vmem:[%s397 + $0x10] sm:$0xff]
        %v488 = vld [vmem:[%s397 + $0x18] sm:$0xff]
        %v489 = vld [vmem:[%s397 + $0x20] sm:$0xff]
        %v490 = vld [vmem:[%s397 + $0x28] sm:$0xff]
        %v491 = vld [vmem:[%s397 + $0x30] sm:$0xff]
        %v492 = vld [vmem:[%s397 + $0x38] sm:$0xff]
        %v493 = vld [vmem:[%s397 + $0x40] sm:$0xff]
        %v494 = vld [vmem:[%s397 + $0x48] sm:$0xff]
        %v495 = vld [vmem:[%s397 + $0x50] sm:$0xff]
        %v496 = vld [vmem:[%s397 + $0x58] sm:$0xff]
        %v497 = vld [vmem:[%s397 + $0x60] sm:$0xff]
        %v498 = vld [vmem:[%s397 + $0x68] sm:$0xff]
        %v499 = vld [vmem:[%s397 + $0x70] sm:$0xff]
        %v500 = vld [vmem:[%s397 + $0x78] sm:$0xff]
        %v501 = vld [vmem:[%s397 + $0x80] sm:$0xff]
        %v502 = vld [vmem:[%s397 + $0x88] sm:$0xff]
        %v503 = vld [vmem:[%s397 + $0x90] sm:$0xff]
        %v504 = vld [vmem:[%s397 + $0x98] sm:$0xff]
        %v505 = vld [vmem:[%s397 + $0xa0] sm:$0xff]
        %v506 = vld [vmem:[%s397 + $0xa8] sm:$0xff]
        %v507 = vld [vmem:[%s397 + $0xb0] sm:$0xff]
        %v508 = vld [vmem:[%s397 + $0xb8] sm:$0xff]
        %v509 = vld [vmem:[%s397 + $0xc0] sm:$0xff]
        %v510 = vld [vmem:[%s397 + $0xc8] sm:$0xff]
        %v511 = vld [vmem:[%s397 + $0xd0] sm:$0xff]
        %v512 = vld [vmem:[%s397 + $0xd8] sm:$0xff]
        %v513 = vld [vmem:[%s397 + $0xe0] sm:$0xff]
        %v514 = vld [vmem:[%s397 + $0xe8] sm:$0xff]
        %v515 = vld [vmem:[%s397 + $0xf0] sm:$0xff]
        %v516 = vld [vmem:[%s397 + $0xf8] sm:$0xff]
        %v517 = vld [vmem:[%s397 + $0x100] sm:$0xff]
        %v518 = vld [vmem:[%s397 + $0x108] sm:$0xff]
        %v519 = vld [vmem:[%s397 + $0x110] sm:$0xff]
        %v520 = vld [vmem:[%s397 + $0x118] sm:$0xff]
        %v521 = vld [vmem:[%s397 + $0x120] sm:$0xff]
        %v522 = vld [vmem:[%s397 + $0x128] sm:$0xff]
        %v523 = vld [vmem:[%s397 + $0x130] sm:$0xff]
        %v524 = vld [vmem:[%s397 + $0x138] sm:$0xff]
        %v525 = vld [vmem:[%s397 + $0x140] sm:$0xff]
        %v526 = vld [vmem:[%s397 + $0x148] sm:$0xff]
        %v527 = vld [vmem:[%s397 + $0x150] sm:$0xff]
        %v528 = vld [vmem:[%s397 + $0x158] sm:$0xff]
        %v529 = vld [vmem:[%s397 + $0x160] sm:$0xff]
        %v530 = vld [vmem:[%s397 + $0x168] sm:$0xff]
        %v531 = vld [vmem:[%s397 + $0x170] sm:$0xff]
        %v532 = vld [vmem:[%s397 + $0x178] sm:$0xff]
        %v533 = vld [vmem:[%s410] sm:$0xff]
        %v534 = vld [vmem:[%s410 + $0x8] sm:$0xff]
        %v535 = vld [vmem:[%s410 + $0x10] sm:$0xff]
        %v536 = vld [vmem:[%s410 + $0x18] sm:$0xff]
        %v537 = vld [vmem:[%s410 + $0x20] sm:$0xff]
        %v538 = vld [vmem:[%s410 + $0x28] sm:$0xff]
        %v539 = vld [vmem:[%s410 + $0x30] sm:$0xff]
        %v540 = vld [vmem:[%s410 + $0x38] sm:$0xff]
        %v541 = vld [vmem:[%s410 + $0x40] sm:$0xff]
        %v542 = vld [vmem:[%s410 + $0x48] sm:$0xff]
        %v543 = vld [vmem:[%s410 + $0x50] sm:$0xff]
        %v544 = vld [vmem:[%s410 + $0x58] sm:$0xff]
        %v545 = vld [vmem:[%s410 + $0x60] sm:$0xff]
        %v546 = vld [vmem:[%s410 + $0x68] sm:$0xff]
        %v547 = vld [vmem:[%s410 + $0x70] sm:$0xff]
        %v548 = vld [vmem:[%s410 + $0x78] sm:$0xff]
        %v549 = vld [vmem:[%s410 + $0x80] sm:$0xff]
        %v550 = vld [vmem:[%s410 + $0x88] sm:$0xff]
        %v551 = vld [vmem:[%s410 + $0x90] sm:$0xff]
        %v552 = vld [vmem:[%s410 + $0x98] sm:$0xff]
        %v553 = vld [vmem:[%s410 + $0xa0] sm:$0xff]
        %v554 = vld [vmem:[%s410 + $0xa8] sm:$0xff]
        %v555 = vld [vmem:[%s410 + $0xb0] sm:$0xff]
        %v556 = vld [vmem:[%s410 + $0xb8] sm:$0xff]
        %v557 = vld [vmem:[%s410 + $0xc0] sm:$0xff]
        %v558 = vld [vmem:[%s410 + $0xc8] sm:$0xff]
        %v559 = vld [vmem:[%s410 + $0xd0] sm:$0xff]
        %v560 = vld [vmem:[%s410 + $0xd8] sm:$0xff]
        %v561 = vld [vmem:[%s410 + $0xe0] sm:$0xff]
        %v562 = vld [vmem:[%s410 + $0xe8] sm:$0xff]
        %v563 = vld [vmem:[%s410 + $0xf0] sm:$0xff]
        %v564 = vld [vmem:[%s410 + $0xf8] sm:$0xff]
        %v565 = vld [vmem:[%s410 + $0x100] sm:$0xff]
        %v566 = vld [vmem:[%s410 + $0x108] sm:$0xff]
        %v567 = vld [vmem:[%s410 + $0x110] sm:$0xff]
        %v568 = vld [vmem:[%s410 + $0x118] sm:$0xff]
        %v569 = vld [vmem:[%s410 + $0x120] sm:$0xff]
        %v570 = vld [vmem:[%s410 + $0x128] sm:$0xff]
        %v571 = vld [vmem:[%s410 + $0x130] sm:$0xff]
        %v572 = vld [vmem:[%s410 + $0x138] sm:$0xff]
        %v573 = vld [vmem:[%s410 + $0x140] sm:$0xff]
        %v574 = vld [vmem:[%s410 + $0x148] sm:$0xff]
        %v575 = vld [vmem:[%s410 + $0x150] sm:$0xff]
        %v576 = vld [vmem:[%s410 + $0x158] sm:$0xff]
        %v577 = vld [vmem:[%s410 + $0x160] sm:$0xff]
        %v578 = vld [vmem:[%s410 + $0x168] sm:$0xff]
        %v579 = vld [vmem:[%s410 + $0x170] sm:$0xff]
        %v580 = vld [vmem:[%s410 + $0x178] sm:$0xff]
        %v581 = vld [vmem:[%s410 + $0x180] sm:$0xff]
        %v582 = vld [vmem:[%s410 + $0x188] sm:$0xff]
        %v583 = vld [vmem:[%s410 + $0x190] sm:$0xff]
        %v584 = vld [vmem:[%s410 + $0x198] sm:$0xff]
        %v585 = vld [vmem:[%s410 + $0x1a0] sm:$0xff]
        %v586 = vld [vmem:[%s410 + $0x1a8] sm:$0xff]
        %v587 = vld [vmem:[%s410 + $0x1b0] sm:$0xff]
        %v588 = vld [vmem:[%s410 + $0x1b8] sm:$0xff]
        %v589 = vld [vmem:[%s410 + $0x1c0] sm:$0xff]
        %v590 = vld [vmem:[%s410 + $0x1c8] sm:$0xff]
        %v591 = vld [vmem:[%s410 + $0x1d0] sm:$0xff]
        %v592 = vld [vmem:[%s410 + $0x1d8] sm:$0xff]
        %v593 = vld [vmem:[%s410 + $0x1e0] sm:$0xff]
        %v594 = vld [vmem:[%s410 + $0x1e8] sm:$0xff]
        %v595 = vld [vmem:[%s410 + $0x1f0] sm:$0xff]
        %v596 = vld [vmem:[%s410 + $0x1f8] sm:$0xff]
        %v597 = vld [vmem:[%s410 + $0x200] sm:$0xff]
        %v598 = vld [vmem:[%s410 + $0x208] sm:$0xff]
        %v599 = vld [vmem:[%s410 + $0x210] sm:$0xff]
        %v600 = vld [vmem:[%s410 + $0x218] sm:$0xff]
        %v601 = vld [vmem:[%s410 + $0x220] sm:$0xff]
        %v602 = vld [vmem:[%s410 + $0x228] sm:$0xff]
        %v603 = vld [vmem:[%s410 + $0x230] sm:$0xff]
        %v604 = vld [vmem:[%s410 + $0x238] sm:$0xff]
        %v605 = vld [vmem:[%s410 + $0x240] sm:$0xff]
        %v606 = vld [vmem:[%s410 + $0x248] sm:$0xff]
        %v607 = vld [vmem:[%s410 + $0x250] sm:$0xff]
        %v608 = vld [vmem:[%s410 + $0x258] sm:$0xff]
        %v609 = vld [vmem:[%s410 + $0x260] sm:$0xff]
        %v610 = vld [vmem:[%s410 + $0x268] sm:$0xff]
        %v611 = vld [vmem:[%s410 + $0x270] sm:$0xff]
        %v612 = vld [vmem:[%s410 + $0x278] sm:$0xff]
        %v613 = vld [vmem:[%s410 + $0x280] sm:$0xff]
        %v614 = vld [vmem:[%s410 + $0x288] sm:$0xff]
        %v615 = vld [vmem:[%s410 + $0x290] sm:$0xff]
        %v616 = vld [vmem:[%s410 + $0x298] sm:$0xff]
        %v617 = vld [vmem:[%s410 + $0x2a0] sm:$0xff]
        %v618 = vld [vmem:[%s410 + $0x2a8] sm:$0xff]
        %v619 = vld [vmem:[%s410 + $0x2b0] sm:$0xff]
        %v620 = vld [vmem:[%s410 + $0x2b8] sm:$0xff]
        %v621 = vld [vmem:[%s410 + $0x2c0] sm:$0xff]
        %v622 = vld [vmem:[%s410 + $0x2c8] sm:$0xff]
        %v623 = vld [vmem:[%s410 + $0x2d0] sm:$0xff]
        %v624 = vld [vmem:[%s410 + $0x2d8] sm:$0xff]
        %v625 = vld [vmem:[%s410 + $0x2e0] sm:$0xff]
        %v626 = vld [vmem:[%s410 + $0x2e8] sm:$0xff]
        %v627 = vld [vmem:[%s410 + $0x2f0] sm:$0xff]
        %v628 = vld [vmem:[%s410 + $0x2f8] sm:$0xff]
        %v629 = vld [vmem:[%s410 + $0x300] sm:$0xff]
        %v630 = vld [vmem:[%s410 + $0x308] sm:$0xff]
        %v631 = vld [vmem:[%s410 + $0x310] sm:$0xff]
        %v632 = vld [vmem:[%s410 + $0x318] sm:$0xff]
        %v633 = vld [vmem:[%s410 + $0x320] sm:$0xff]
        %v634 = vld [vmem:[%s410 + $0x328] sm:$0xff]
        %v635 = vld [vmem:[%s410 + $0x330] sm:$0xff]
        %v636 = vld [vmem:[%s410 + $0x338] sm:$0xff]
        %v637 = vld [vmem:[%s410 + $0x340] sm:$0xff]
        %v638 = vld [vmem:[%s410 + $0x348] sm:$0xff]
        %v639 = vld [vmem:[%s410 + $0x350] sm:$0xff]
        %v640 = vld [vmem:[%s410 + $0x358] sm:$0xff]
        %v641 = vld [vmem:[%s410 + $0x360] sm:$0xff]
        %v642 = vld [vmem:[%s410 + $0x368] sm:$0xff]
        %v643 = vld [vmem:[%s410 + $0x370] sm:$0xff]
        %v644 = vld [vmem:[%s410 + $0x378] sm:$0xff]
        %v645 = vld [vmem:[%s410 + $0x380] sm:$0xff]
        %v646 = vld [vmem:[%s410 + $0x388] sm:$0xff]
        %v647 = vld [vmem:[%s410 + $0x390] sm:$0xff]
        %v648 = vld [vmem:[%s410 + $0x398] sm:$0xff]
        %v649 = vld [vmem:[%s410 + $0x3a0] sm:$0xff]
        %v650 = vld [vmem:[%s410 + $0x3a8] sm:$0xff]
        %v651 = vld [vmem:[%s410 + $0x3b0] sm:$0xff]
        %v652 = vld [vmem:[%s410 + $0x3b8] sm:$0xff]
        %v653 = vld [vmem:[%s410 + $0x3c0] sm:$0xff]
        %v654 = vld [vmem:[%s410 + $0x3c8] sm:$0xff]
        %v655 = vld [vmem:[%s410 + $0x3d0] sm:$0xff]
        %v656 = vld [vmem:[%s410 + $0x3d8] sm:$0xff]
        %v657 = vld [vmem:[%s410 + $0x3e0] sm:$0xff]
        %v658 = vld [vmem:[%s410 + $0x3e8] sm:$0xff]
        %v659 = vld [vmem:[%s410 + $0x3f0] sm:$0xff]
        %v660 = vld [vmem:[%s410 + $0x3f8] sm:$0xff]
        %v661 = vld [vmem:[%s410 + $0x400] sm:$0xff]
        %v662 = vld [vmem:[%s410 + $0x408] sm:$0xff]
        %v663 = vld [vmem:[%s410 + $0x410] sm:$0xff]
        %v664 = vld [vmem:[%s410 + $0x418] sm:$0xff]
        %v665 = vld [vmem:[%s410 + $0x420] sm:$0xff]
        %v666 = vld [vmem:[%s410 + $0x428] sm:$0xff]
        %v667 = vld [vmem:[%s410 + $0x430] sm:$0xff]
        %v668 = vld [vmem:[%s410 + $0x438] sm:$0xff]
        %v669 = vld [vmem:[%s410 + $0x440] sm:$0xff]
        %v670 = vld [vmem:[%s410 + $0x448] sm:$0xff]
        %v671 = vld [vmem:[%s410 + $0x450] sm:$0xff]
        %v672 = vld [vmem:[%s410 + $0x458] sm:$0xff]
        %v673 = vld [vmem:[%s410 + $0x460] sm:$0xff]
        %v674 = vld [vmem:[%s410 + $0x468] sm:$0xff]
        %v675 = vld [vmem:[%s410 + $0x470] sm:$0xff]
        %v676 = vld [vmem:[%s410 + $0x478] sm:$0xff]
        %v677 = vld [vmem:[%s410 + $0x480] sm:$0xff]
        %v678 = vld [vmem:[%s410 + $0x488] sm:$0xff]
        %v679 = vld [vmem:[%s410 + $0x490] sm:$0xff]
        %v680 = vld [vmem:[%s410 + $0x498] sm:$0xff]
        %v681 = vld [vmem:[%s410 + $0x4a0] sm:$0xff]
        %v682 = vld [vmem:[%s410 + $0x4a8] sm:$0xff]
        %v683 = vld [vmem:[%s410 + $0x4b0] sm:$0xff]
        %v684 = vld [vmem:[%s410 + $0x4b8] sm:$0xff]
        %v685 = vld [vmem:[%s410 + $0x4c0] sm:$0xff]
        %v686 = vld [vmem:[%s410 + $0x4c8] sm:$0xff]
        %v687 = vld [vmem:[%s410 + $0x4d0] sm:$0xff]
        %v688 = vld [vmem:[%s410 + $0x4d8] sm:$0xff]
        %v689 = vld [vmem:[%s410 + $0x4e0] sm:$0xff]
        %v690 = vld [vmem:[%s410 + $0x4e8] sm:$0xff]
        %v691 = vld [vmem:[%s410 + $0x4f0] sm:$0xff]
        %v692 = vld [vmem:[%s410 + $0x4f8] sm:$0xff]
        %v693 = vld [vmem:[%s410 + $0x500] sm:$0xff]
        %v694 = vld [vmem:[%s410 + $0x508] sm:$0xff]
        %v695 = vld [vmem:[%s410 + $0x510] sm:$0xff]
        %v696 = vld [vmem:[%s410 + $0x518] sm:$0xff]
        %v697 = vld [vmem:[%s410 + $0x520] sm:$0xff]
        %v698 = vld [vmem:[%s410 + $0x528] sm:$0xff]
        %v699 = vld [vmem:[%s410 + $0x530] sm:$0xff]
        %v700 = vld [vmem:[%s410 + $0x538] sm:$0xff]
        %v701 = vld [vmem:[%s410 + $0x540] sm:$0xff]
        %v702 = vld [vmem:[%s410 + $0x548] sm:$0xff]
        %v703 = vld [vmem:[%s410 + $0x550] sm:$0xff]
        %v704 = vld [vmem:[%s410 + $0x558] sm:$0xff]
        %v705 = vld [vmem:[%s410 + $0x560] sm:$0xff]
        %v706 = vld [vmem:[%s410 + $0x568] sm:$0xff]
        %v707 = vld [vmem:[%s410 + $0x570] sm:$0xff]
        %v708 = vld [vmem:[%s410 + $0x578] sm:$0xff]
        %v709 = vld [vmem:[%s410 + $0x580] sm:$0xff]
        %v710 = vld [vmem:[%s410 + $0x588] sm:$0xff]
        %v711 = vld [vmem:[%s410 + $0x590] sm:$0xff]
        %v712 = vld [vmem:[%s410 + $0x598] sm:$0xff]
        %v713 = vld [vmem:[%s410 + $0x5a0] sm:$0xff]
        %v714 = vld [vmem:[%s410 + $0x5a8] sm:$0xff]
        %v715 = vld [vmem:[%s410 + $0x5b0] sm:$0xff]
        %v716 = vld [vmem:[%s410 + $0x5b8] sm:$0xff]
        %v717 = vld [vmem:[%s410 + $0x5c0] sm:$0xff]
        %v718 = vld [vmem:[%s410 + $0x5c8] sm:$0xff]
        %v719 = vld [vmem:[%s410 + $0x5d0] sm:$0xff]
        %v720 = vld [vmem:[%s410 + $0x5d8] sm:$0xff]
        %v721 = vld [vmem:[%s410 + $0x5e0] sm:$0xff]
        %v722 = vld [vmem:[%s410 + $0x5e8] sm:$0xff]
        %v723 = vld [vmem:[%s410 + $0x5f0] sm:$0xff]
        %v724 = vld [vmem:[%s410 + $0x5f8] sm:$0xff]
        %v725 = vld [vmem:[#allocation2] sm:$0xff]
        %v726 = vld [vmem:[#allocation2 + $0x8] sm:$0xff]
        %v727 = vld [vmem:[#allocation2 + $0x10] sm:$0xff]
        %v728 = vld [vmem:[#allocation2 + $0x18] sm:$0xff]
        %v729 = vld [vmem:[#allocation2 + $0x20] sm:$0xff]
        %v730 = vld [vmem:[#allocation2 + $0x28] sm:$0xff]
        %v731 = vld [vmem:[#allocation2 + $0x30] sm:$0xff]
        %v732 = vld [vmem:[#allocation2 + $0x38] sm:$0xff]
        %v733 = vld [vmem:[#allocation2 + $0x40] sm:$0xff]
        %v734 = vld [vmem:[#allocation2 + $0x48] sm:$0xff]
        %v735 = vld [vmem:[#allocation2 + $0x50] sm:$0xff]
        %v736 = vld [vmem:[#allocation2 + $0x58] sm:$0xff]
        %v737 = vld [vmem:[#allocation2 + $0x60] sm:$0xff]
        %v738 = vld [vmem:[#allocation2 + $0x68] sm:$0xff]
        %v739 = vld [vmem:[#allocation2 + $0x70] sm:$0xff]
        %v740 = vld [vmem:[#allocation2 + $0x78] sm:$0xff]
        %v741 = vld [vmem:[#allocation2 + $0x80] sm:$0xff]
        %v742 = vld [vmem:[#allocation2 + $0x88] sm:$0xff]
        %v743 = vld [vmem:[#allocation2 + $0x90] sm:$0xff]
        %v744 = vld [vmem:[#allocation2 + $0x98] sm:$0xff]
        %v745 = vld [vmem:[#allocation2 + $0xa0] sm:$0xff]
        %v746 = vld [vmem:[#allocation2 + $0xa8] sm:$0xff]
        %v747 = vld [vmem:[#allocation2 + $0xb0] sm:$0xff]
        %v748 = vld [vmem:[#allocation2 + $0xb8] sm:$0xff]
        %v749 = vld [vmem:[#allocation2 + $0xc0] sm:$0xff]
        %v750 = vld [vmem:[#allocation2 + $0xc8] sm:$0xff]
        %v751 = vld [vmem:[#allocation2 + $0xd0] sm:$0xff]
        %v752 = vld [vmem:[#allocation2 + $0xd8] sm:$0xff]
        %v753 = vld [vmem:[#allocation2 + $0xe0] sm:$0xff]
        %v754 = vld [vmem:[#allocation2 + $0xe8] sm:$0xff]
        %v755 = vld [vmem:[#allocation2 + $0xf0] sm:$0xff]
        %v756 = vld [vmem:[#allocation2 + $0xf8] sm:$0xff]
        %v757 = vld [vmem:[#allocation2 + $0x100] sm:$0xff]
        %v758 = vld [vmem:[#allocation2 + $0x108] sm:$0xff]
        %v759 = vld [vmem:[#allocation2 + $0x110] sm:$0xff]
        %v760 = vld [vmem:[#allocation2 + $0x118] sm:$0xff]
        %v761 = vld [vmem:[#allocation2 + $0x120] sm:$0xff]
        %v762 = vld [vmem:[#allocation2 + $0x128] sm:$0xff]
        %v763 = vld [vmem:[#allocation2 + $0x130] sm:$0xff]
        %v764 = vld [vmem:[#allocation2 + $0x138] sm:$0xff]
        %v765 = vld [vmem:[#allocation2 + $0x140] sm:$0xff]
        %v766 = vld [vmem:[#allocation2 + $0x148] sm:$0xff]
        %v767 = vld [vmem:[#allocation2 + $0x150] sm:$0xff]
        %v768 = vld [vmem:[#allocation2 + $0x158] sm:$0xff]
        %v769 = vld [vmem:[#allocation2 + $0x160] sm:$0xff]
        %v770 = vld [vmem:[#allocation2 + $0x168] sm:$0xff]
        %v771 = vld [vmem:[#allocation2 + $0x170] sm:$0xff]
        %v772 = vld [vmem:[#allocation2 + $0x178] sm:$0xff]
        %v773 = vld [vmem:[#allocation2 + $0x180] sm:$0xff]
        %v774 = vld [vmem:[#allocation2 + $0x188] sm:$0xff]
        %v775 = vld [vmem:[#allocation2 + $0x190] sm:$0xff]
        %v776 = vld [vmem:[#allocation2 + $0x198] sm:$0xff]
        %v777 = vld [vmem:[#allocation2 + $0x1a0] sm:$0xff]
        %v778 = vld [vmem:[#allocation2 + $0x1a8] sm:$0xff]
        %v779 = vld [vmem:[#allocation2 + $0x1b0] sm:$0xff]
        %v780 = vld [vmem:[#allocation2 + $0x1b8] sm:$0xff]
        %v781 = vld [vmem:[#allocation2 + $0x1c0] sm:$0xff]
        %v782 = vld [vmem:[#allocation2 + $0x1c8] sm:$0xff]
        %v783 = vld [vmem:[#allocation2 + $0x1d0] sm:$0xff]
        %v784 = vld [vmem:[#allocation2 + $0x1d8] sm:$0xff]
        %v785 = vld [vmem:[#allocation2 + $0x1e0] sm:$0xff]
        %v786 = vld [vmem:[#allocation2 + $0x1e8] sm:$0xff]
        %v787 = vld [vmem:[#allocation2 + $0x1f0] sm:$0xff]
        %v788 = vld [vmem:[#allocation2 + $0x1f8] sm:$0xff]
        %v837 = vunpack.c.l.b16 %v485
        %v838 = vunpack.c.h.b16 %v485
        %v839 = vunpack.c.l.b16 %v486
        %v840 = vunpack.c.h.b16 %v486
        %v841 = vunpack.c.l.b16 %v487
        %v842 = vunpack.c.h.b16 %v487
        %v843 = vunpack.c.l.b16 %v488
        %v844 = vunpack.c.h.b16 %v488
        %v845 = vunpack.c.l.b16 %v489
        %v846 = vunpack.c.h.b16 %v489
        %v847 = vunpack.c.l.b16 %v490
        %v848 = vunpack.c.h.b16 %v490
        %v849 = vunpack.c.l.b16 %v491
        %v850 = vunpack.c.h.b16 %v491
        %v851 = vunpack.c.l.b16 %v492
        %v852 = vunpack.c.h.b16 %v492
        %v853 = vunpack.c.l.b16 %v493
        %v854 = vunpack.c.h.b16 %v493
        %v855 = vunpack.c.l.b16 %v494
        %v856 = vunpack.c.h.b16 %v494
        %v857 = vunpack.c.l.b16 %v495
        %v858 = vunpack.c.h.b16 %v495
        %v859 = vunpack.c.l.b16 %v496
        %v860 = vunpack.c.h.b16 %v496
        %v861 = vunpack.c.l.b16 %v497
        %v862 = vunpack.c.h.b16 %v497
        %v863 = vunpack.c.l.b16 %v498
        %v864 = vunpack.c.h.b16 %v498
        %v865 = vunpack.c.l.b16 %v499
        %v866 = vunpack.c.h.b16 %v499
        %v867 = vunpack.c.l.b16 %v500
        %v868 = vunpack.c.h.b16 %v500
        %v869 = vunpack.c.l.b16 %v501
        %v870 = vunpack.c.h.b16 %v501
        %v871 = vunpack.c.l.b16 %v502
        %v872 = vunpack.c.h.b16 %v502
        %v873 = vunpack.c.l.b16 %v503
        %v874 = vunpack.c.h.b16 %v503
        %v875 = vunpack.c.l.b16 %v504
        %v876 = vunpack.c.h.b16 %v504
        %v877 = vunpack.c.l.b16 %v505
        %v878 = vunpack.c.h.b16 %v505
        %v879 = vunpack.c.l.b16 %v506
        %v880 = vunpack.c.h.b16 %v506
        %v881 = vunpack.c.l.b16 %v507
        %v882 = vunpack.c.h.b16 %v507
        %v883 = vunpack.c.l.b16 %v508
        %v884 = vunpack.c.h.b16 %v508
        %v885 = vunpack.c.l.b16 %v509
        %v886 = vunpack.c.h.b16 %v509
        %v887 = vunpack.c.l.b16 %v510
        %v888 = vunpack.c.h.b16 %v510
        %v889 = vunpack.c.l.b16 %v511
        %v890 = vunpack.c.h.b16 %v511
        %v891 = vunpack.c.l.b16 %v512
        %v892 = vunpack.c.h.b16 %v512
        %v893 = vunpack.c.l.b16 %v513
        %v894 = vunpack.c.h.b16 %v513
        %v895 = vunpack.c.l.b16 %v514
        %v896 = vunpack.c.h.b16 %v514
        %v897 = vunpack.c.l.b16 %v515
        %v898 = vunpack.c.h.b16 %v515
        %v899 = vunpack.c.l.b16 %v516
        %v900 = vunpack.c.h.b16 %v516
        %v901 = vunpack.c.l.b16 %v517
        %v902 = vunpack.c.h.b16 %v517
        %v903 = vunpack.c.l.b16 %v518
        %v904 = vunpack.c.h.b16 %v518
        %v905 = vunpack.c.l.b16 %v519
        %v906 = vunpack.c.h.b16 %v519
        %v907 = vunpack.c.l.b16 %v520
        %v908 = vunpack.c.h.b16 %v520
        %v909 = vunpack.c.l.b16 %v521
        %v910 = vunpack.c.h.b16 %v521
        %v911 = vunpack.c.l.b16 %v522
        %v912 = vunpack.c.h.b16 %v522
        %v913 = vunpack.c.l.b16 %v523
        %v914 = vunpack.c.h.b16 %v523
        %v915 = vunpack.c.l.b16 %v524
        %v916 = vunpack.c.h.b16 %v524
        %v917 = vunpack.c.l.b16 %v525
        %v918 = vunpack.c.h.b16 %v525
        %v919 = vunpack.c.l.b16 %v526
        %v920 = vunpack.c.h.b16 %v526
        %v921 = vunpack.c.l.b16 %v527
        %v922 = vunpack.c.h.b16 %v527
        %v923 = vunpack.c.l.b16 %v528
        %v924 = vunpack.c.h.b16 %v528
        %v925 = vunpack.c.l.b16 %v529
        %v926 = vunpack.c.h.b16 %v529
        %v927 = vunpack.c.l.b16 %v530
        %v928 = vunpack.c.h.b16 %v530
        %v929 = vunpack.c.l.b16 %v531
        %v930 = vunpack.c.h.b16 %v531
        %v931 = vunpack.c.l.b16 %v532
        %v932 = vunpack.c.h.b16 %v532
        %v933 = vpack.c.b16 %v843, %v837
        %v934 = vpack.c.b16 %v844, %v838
        %v935 = vpack.c.b16 %v845, %v839
        %v936 = vpack.c.b16 %v846, %v840
        %v937 = vpack.c.b16 %v847, %v841
        %v938 = vpack.c.b16 %v848, %v842
        %v939 = vpack.c.b16 %v855, %v849
        %v940 = vpack.c.b16 %v856, %v850
        %v941 = vpack.c.b16 %v857, %v851
        %v942 = vpack.c.b16 %v858, %v852
        %v943 = vpack.c.b16 %v859, %v853
        %v944 = vpack.c.b16 %v860, %v854
        %v945 = vpack.c.b16 %v867, %v861
        %v946 = vpack.c.b16 %v868, %v862
        %v947 = vpack.c.b16 %v869, %v863
        %v948 = vpack.c.b16 %v870, %v864
        %v949 = vpack.c.b16 %v871, %v865
        %v950 = vpack.c.b16 %v872, %v866
        %v951 = vpack.c.b16 %v879, %v873
        %v952 = vpack.c.b16 %v880, %v874
        %v953 = vpack.c.b16 %v881, %v875
        %v954 = vpack.c.b16 %v882, %v876
        %v955 = vpack.c.b16 %v883, %v877
        %v956 = vpack.c.b16 %v884, %v878
        %v957 = vpack.c.b16 %v891, %v885
        %v958 = vpack.c.b16 %v892, %v886
        %v959 = vpack.c.b16 %v893, %v887
        %v960 = vpack.c.b16 %v894, %v888
        %v961 = vpack.c.b16 %v895, %v889
        %v962 = vpack.c.b16 %v896, %v890
        %v963 = vpack.c.b16 %v903, %v897
        %v964 = vpack.c.b16 %v904, %v898
        %v965 = vpack.c.b16 %v905, %v899
        %v966 = vpack.c.b16 %v906, %v900
        %v967 = vpack.c.b16 %v907, %v901
        %v968 = vpack.c.b16 %v908, %v902
        %v969 = vpack.c.b16 %v915, %v909
        %v970 = vpack.c.b16 %v916, %v910
        %v971 = vpack.c.b16 %v917, %v911
        %v972 = vpack.c.b16 %v918, %v912
        %v973 = vpack.c.b16 %v919, %v913
        %v974 = vpack.c.b16 %v920, %v914
        %v975 = vpack.c.b16 %v927, %v921
        %v976 = vpack.c.b16 %v928, %v922
        %v977 = vpack.c.b16 %v929, %v923
        %v978 = vpack.c.b16 %v930, %v924
        %v979 = vpack.c.b16 %v931, %v925
        %v980 = vpack.c.b16 %v932, %v926
        %v1221 = vunpack.c.l.b16 %v533
        %v1222 = vunpack.c.h.b16 %v533
        %v1223 = vunpack.c.l.b16 %v534
        %v1224 = vunpack.c.h.b16 %v534
        %v1225 = vunpack.c.l.b16 %v535
        %v1226 = vunpack.c.h.b16 %v535
        %v1227 = vunpack.c.l.b16 %v536
        %v1228 = vunpack.c.h.b16 %v536
        %v1229 = vunpack.c.l.b16 %v537
        %v1230 = vunpack.c.h.b16 %v537
        %v1231 = vunpack.c.l.b16 %v538
        %v1232 = vunpack.c.h.b16 %v538
        %v1233 = vunpack.c.l.b16 %v539
        %v1234 = vunpack.c.h.b16 %v539
        %v1235 = vunpack.c.l.b16 %v540
        %v1236 = vunpack.c.h.b16 %v540
        %v1237 = vunpack.c.l.b16 %v541
        %v1238 = vunpack.c.h.b16 %v541
        %v1239 = vunpack.c.l.b16 %v542
        %v1240 = vunpack.c.h.b16 %v542
        %v1241 = vunpack.c.l.b16 %v543
        %v1242 = vunpack.c.h.b16 %v543
        %v1243 = vunpack.c.l.b16 %v544
        %v1244 = vunpack.c.h.b16 %v544
        %v1245 = vunpack.c.l.b16 %v545
        %v1246 = vunpack.c.h.b16 %v545
        %v1247 = vunpack.c.l.b16 %v546
        %v1248 = vunpack.c.h.b16 %v546
        %v1249 = vunpack.c.l.b16 %v547
        %v1250 = vunpack.c.h.b16 %v547
        %v1251 = vunpack.c.l.b16 %v548
        %v1252 = vunpack.c.h.b16 %v548
        %v1253 = vunpack.c.l.b16 %v549
        %v1254 = vunpack.c.h.b16 %v549
        %v1255 = vunpack.c.l.b16 %v550
        %v1256 = vunpack.c.h.b16 %v550
        %v1257 = vunpack.c.l.b16 %v551
        %v1258 = vunpack.c.h.b16 %v551
        %v1259 = vunpack.c.l.b16 %v552
        %v1260 = vunpack.c.h.b16 %v552
        %v1261 = vunpack.c.l.b16 %v553
        %v1262 = vunpack.c.h.b16 %v553
        %v1263 = vunpack.c.l.b16 %v554
        %v1264 = vunpack.c.h.b16 %v554
        %v1265 = vunpack.c.l.b16 %v555
        %v1266 = vunpack.c.h.b16 %v555
        %v1267 = vunpack.c.l.b16 %v556
        %v1268 = vunpack.c.h.b16 %v556
        %v1269 = vunpack.c.l.b16 %v557
        %v1270 = vunpack.c.h.b16 %v557
        %v1271 = vunpack.c.l.b16 %v558
        %v1272 = vunpack.c.h.b16 %v558
        %v1273 = vunpack.c.l.b16 %v559
        %v1274 = vunpack.c.h.b16 %v559
        %v1275 = vunpack.c.l.b16 %v560
        %v1276 = vunpack.c.h.b16 %v560
        %v1277 = vunpack.c.l.b16 %v561
        %v1278 = vunpack.c.h.b16 %v561
        %v1279 = vunpack.c.l.b16 %v562
        %v1280 = vunpack.c.h.b16 %v562
        %v1281 = vunpack.c.l.b16 %v563
        %v1282 = vunpack.c.h.b16 %v563
        %v1283 = vunpack.c.l.b16 %v564
        %v1284 = vunpack.c.h.b16 %v564
        %v1285 = vunpack.c.l.b16 %v565
        %v1286 = vunpack.c.h.b16 %v565
        %v1287 = vunpack.c.l.b16 %v566
        %v1288 = vunpack.c.h.b16 %v566
        %v1289 = vunpack.c.l.b16 %v567
        %v1290 = vunpack.c.h.b16 %v567
        %v1291 = vunpack.c.l.b16 %v568
        %v1292 = vunpack.c.h.b16 %v568
        %v1293 = vunpack.c.l.b16 %v569
        %v1294 = vunpack.c.h.b16 %v569
        %v1295 = vunpack.c.l.b16 %v570
        %v1296 = vunpack.c.h.b16 %v570
        %v1297 = vunpack.c.l.b16 %v571
        %v1298 = vunpack.c.h.b16 %v571
        %v1299 = vunpack.c.l.b16 %v572
        %v1300 = vunpack.c.h.b16 %v572
        %v1301 = vunpack.c.l.b16 %v573
        %v1302 = vunpack.c.h.b16 %v573
        %v1303 = vunpack.c.l.b16 %v574
        %v1304 = vunpack.c.h.b16 %v574
        %v1305 = vunpack.c.l.b16 %v575
        %v1306 = vunpack.c.h.b16 %v575
        %v1307 = vunpack.c.l.b16 %v576
        %v1308 = vunpack.c.h.b16 %v576
        %v1309 = vunpack.c.l.b16 %v577
        %v1310 = vunpack.c.h.b16 %v577
        %v1311 = vunpack.c.l.b16 %v578
        %v1312 = vunpack.c.h.b16 %v578
        %v1313 = vunpack.c.l.b16 %v579
        %v1314 = vunpack.c.h.b16 %v579
        %v1315 = vunpack.c.l.b16 %v580
        %v1316 = vunpack.c.h.b16 %v580
        %v1317 = vunpack.c.l.b16 %v581
        %v1318 = vunpack.c.h.b16 %v581
        %v1319 = vunpack.c.l.b16 %v582
        %v1320 = vunpack.c.h.b16 %v582
        %v1321 = vunpack.c.l.b16 %v583
        %v1322 = vunpack.c.h.b16 %v583
        %v1323 = vunpack.c.l.b16 %v584
        %v1324 = vunpack.c.h.b16 %v584
        %v1325 = vunpack.c.l.b16 %v585
        %v1326 = vunpack.c.h.b16 %v585
        %v1327 = vunpack.c.l.b16 %v586
        %v1328 = vunpack.c.h.b16 %v586
        %v1329 = vunpack.c.l.b16 %v587
        %v1330 = vunpack.c.h.b16 %v587
        %v1331 = vunpack.c.l.b16 %v588
        %v1332 = vunpack.c.h.b16 %v588
        %v1333 = vunpack.c.l.b16 %v589
        %v1334 = vunpack.c.h.b16 %v589
        %v1335 = vunpack.c.l.b16 %v590
        %v1336 = vunpack.c.h.b16 %v590
        %v1337 = vunpack.c.l.b16 %v591
        %v1338 = vunpack.c.h.b16 %v591
        %v1339 = vunpack.c.l.b16 %v592
        %v1340 = vunpack.c.h.b16 %v592
        %v1341 = vunpack.c.l.b16 %v593
        %v1342 = vunpack.c.h.b16 %v593
        %v1343 = vunpack.c.l.b16 %v594
        %v1344 = vunpack.c.h.b16 %v594
        %v1345 = vunpack.c.l.b16 %v595
        %v1346 = vunpack.c.h.b16 %v595
        %v1347 = vunpack.c.l.b16 %v596
        %v1348 = vunpack.c.h.b16 %v596
        %v1349 = vunpack.c.l.b16 %v597
        %v1350 = vunpack.c.h.b16 %v597
        %v1351 = vunpack.c.l.b16 %v598
        %v1352 = vunpack.c.h.b16 %v598
        %v1353 = vunpack.c.l.b16 %v599
        %v1354 = vunpack.c.h.b16 %v599
        %v1355 = vunpack.c.l.b16 %v600
        %v1356 = vunpack.c.h.b16 %v600
        %v1357 = vunpack.c.l.b16 %v601
        %v1358 = vunpack.c.h.b16 %v601
        %v1359 = vunpack.c.l.b16 %v602
        %v1360 = vunpack.c.h.b16 %v602
        %v1361 = vunpack.c.l.b16 %v603
        %v1362 = vunpack.c.h.b16 %v603
        %v1363 = vunpack.c.l.b16 %v604
        %v1364 = vunpack.c.h.b16 %v604
        %v1365 = vunpack.c.l.b16 %v605
        %v1366 = vunpack.c.h.b16 %v605
        %v1367 = vunpack.c.l.b16 %v606
        %v1368 = vunpack.c.h.b16 %v606
        %v1369 = vunpack.c.l.b16 %v607
        %v1370 = vunpack.c.h.b16 %v607
        %v1371 = vunpack.c.l.b16 %v608
        %v1372 = vunpack.c.h.b16 %v608
        %v1373 = vunpack.c.l.b16 %v609
        %v1374 = vunpack.c.h.b16 %v609
        %v1375 = vunpack.c.l.b16 %v610
        %v1376 = vunpack.c.h.b16 %v610
        %v1377 = vunpack.c.l.b16 %v611
        %v1378 = vunpack.c.h.b16 %v611
        %v1379 = vunpack.c.l.b16 %v612
        %v1380 = vunpack.c.h.b16 %v612
        %v1381 = vunpack.c.l.b16 %v613
        %v1382 = vunpack.c.h.b16 %v613
        %v1383 = vunpack.c.l.b16 %v614
        %v1384 = vunpack.c.h.b16 %v614
        %v1385 = vunpack.c.l.b16 %v615
        %v1386 = vunpack.c.h.b16 %v615
        %v1387 = vunpack.c.l.b16 %v616
        %v1388 = vunpack.c.h.b16 %v616
        %v1389 = vunpack.c.l.b16 %v617
        %v1390 = vunpack.c.h.b16 %v617
        %v1391 = vunpack.c.l.b16 %v618
        %v1392 = vunpack.c.h.b16 %v618
        %v1393 = vunpack.c.l.b16 %v619
        %v1394 = vunpack.c.h.b16 %v619
        %v1395 = vunpack.c.l.b16 %v620
        %v1396 = vunpack.c.h.b16 %v620
        %v1397 = vunpack.c.l.b16 %v621
        %v1398 = vunpack.c.h.b16 %v621
        %v1399 = vunpack.c.l.b16 %v622
        %v1400 = vunpack.c.h.b16 %v622
        %v1401 = vunpack.c.l.b16 %v623
        %v1402 = vunpack.c.h.b16 %v623
        %v1403 = vunpack.c.l.b16 %v624
        %v1404 = vunpack.c.h.b16 %v624
        %v1405 = vunpack.c.l.b16 %v625
        %v1406 = vunpack.c.h.b16 %v625
        %v1407 = vunpack.c.l.b16 %v626
        %v1408 = vunpack.c.h.b16 %v626
        %v1409 = vunpack.c.l.b16 %v627
        %v1410 = vunpack.c.h.b16 %v627
        %v1411 = vunpack.c.l.b16 %v628
        %v1412 = vunpack.c.h.b16 %v628
        %v1413 = vunpack.c.l.b16 %v629
        %v1414 = vunpack.c.h.b16 %v629
        %v1415 = vunpack.c.l.b16 %v630
        %v1416 = vunpack.c.h.b16 %v630
        %v1417 = vunpack.c.l.b16 %v631
        %v1418 = vunpack.c.h.b16 %v631
        %v1419 = vunpack.c.l.b16 %v632
        %v1420 = vunpack.c.h.b16 %v632
        %v1421 = vunpack.c.l.b16 %v633
        %v1422 = vunpack.c.h.b16 %v633
        %v1423 = vunpack.c.l.b16 %v634
        %v1424 = vunpack.c.h.b16 %v634
        %v1425 = vunpack.c.l.b16 %v635
        %v1426 = vunpack.c.h.b16 %v635
        %v1427 = vunpack.c.l.b16 %v636
        %v1428 = vunpack.c.h.b16 %v636
        %v1429 = vunpack.c.l.b16 %v637
        %v1430 = vunpack.c.h.b16 %v637
        %v1431 = vunpack.c.l.b16 %v638
        %v1432 = vunpack.c.h.b16 %v638
        %v1433 = vunpack.c.l.b16 %v639
        %v1434 = vunpack.c.h.b16 %v639
        %v1435 = vunpack.c.l.b16 %v640
        %v1436 = vunpack.c.h.b16 %v640
        %v1437 = vunpack.c.l.b16 %v641
        %v1438 = vunpack.c.h.b16 %v641
        %v1439 = vunpack.c.l.b16 %v642
        %v1440 = vunpack.c.h.b16 %v642
        %v1441 = vunpack.c.l.b16 %v643
        %v1442 = vunpack.c.h.b16 %v643
        %v1443 = vunpack.c.l.b16 %v644
        %v1444 = vunpack.c.h.b16 %v644
        %v1445 = vunpack.c.l.b16 %v645
        %v1446 = vunpack.c.h.b16 %v645
        %v1447 = vunpack.c.l.b16 %v646
        %v1448 = vunpack.c.h.b16 %v646
        %v1449 = vunpack.c.l.b16 %v647
        %v1450 = vunpack.c.h.b16 %v647
        %v1451 = vunpack.c.l.b16 %v648
        %v1452 = vunpack.c.h.b16 %v648
        %v1453 = vunpack.c.l.b16 %v649
        %v1454 = vunpack.c.h.b16 %v649
        %v1455 = vunpack.c.l.b16 %v650
        %v1456 = vunpack.c.h.b16 %v650
        %v1457 = vunpack.c.l.b16 %v651
        %v1458 = vunpack.c.h.b16 %v651
        %v1459 = vunpack.c.l.b16 %v652
        %v1460 = vunpack.c.h.b16 %v652
        %v1461 = vunpack.c.l.b16 %v653
        %v1462 = vunpack.c.h.b16 %v653
        %v1463 = vunpack.c.l.b16 %v654
        %v1464 = vunpack.c.h.b16 %v654
        %v1465 = vunpack.c.l.b16 %v655
        %v1466 = vunpack.c.h.b16 %v655
        %v1467 = vunpack.c.l.b16 %v656
        %v1468 = vunpack.c.h.b16 %v656
        %v1469 = vunpack.c.l.b16 %v657
        %v1470 = vunpack.c.h.b16 %v657
        %v1471 = vunpack.c.l.b16 %v658
        %v1472 = vunpack.c.h.b16 %v658
        %v1473 = vunpack.c.l.b16 %v659
        %v1474 = vunpack.c.h.b16 %v659
        %v1475 = vunpack.c.l.b16 %v660
        %v1476 = vunpack.c.h.b16 %v660
        %v1477 = vunpack.c.l.b16 %v661
        %v1478 = vunpack.c.h.b16 %v661
        %v1479 = vunpack.c.l.b16 %v662
        %v1480 = vunpack.c.h.b16 %v662
        %v1481 = vunpack.c.l.b16 %v663
        %v1482 = vunpack.c.h.b16 %v663
        %v1483 = vunpack.c.l.b16 %v664
        %v1484 = vunpack.c.h.b16 %v664
        %v1485 = vunpack.c.l.b16 %v665
        %v1486 = vunpack.c.h.b16 %v665
        %v1487 = vunpack.c.l.b16 %v666
        %v1488 = vunpack.c.h.b16 %v666
        %v1489 = vunpack.c.l.b16 %v667
        %v1490 = vunpack.c.h.b16 %v667
        %v1491 = vunpack.c.l.b16 %v668
        %v1492 = vunpack.c.h.b16 %v668
        %v1493 = vunpack.c.l.b16 %v669
        %v1494 = vunpack.c.h.b16 %v669
        %v1495 = vunpack.c.l.b16 %v670
        %v1496 = vunpack.c.h.b16 %v670
        %v1497 = vunpack.c.l.b16 %v671
        %v1498 = vunpack.c.h.b16 %v671
        %v1499 = vunpack.c.l.b16 %v672
        %v1500 = vunpack.c.h.b16 %v672
        %v1501 = vunpack.c.l.b16 %v673
        %v1502 = vunpack.c.h.b16 %v673
        %v1503 = vunpack.c.l.b16 %v674
        %v1504 = vunpack.c.h.b16 %v674
        %v1505 = vunpack.c.l.b16 %v675
        %v1506 = vunpack.c.h.b16 %v675
        %v1507 = vunpack.c.l.b16 %v676
        %v1508 = vunpack.c.h.b16 %v676
        %v1509 = vunpack.c.l.b16 %v677
        %v1510 = vunpack.c.h.b16 %v677
        %v1511 = vunpack.c.l.b16 %v678
        %v1512 = vunpack.c.h.b16 %v678
        %v1513 = vunpack.c.l.b16 %v679
        %v1514 = vunpack.c.h.b16 %v679
        %v1515 = vunpack.c.l.b16 %v680
        %v1516 = vunpack.c.h.b16 %v680
        %v1517 = vunpack.c.l.b16 %v681
        %v1518 = vunpack.c.h.b16 %v681
        %v1519 = vunpack.c.l.b16 %v682
        %v1520 = vunpack.c.h.b16 %v682
        %v1521 = vunpack.c.l.b16 %v683
        %v1522 = vunpack.c.h.b16 %v683
        %v1523 = vunpack.c.l.b16 %v684
        %v1524 = vunpack.c.h.b16 %v684
        %v1525 = vunpack.c.l.b16 %v685
        %v1526 = vunpack.c.h.b16 %v685
        %v1527 = vunpack.c.l.b16 %v686
        %v1528 = vunpack.c.h.b16 %v686
        %v1529 = vunpack.c.l.b16 %v687
        %v1530 = vunpack.c.h.b16 %v687
        %v1531 = vunpack.c.l.b16 %v688
        %v1532 = vunpack.c.h.b16 %v688
        %v1533 = vunpack.c.l.b16 %v689
        %v1534 = vunpack.c.h.b16 %v689
        %v1535 = vunpack.c.l.b16 %v690
        %v1536 = vunpack.c.h.b16 %v690
        %v1537 = vunpack.c.l.b16 %v691
        %v1538 = vunpack.c.h.b16 %v691
        %v1539 = vunpack.c.l.b16 %v692
        %v1540 = vunpack.c.h.b16 %v692
        %v1541 = vunpack.c.l.b16 %v693
        %v1542 = vunpack.c.h.b16 %v693
        %v1543 = vunpack.c.l.b16 %v694
        %v1544 = vunpack.c.h.b16 %v694
        %v1545 = vunpack.c.l.b16 %v695
        %v1546 = vunpack.c.h.b16 %v695
        %v1547 = vunpack.c.l.b16 %v696
        %v1548 = vunpack.c.h.b16 %v696
        %v1549 = vunpack.c.l.b16 %v697
        %v1550 = vunpack.c.h.b16 %v697
        %v1551 = vunpack.c.l.b16 %v698
        %v1552 = vunpack.c.h.b16 %v698
        %v1553 = vunpack.c.l.b16 %v699
        %v1554 = vunpack.c.h.b16 %v699
        %v1555 = vunpack.c.l.b16 %v700
        %v1556 = vunpack.c.h.b16 %v700
        %v1557 = vunpack.c.l.b16 %v701
        %v1558 = vunpack.c.h.b16 %v701
        %v1559 = vunpack.c.l.b16 %v702
        %v1560 = vunpack.c.h.b16 %v702
        %v1561 = vunpack.c.l.b16 %v703
        %v1562 = vunpack.c.h.b16 %v703
        %v1563 = vunpack.c.l.b16 %v704
        %v1564 = vunpack.c.h.b16 %v704
        %v1565 = vunpack.c.l.b16 %v705
        %v1566 = vunpack.c.h.b16 %v705
        %v1567 = vunpack.c.l.b16 %v706
        %v1568 = vunpack.c.h.b16 %v706
        %v1569 = vunpack.c.l.b16 %v707
        %v1570 = vunpack.c.h.b16 %v707
        %v1571 = vunpack.c.l.b16 %v708
        %v1572 = vunpack.c.h.b16 %v708
        %v1573 = vunpack.c.l.b16 %v709
        %v1574 = vunpack.c.h.b16 %v709
        %v1575 = vunpack.c.l.b16 %v710
        %v1576 = vunpack.c.h.b16 %v710
        %v1577 = vunpack.c.l.b16 %v711
        %v1578 = vunpack.c.h.b16 %v711
        %v1579 = vunpack.c.l.b16 %v712
        %v1580 = vunpack.c.h.b16 %v712
        %v1581 = vunpack.c.l.b16 %v713
        %v1582 = vunpack.c.h.b16 %v713
        %v1583 = vunpack.c.l.b16 %v714
        %v1584 = vunpack.c.h.b16 %v714
        %v1585 = vunpack.c.l.b16 %v715
        %v1586 = vunpack.c.h.b16 %v715
        %v1587 = vunpack.c.l.b16 %v716
        %v1588 = vunpack.c.h.b16 %v716
        %v1589 = vunpack.c.l.b16 %v717
        %v1590 = vunpack.c.h.b16 %v717
        %v1591 = vunpack.c.l.b16 %v718
        %v1592 = vunpack.c.h.b16 %v718
        %v1593 = vunpack.c.l.b16 %v719
        %v1594 = vunpack.c.h.b16 %v719
        %v1595 = vunpack.c.l.b16 %v720
        %v1596 = vunpack.c.h.b16 %v720
        %v1597 = vunpack.c.l.b16 %v721
        %v1598 = vunpack.c.h.b16 %v721
        %v1599 = vunpack.c.l.b16 %v722
        %v1600 = vunpack.c.h.b16 %v722
        %v1601 = vunpack.c.l.b16 %v723
        %v1602 = vunpack.c.h.b16 %v723
        %v1603 = vunpack.c.l.b16 %v724
        %v1604 = vunpack.c.h.b16 %v724
        %v1605 = vpack.c.b16 %v1225, %v1221
        %v1606 = vpack.c.b16 %v1226, %v1222
        %v1607 = vpack.c.b16 %v1227, %v1223
        %v1608 = vpack.c.b16 %v1228, %v1224
        %v1609 = vpack.c.b16 %v1233, %v1229
        %v1610 = vpack.c.b16 %v1234, %v1230
        %v1611 = vpack.c.b16 %v1235, %v1231
        %v1612 = vpack.c.b16 %v1236, %v1232
        %v1613 = vpack.c.b16 %v1241, %v1237
        %v1614 = vpack.c.b16 %v1242, %v1238
        %v1615 = vpack.c.b16 %v1243, %v1239
        %v1616 = vpack.c.b16 %v1244, %v1240
        %v1617 = vpack.c.b16 %v1249, %v1245
        %v1618 = vpack.c.b16 %v1250, %v1246
        %v1619 = vpack.c.b16 %v1251, %v1247
        %v1620 = vpack.c.b16 %v1252, %v1248
        %v1621 = vpack.c.b16 %v1257, %v1253
        %v1622 = vpack.c.b16 %v1258, %v1254
        %v1623 = vpack.c.b16 %v1259, %v1255
        %v1624 = vpack.c.b16 %v1260, %v1256
        %v1625 = vpack.c.b16 %v1265, %v1261
        %v1626 = vpack.c.b16 %v1266, %v1262
        %v1627 = vpack.c.b16 %v1267, %v1263
        %v1628 = vpack.c.b16 %v1268, %v1264
        %v1629 = vpack.c.b16 %v1273, %v1269
        %v1630 = vpack.c.b16 %v1274, %v1270
        %v1631 = vpack.c.b16 %v1275, %v1271
        %v1632 = vpack.c.b16 %v1276, %v1272
        %v1633 = vpack.c.b16 %v1281, %v1277
        %v1634 = vpack.c.b16 %v1282, %v1278
        %v1635 = vpack.c.b16 %v1283, %v1279
        %v1636 = vpack.c.b16 %v1284, %v1280
        %v1637 = vpack.c.b16 %v1289, %v1285
        %v1638 = vpack.c.b16 %v1290, %v1286
        %v1639 = vpack.c.b16 %v1291, %v1287
        %v1640 = vpack.c.b16 %v1292, %v1288
        %v1641 = vpack.c.b16 %v1297, %v1293
        %v1642 = vpack.c.b16 %v1298, %v1294
        %v1643 = vpack.c.b16 %v1299, %v1295
        %v1644 = vpack.c.b16 %v1300, %v1296
        %v1645 = vpack.c.b16 %v1305, %v1301
        %v1646 = vpack.c.b16 %v1306, %v1302
        %v1647 = vpack.c.b16 %v1307, %v1303
        %v1648 = vpack.c.b16 %v1308, %v1304
        %v1649 = vpack.c.b16 %v1313, %v1309
        %v1650 = vpack.c.b16 %v1314, %v1310
        %v1651 = vpack.c.b16 %v1315, %v1311
        %v1652 = vpack.c.b16 %v1316, %v1312
        %v1653 = vpack.c.b16 %v1321, %v1317
        %v1654 = vpack.c.b16 %v1322, %v1318
        %v1655 = vpack.c.b16 %v1323, %v1319
        %v1656 = vpack.c.b16 %v1324, %v1320
        %v1657 = vpack.c.b16 %v1329, %v1325
        %v1658 = vpack.c.b16 %v1330, %v1326
        %v1659 = vpack.c.b16 %v1331, %v1327
        %v1660 = vpack.c.b16 %v1332, %v1328
        %v1661 = vpack.c.b16 %v1337, %v1333
        %v1662 = vpack.c.b16 %v1338, %v1334
        %v1663 = vpack.c.b16 %v1339, %v1335
        %v1664 = vpack.c.b16 %v1340, %v1336
        %v1665 = vpack.c.b16 %v1345, %v1341
        %v1666 = vpack.c.b16 %v1346, %v1342
        %v1667 = vpack.c.b16 %v1347, %v1343
        %v1668 = vpack.c.b16 %v1348, %v1344
        %v1669 = vpack.c.b16 %v1353, %v1349
        %v1670 = vpack.c.b16 %v1354, %v1350
        %v1671 = vpack.c.b16 %v1355, %v1351
        %v1672 = vpack.c.b16 %v1356, %v1352
        %v1673 = vpack.c.b16 %v1361, %v1357
        %v1674 = vpack.c.b16 %v1362, %v1358
        %v1675 = vpack.c.b16 %v1363, %v1359
        %v1676 = vpack.c.b16 %v1364, %v1360
        %v1677 = vpack.c.b16 %v1369, %v1365
        %v1678 = vpack.c.b16 %v1370, %v1366
        %v1679 = vpack.c.b16 %v1371, %v1367
        %v1680 = vpack.c.b16 %v1372, %v1368
        %v1681 = vpack.c.b16 %v1377, %v1373
        %v1682 = vpack.c.b16 %v1378, %v1374
        %v1683 = vpack.c.b16 %v1379, %v1375
        %v1684 = vpack.c.b16 %v1380, %v1376
        %v1685 = vpack.c.b16 %v1385, %v1381
        %v1686 = vpack.c.b16 %v1386, %v1382
        %v1687 = vpack.c.b16 %v1387, %v1383
        %v1688 = vpack.c.b16 %v1388, %v1384
        %v1689 = vpack.c.b16 %v1393, %v1389
        %v1690 = vpack.c.b16 %v1394, %v1390
        %v1691 = vpack.c.b16 %v1395, %v1391
        %v1692 = vpack.c.b16 %v1396, %v1392
        %v1693 = vpack.c.b16 %v1401, %v1397
        %v1694 = vpack.c.b16 %v1402, %v1398
        %v1695 = vpack.c.b16 %v1403, %v1399
        %v1696 = vpack.c.b16 %v1404, %v1400
        %v1697 = vpack.c.b16 %v1409, %v1405
        %v1698 = vpack.c.b16 %v1410, %v1406
        %v1699 = vpack.c.b16 %v1411, %v1407
        %v1700 = vpack.c.b16 %v1412, %v1408
        %v1701 = vpack.c.b16 %v1417, %v1413
        %v1702 = vpack.c.b16 %v1418, %v1414
        %v1703 = vpack.c.b16 %v1419, %v1415
        %v1704 = vpack.c.b16 %v1420, %v1416
        %v1705 = vpack.c.b16 %v1425, %v1421
        %v1706 = vpack.c.b16 %v1426, %v1422
        %v1707 = vpack.c.b16 %v1427, %v1423
        %v1708 = vpack.c.b16 %v1428, %v1424
        %v1709 = vpack.c.b16 %v1433, %v1429
        %v1710 = vpack.c.b16 %v1434, %v1430
        %v1711 = vpack.c.b16 %v1435, %v1431
        %v1712 = vpack.c.b16 %v1436, %v1432
        %v1713 = vpack.c.b16 %v1441, %v1437
        %v1714 = vpack.c.b16 %v1442, %v1438
        %v1715 = vpack.c.b16 %v1443, %v1439
        %v1716 = vpack.c.b16 %v1444, %v1440
        %v1717 = vpack.c.b16 %v1449, %v1445
        %v1718 = vpack.c.b16 %v1450, %v1446
        %v1719 = vpack.c.b16 %v1451, %v1447
        %v1720 = vpack.c.b16 %v1452, %v1448
        %v1721 = vpack.c.b16 %v1457, %v1453
        %v1722 = vpack.c.b16 %v1458, %v1454
        %v1723 = vpack.c.b16 %v1459, %v1455
        %v1724 = vpack.c.b16 %v1460, %v1456
        %v1725 = vpack.c.b16 %v1465, %v1461
        %v1726 = vpack.c.b16 %v1466, %v1462
        %v1727 = vpack.c.b16 %v1467, %v1463
        %v1728 = vpack.c.b16 %v1468, %v1464
        %v1729 = vpack.c.b16 %v1473, %v1469
        %v1730 = vpack.c.b16 %v1474, %v1470
        %v1731 = vpack.c.b16 %v1475, %v1471
        %v1732 = vpack.c.b16 %v1476, %v1472
        %v1733 = vpack.c.b16 %v1481, %v1477
        %v1734 = vpack.c.b16 %v1482, %v1478
        %v1735 = vpack.c.b16 %v1483, %v1479
        %v1736 = vpack.c.b16 %v1484, %v1480
        %v1737 = vpack.c.b16 %v1489, %v1485
        %v1738 = vpack.c.b16 %v1490, %v1486
        %v1739 = vpack.c.b16 %v1491, %v1487
        %v1740 = vpack.c.b16 %v1492, %v1488
        %v1741 = vpack.c.b16 %v1497, %v1493
        %v1742 = vpack.c.b16 %v1498, %v1494
        %v1743 = vpack.c.b16 %v1499, %v1495
        %v1744 = vpack.c.b16 %v1500, %v1496
        %v1745 = vpack.c.b16 %v1505, %v1501
        %v1746 = vpack.c.b16 %v1506, %v1502
        %v1747 = vpack.c.b16 %v1507, %v1503
        %v1748 = vpack.c.b16 %v1508, %v1504
        %v1749 = vpack.c.b16 %v1513, %v1509
        %v1750 = vpack.c.b16 %v1514, %v1510
        %v1751 = vpack.c.b16 %v1515, %v1511
        %v1752 = vpack.c.b16 %v1516, %v1512
        %v1753 = vpack.c.b16 %v1521, %v1517
        %v1754 = vpack.c.b16 %v1522, %v1518
        %v1755 = vpack.c.b16 %v1523, %v1519
        %v1756 = vpack.c.b16 %v1524, %v1520
        %v1757 = vpack.c.b16 %v1529, %v1525
        %v1758 = vpack.c.b16 %v1530, %v1526
        %v1759 = vpack.c.b16 %v1531, %v1527
        %v1760 = vpack.c.b16 %v1532, %v1528
        %v1761 = vpack.c.b16 %v1537, %v1533
        %v1762 = vpack.c.b16 %v1538, %v1534
        %v1763 = vpack.c.b16 %v1539, %v1535
        %v1764 = vpack.c.b16 %v1540, %v1536
        %v1765 = vpack.c.b16 %v1545, %v1541
        %v1766 = vpack.c.b16 %v1546, %v1542
        %v1767 = vpack.c.b16 %v1547, %v1543
        %v1768 = vpack.c.b16 %v1548, %v1544
        %v1769 = vpack.c.b16 %v1553, %v1549
        %v1770 = vpack.c.b16 %v1554, %v1550
        %v1771 = vpack.c.b16 %v1555, %v1551
        %v1772 = vpack.c.b16 %v1556, %v1552
        %v1773 = vpack.c.b16 %v1561, %v1557
        %v1774 = vpack.c.b16 %v1562, %v1558
        %v1775 = vpack.c.b16 %v1563, %v1559
        %v1776 = vpack.c.b16 %v1564, %v1560
        %v1777 = vpack.c.b16 %v1569, %v1565
        %v1778 = vpack.c.b16 %v1570, %v1566
        %v1779 = vpack.c.b16 %v1571, %v1567
        %v1780 = vpack.c.b16 %v1572, %v1568
        %v1781 = vpack.c.b16 %v1577, %v1573
        %v1782 = vpack.c.b16 %v1578, %v1574
        %v1783 = vpack.c.b16 %v1579, %v1575
        %v1784 = vpack.c.b16 %v1580, %v1576
        %v1785 = vpack.c.b16 %v1585, %v1581
        %v1786 = vpack.c.b16 %v1586, %v1582
        %v1787 = vpack.c.b16 %v1587, %v1583
        %v1788 = vpack.c.b16 %v1588, %v1584
        %v1789 = vpack.c.b16 %v1593, %v1589
        %v1790 = vpack.c.b16 %v1594, %v1590
        %v1791 = vpack.c.b16 %v1595, %v1591
        %v1792 = vpack.c.b16 %v1596, %v1592
        %v1793 = vpack.c.b16 %v1601, %v1597
        %v1794 = vpack.c.b16 %v1602, %v1598
        %v1795 = vpack.c.b16 %v1603, %v1599
        %v1796 = vpack.c.b16 %v1604, %v1600
        %1989 = vmatpush.bf16.msra.mxu0 %v1633
        %1990 = vmatpush.bf16.msra.mxu0 %v1629
        %1991 = vmatpush.bf16.msra.mxu0 %v1625
        %1992 = vmatpush.bf16.msra.mxu0 %v1621
        %1993 = vmatpush.bf16.msra.mxu0 %v1617
        %1994 = vmatpush.bf16.msra.mxu0 %v1613
        %1995 = vmatpush.bf16.msra.mxu0 %v1609
        %1996 = vmatpush.bf16.msra.mxu0 %v1605
        %1997 = vmatmul.bf16.gmra.mxu0 %v933
        %v1998 = vpop.f32.mrf.mxu0
        %v1999 = vadd.f32 0.0, %v1998
        %v2000 = vpop.f32.mrf.mxu0
        %v2001 = vadd.f32 0.0, %v2000
        %2002 = vmatmul.bf16.gmra.mxu0 %v939
        %v2003 = vpop.f32.mrf.mxu0
        %v2004 = vadd.f32 0.0, %v2003
        %v2005 = vpop.f32.mrf.mxu0
        %v2006 = vadd.f32 0.0, %v2005
        %2007 = vmatmul.bf16.gmra.mxu0 %v945
        %v2008 = vpop.f32.mrf.mxu0
        %v2009 = vadd.f32 0.0, %v2008
        %v2010 = vpop.f32.mrf.mxu0
        %v2011 = vadd.f32 0.0, %v2010
        %2012 = vmatmul.bf16.gmra.mxu0 %v951
        %v2013 = vpop.f32.mrf.mxu0
        %v2014 = vadd.f32 0.0, %v2013
        %v2015 = vpop.f32.mrf.mxu0
        %v2016 = vadd.f32 0.0, %v2015
        %2017 = vmatmul.bf16.gmra.mxu0 %v957
        %v2018 = vpop.f32.mrf.mxu0
        %v2019 = vadd.f32 0.0, %v2018
        %v2020 = vpop.f32.mrf.mxu0
        %v2021 = vadd.f32 0.0, %v2020
        %2022 = vmatmul.bf16.gmra.mxu0 %v963
        %v2023 = vpop.f32.mrf.mxu0
        %v2024 = vadd.f32 0.0, %v2023
        %v2025 = vpop.f32.mrf.mxu0
        %v2026 = vadd.f32 0.0, %v2025
        %2027 = vmatmul.bf16.gmra.mxu0 %v969
        %v2028 = vpop.f32.mrf.mxu0
        %v2029 = vadd.f32 0.0, %v2028
        %v2030 = vpop.f32.mrf.mxu0
        %v2031 = vadd.f32 0.0, %v2030
        %2032 = vmatmul.bf16.gmra.mxu0 %v975
        %v2033 = vpop.f32.mrf.mxu0
        %v2034 = vadd.f32 0.0, %v2033
        %v2035 = vpop.f32.mrf.mxu0
        %v2036 = vadd.f32 0.0, %v2035
        %2037 = vdwg.mxu0
        %2038 = vmatpush.bf16.msra.mxu0 %v1665
        %2039 = vmatpush.bf16.msra.mxu0 %v1661
        %2040 = vmatpush.bf16.msra.mxu0 %v1657
        %2041 = vmatpush.bf16.msra.mxu0 %v1653
        %2042 = vmatpush.bf16.msra.mxu0 %v1649
        %2043 = vmatpush.bf16.msra.mxu0 %v1645
        %2044 = vmatpush.bf16.msra.mxu0 %v1641
        %2045 = vmatpush.bf16.msra.mxu0 %v1637
        %2046 = vmatmul.bf16.gmra.mxu0 %v934
        %v2047 = vpop.f32.mrf.mxu0
        %v2048 = vadd.f32 %v1999, %v2047
        %v2049 = vpop.f32.mrf.mxu0
        %v2050 = vadd.f32 %v2001, %v2049
        %2051 = vmatmul.bf16.gmra.mxu0 %v940
        %v2052 = vpop.f32.mrf.mxu0
        %v2053 = vadd.f32 %v2004, %v2052
        %v2054 = vpop.f32.mrf.mxu0
        %v2055 = vadd.f32 %v2006, %v2054
        %2056 = vmatmul.bf16.gmra.mxu0 %v946
        %v2057 = vpop.f32.mrf.mxu0
        %v2058 = vadd.f32 %v2009, %v2057
        %v2059 = vpop.f32.mrf.mxu0
        %v2060 = vadd.f32 %v2011, %v2059
        %2061 = vmatmul.bf16.gmra.mxu0 %v952
        %v2062 = vpop.f32.mrf.mxu0
        %v2063 = vadd.f32 %v2014, %v2062
        %v2064 = vpop.f32.mrf.mxu0
        %v2065 = vadd.f32 %v2016, %v2064
        %2066 = vmatmul.bf16.gmra.mxu0 %v958
        %v2067 = vpop.f32.mrf.mxu0
        %v2068 = vadd.f32 %v2019, %v2067
        %v2069 = vpop.f32.mrf.mxu0
        %v2070 = vadd.f32 %v2021, %v2069
        %2071 = vmatmul.bf16.gmra.mxu0 %v964
        %v2072 = vpop.f32.mrf.mxu0
        %v2073 = vadd.f32 %v2024, %v2072
        %v2074 = vpop.f32.mrf.mxu0
        %v2075 = vadd.f32 %v2026, %v2074
        %2076 = vmatmul.bf16.gmra.mxu0 %v970
        %v2077 = vpop.f32.mrf.mxu0
        %v2078 = vadd.f32 %v2029, %v2077
        %v2079 = vpop.f32.mrf.mxu0
        %v2080 = vadd.f32 %v2031, %v2079
        %2081 = vmatmul.bf16.gmra.mxu0 %v976
        %v2082 = vpop.f32.mrf.mxu0
        %v2083 = vadd.f32 %v2034, %v2082
        %v2084 = vpop.f32.mrf.mxu0
        %v2085 = vadd.f32 %v2036, %v2084
        %2086 = vdwg.mxu0
        %2087 = vmatpush.bf16.msra.mxu0 %v1697
        %2088 = vmatpush.bf16.msra.mxu0 %v1693
        %2089 = vmatpush.bf16.msra.mxu0 %v1689
        %2090 = vmatpush.bf16.msra.mxu0 %v1685
        %2091 = vmatpush.bf16.msra.mxu0 %v1681
        %2092 = vmatpush.bf16.msra.mxu0 %v1677
        %2093 = vmatpush.bf16.msra.mxu0 %v1673
        %2094 = vmatpush.bf16.msra.mxu0 %v1669
        %2095 = vmatmul.bf16.gmra.mxu0 %v935
        %v2096 = vpop.f32.mrf.mxu0
        %v2097 = vadd.f32 %v2048, %v2096
        %v2098 = vpop.f32.mrf.mxu0
        %v2099 = vadd.f32 %v2050, %v2098
        %2100 = vmatmul.bf16.gmra.mxu0 %v941
        %v2101 = vpop.f32.mrf.mxu0
        %v2102 = vadd.f32 %v2053, %v2101
        %v2103 = vpop.f32.mrf.mxu0
        %v2104 = vadd.f32 %v2055, %v2103
        %2105 = vmatmul.bf16.gmra.mxu0 %v947
        %v2106 = vpop.f32.mrf.mxu0
        %v2107 = vadd.f32 %v2058, %v2106
        %v2108 = vpop.f32.mrf.mxu0
        %v2109 = vadd.f32 %v2060, %v2108
        %2110 = vmatmul.bf16.gmra.mxu0 %v953
        %v2111 = vpop.f32.mrf.mxu0
        %v2112 = vadd.f32 %v2063, %v2111
        %v2113 = vpop.f32.mrf.mxu0
        %v2114 = vadd.f32 %v2065, %v2113
        %2115 = vmatmul.bf16.gmra.mxu0 %v959
        %v2116 = vpop.f32.mrf.mxu0
        %v2117 = vadd.f32 %v2068, %v2116
        %v2118 = vpop.f32.mrf.mxu0
        %v2119 = vadd.f32 %v2070, %v2118
        %2120 = vmatmul.bf16.gmra.mxu0 %v965
        %v2121 = vpop.f32.mrf.mxu0
        %v2122 = vadd.f32 %v2073, %v2121
        %v2123 = vpop.f32.mrf.mxu0
        %v2124 = vadd.f32 %v2075, %v2123
        %2125 = vmatmul.bf16.gmra.mxu0 %v971
        %v2126 = vpop.f32.mrf.mxu0
        %v2127 = vadd.f32 %v2078, %v2126
        %v2128 = vpop.f32.mrf.mxu0
        %v2129 = vadd.f32 %v2080, %v2128
        %2130 = vmatmul.bf16.gmra.mxu0 %v977
        %v2131 = vpop.f32.mrf.mxu0
        %v2132 = vadd.f32 %v2083, %v2131
        %v2133 = vpop.f32.mrf.mxu0
        %v2134 = vadd.f32 %v2085, %v2133
        %2135 = vdwg.mxu0
        %2136 = vmatpush.bf16.msra.mxu0 %v1729
        %2137 = vmatpush.bf16.msra.mxu0 %v1725
        %2138 = vmatpush.bf16.msra.mxu0 %v1721
        %2139 = vmatpush.bf16.msra.mxu0 %v1717
        %2140 = vmatpush.bf16.msra.mxu0 %v1713
        %2141 = vmatpush.bf16.msra.mxu0 %v1709
        %2142 = vmatpush.bf16.msra.mxu0 %v1705
        %2143 = vmatpush.bf16.msra.mxu0 %v1701
        %2144 = vmatmul.bf16.gmra.mxu0 %v936
        %v2145 = vpop.f32.mrf.mxu0
        %v2146 = vadd.f32 %v2097, %v2145
        %v2147 = vpop.f32.mrf.mxu0
        %v2148 = vadd.f32 %v2099, %v2147
        %2149 = vmatmul.bf16.gmra.mxu0 %v942
        %v2150 = vpop.f32.mrf.mxu0
        %v2151 = vadd.f32 %v2102, %v2150
        %v2152 = vpop.f32.mrf.mxu0
        %v2153 = vadd.f32 %v2104, %v2152
        %2154 = vmatmul.bf16.gmra.mxu0 %v948
        %v2155 = vpop.f32.mrf.mxu0
        %v2156 = vadd.f32 %v2107, %v2155
        %v2157 = vpop.f32.mrf.mxu0
        %v2158 = vadd.f32 %v2109, %v2157
        %2159 = vmatmul.bf16.gmra.mxu0 %v954
        %v2160 = vpop.f32.mrf.mxu0
        %v2161 = vadd.f32 %v2112, %v2160
        %v2162 = vpop.f32.mrf.mxu0
        %v2163 = vadd.f32 %v2114, %v2162
        %2164 = vmatmul.bf16.gmra.mxu0 %v960
        %v2165 = vpop.f32.mrf.mxu0
        %v2166 = vadd.f32 %v2117, %v2165
        %v2167 = vpop.f32.mrf.mxu0
        %v2168 = vadd.f32 %v2119, %v2167
        %2169 = vmatmul.bf16.gmra.mxu0 %v966
        %v2170 = vpop.f32.mrf.mxu0
        %v2171 = vadd.f32 %v2122, %v2170
        %v2172 = vpop.f32.mrf.mxu0
        %v2173 = vadd.f32 %v2124, %v2172
        %2174 = vmatmul.bf16.gmra.mxu0 %v972
        %v2175 = vpop.f32.mrf.mxu0
        %v2176 = vadd.f32 %v2127, %v2175
        %v2177 = vpop.f32.mrf.mxu0
        %v2178 = vadd.f32 %v2129, %v2177
        %2179 = vmatmul.bf16.gmra.mxu0 %v978
        %v2180 = vpop.f32.mrf.mxu0
        %v2181 = vadd.f32 %v2132, %v2180
        %v2182 = vpop.f32.mrf.mxu0
        %v2183 = vadd.f32 %v2134, %v2182
        %2184 = vdwg.mxu0
        %2185 = vmatpush.bf16.msra.mxu0 %v1761
        %2186 = vmatpush.bf16.msra.mxu0 %v1757
        %2187 = vmatpush.bf16.msra.mxu0 %v1753
        %2188 = vmatpush.bf16.msra.mxu0 %v1749
        %2189 = vmatpush.bf16.msra.mxu0 %v1745
        %2190 = vmatpush.bf16.msra.mxu0 %v1741
        %2191 = vmatpush.bf16.msra.mxu0 %v1737
        %2192 = vmatpush.bf16.msra.mxu0 %v1733
        %2193 = vmatmul.bf16.gmra.mxu0 %v937
        %v2194 = vpop.f32.mrf.mxu0
        %v2195 = vadd.f32 %v2146, %v2194
        %v2196 = vpop.f32.mrf.mxu0
        %v2197 = vadd.f32 %v2148, %v2196
        %2198 = vmatmul.bf16.gmra.mxu0 %v943
        %v2199 = vpop.f32.mrf.mxu0
        %v2200 = vadd.f32 %v2151, %v2199
        %v2201 = vpop.f32.mrf.mxu0
        %v2202 = vadd.f32 %v2153, %v2201
        %2203 = vmatmul.bf16.gmra.mxu0 %v949
        %v2204 = vpop.f32.mrf.mxu0
        %v2205 = vadd.f32 %v2156, %v2204
        %v2206 = vpop.f32.mrf.mxu0
        %v2207 = vadd.f32 %v2158, %v2206
        %2208 = vmatmul.bf16.gmra.mxu0 %v955
        %v2209 = vpop.f32.mrf.mxu0
        %v2210 = vadd.f32 %v2161, %v2209
        %v2211 = vpop.f32.mrf.mxu0
        %v2212 = vadd.f32 %v2163, %v2211
        %2213 = vmatmul.bf16.gmra.mxu0 %v961
        %v2214 = vpop.f32.mrf.mxu0
        %v2215 = vadd.f32 %v2166, %v2214
        %v2216 = vpop.f32.mrf.mxu0
        %v2217 = vadd.f32 %v2168, %v2216
        %2218 = vmatmul.bf16.gmra.mxu0 %v967
        %v2219 = vpop.f32.mrf.mxu0
        %v2220 = vadd.f32 %v2171, %v2219
        %v2221 = vpop.f32.mrf.mxu0
        %v2222 = vadd.f32 %v2173, %v2221
        %2223 = vmatmul.bf16.gmra.mxu0 %v973
        %v2224 = vpop.f32.mrf.mxu0
        %v2225 = vadd.f32 %v2176, %v2224
        %v2226 = vpop.f32.mrf.mxu0
        %v2227 = vadd.f32 %v2178, %v2226
        %2228 = vmatmul.bf16.gmra.mxu0 %v979
        %v2229 = vpop.f32.mrf.mxu0
        %v2230 = vadd.f32 %v2181, %v2229
        %v2231 = vpop.f32.mrf.mxu0
        %v2232 = vadd.f32 %v2183, %v2231
        %2233 = vdwg.mxu0
        %2234 = vmatpush.bf16.msra.mxu0 %v1793
        %2235 = vmatpush.bf16.msra.mxu0 %v1789
        %2236 = vmatpush.bf16.msra.mxu0 %v1785
        %2237 = vmatpush.bf16.msra.mxu0 %v1781
        %2238 = vmatpush.bf16.msra.mxu0 %v1777
        %2239 = vmatpush.bf16.msra.mxu0 %v1773
        %2240 = vmatpush.bf16.msra.mxu0 %v1769
        %2241 = vmatpush.bf16.msra.mxu0 %v1765
        %2242 = vmatmul.bf16.gmra.mxu0 %v938
        %v2243 = vpop.f32.mrf.mxu0
        %v2244 = vadd.f32 %v2195, %v2243
        %v2245 = vpop.f32.mrf.mxu0
        %v2246 = vadd.f32 %v2197, %v2245
        %2247 = vmatmul.bf16.gmra.mxu0 %v944
        %v2248 = vpop.f32.mrf.mxu0
        %v2249 = vadd.f32 %v2200, %v2248
        %v2250 = vpop.f32.mrf.mxu0
        %v2251 = vadd.f32 %v2202, %v2250
        %2252 = vmatmul.bf16.gmra.mxu0 %v950
        %v2253 = vpop.f32.mrf.mxu0
        %v2254 = vadd.f32 %v2205, %v2253
        %v2255 = vpop.f32.mrf.mxu0
        %v2256 = vadd.f32 %v2207, %v2255
        %2257 = vmatmul.bf16.gmra.mxu0 %v956
        %v2258 = vpop.f32.mrf.mxu0
        %v2259 = vadd.f32 %v2210, %v2258
        %v2260 = vpop.f32.mrf.mxu0
        %v2261 = vadd.f32 %v2212, %v2260
        %2262 = vmatmul.bf16.gmra.mxu0 %v962
        %v2263 = vpop.f32.mrf.mxu0
        %v2264 = vadd.f32 %v2215, %v2263
        %v2265 = vpop.f32.mrf.mxu0
        %v2266 = vadd.f32 %v2217, %v2265
        %2267 = vmatmul.bf16.gmra.mxu0 %v968
        %v2268 = vpop.f32.mrf.mxu0
        %v2269 = vadd.f32 %v2220, %v2268
        %v2270 = vpop.f32.mrf.mxu0
        %v2271 = vadd.f32 %v2222, %v2270
        %2272 = vmatmul.bf16.gmra.mxu0 %v974
        %v2273 = vpop.f32.mrf.mxu0
        %v2274 = vadd.f32 %v2225, %v2273
        %v2275 = vpop.f32.mrf.mxu0
        %v2276 = vadd.f32 %v2227, %v2275
        %2277 = vmatmul.bf16.gmra.mxu0 %v980
        %v2278 = vpop.f32.mrf.mxu0
        %v2279 = vadd.f32 %v2230, %v2278
        %v2280 = vpop.f32.mrf.mxu0
        %v2281 = vadd.f32 %v2232, %v2280
        %2282 = vdwg.mxu0
        %2283 = vmatpush.bf16.msra.mxu0 %v1634
        %2284 = vmatpush.bf16.msra.mxu0 %v1630
        %2285 = vmatpush.bf16.msra.mxu0 %v1626
        %2286 = vmatpush.bf16.msra.mxu0 %v1622
        %2287 = vmatpush.bf16.msra.mxu0 %v1618
        %2288 = vmatpush.bf16.msra.mxu0 %v1614
        %2289 = vmatpush.bf16.msra.mxu0 %v1610
        %2290 = vmatpush.bf16.msra.mxu0 %v1606
        %2291 = vmatmul.bf16.gmra.mxu0 %v933
        %v2292 = vpop.f32.mrf.mxu0
        %v2293 = vadd.f32 0.0, %v2292
        %v2294 = vpop.f32.mrf.mxu0
        %v2295 = vadd.f32 0.0, %v2294
        %2296 = vmatmul.bf16.gmra.mxu0 %v939
        %v2297 = vpop.f32.mrf.mxu0
        %v2298 = vadd.f32 0.0, %v2297
        %v2299 = vpop.f32.mrf.mxu0
        %v2300 = vadd.f32 0.0, %v2299
        %2301 = vmatmul.bf16.gmra.mxu0 %v945
        %v2302 = vpop.f32.mrf.mxu0
        %v2303 = vadd.f32 0.0, %v2302
        %v2304 = vpop.f32.mrf.mxu0
        %v2305 = vadd.f32 0.0, %v2304
        %2306 = vmatmul.bf16.gmra.mxu0 %v951
        %v2307 = vpop.f32.mrf.mxu0
        %v2308 = vadd.f32 0.0, %v2307
        %v2309 = vpop.f32.mrf.mxu0
        %v2310 = vadd.f32 0.0, %v2309
        %2311 = vmatmul.bf16.gmra.mxu0 %v957
        %v2312 = vpop.f32.mrf.mxu0
        %v2313 = vadd.f32 0.0, %v2312
        %v2314 = vpop.f32.mrf.mxu0
        %v2315 = vadd.f32 0.0, %v2314
        %2316 = vmatmul.bf16.gmra.mxu0 %v963
        %v2317 = vpop.f32.mrf.mxu0
        %v2318 = vadd.f32 0.0, %v2317
        %v2319 = vpop.f32.mrf.mxu0
        %v2320 = vadd.f32 0.0, %v2319
        %2321 = vmatmul.bf16.gmra.mxu0 %v969
        %v2322 = vpop.f32.mrf.mxu0
        %v2323 = vadd.f32 0.0, %v2322
        %v2324 = vpop.f32.mrf.mxu0
        %v2325 = vadd.f32 0.0, %v2324
        %2326 = vmatmul.bf16.gmra.mxu0 %v975
        %v2327 = vpop.f32.mrf.mxu0
        %v2328 = vadd.f32 0.0, %v2327
        %v2329 = vpop.f32.mrf.mxu0
        %v2330 = vadd.f32 0.0, %v2329
        %2331 = vdwg.mxu0
        %2332 = vmatpush.bf16.msra.mxu0 %v1666
        %2333 = vmatpush.bf16.msra.mxu0 %v1662
        %2334 = vmatpush.bf16.msra.mxu0 %v1658
        %2335 = vmatpush.bf16.msra.mxu0 %v1654
        %2336 = vmatpush.bf16.msra.mxu0 %v1650
        %2337 = vmatpush.bf16.msra.mxu0 %v1646
        %2338 = vmatpush.bf16.msra.mxu0 %v1642
        %2339 = vmatpush.bf16.msra.mxu0 %v1638
        %2340 = vmatmul.bf16.gmra.mxu0 %v934
        %v2341 = vpop.f32.mrf.mxu0
        %v2342 = vadd.f32 %v2293, %v2341
        %v2343 = vpop.f32.mrf.mxu0
        %v2344 = vadd.f32 %v2295, %v2343
        %2345 = vmatmul.bf16.gmra.mxu0 %v940
        %v2346 = vpop.f32.mrf.mxu0
        %v2347 = vadd.f32 %v2298, %v2346
        %v2348 = vpop.f32.mrf.mxu0
        %v2349 = vadd.f32 %v2300, %v2348
        %2350 = vmatmul.bf16.gmra.mxu0 %v946
        %v2351 = vpop.f32.mrf.mxu0
        %v2352 = vadd.f32 %v2303, %v2351
        %v2353 = vpop.f32.mrf.mxu0
        %v2354 = vadd.f32 %v2305, %v2353
        %2355 = vmatmul.bf16.gmra.mxu0 %v952
        %v2356 = vpop.f32.mrf.mxu0
        %v2357 = vadd.f32 %v2308, %v2356
        %v2358 = vpop.f32.mrf.mxu0
        %v2359 = vadd.f32 %v2310, %v2358
        %2360 = vmatmul.bf16.gmra.mxu0 %v958
        %v2361 = vpop.f32.mrf.mxu0
        %v2362 = vadd.f32 %v2313, %v2361
        %v2363 = vpop.f32.mrf.mxu0
        %v2364 = vadd.f32 %v2315, %v2363
        %2365 = vmatmul.bf16.gmra.mxu0 %v964
        %v2366 = vpop.f32.mrf.mxu0
        %v2367 = vadd.f32 %v2318, %v2366
        %v2368 = vpop.f32.mrf.mxu0
        %v2369 = vadd.f32 %v2320, %v2368
        %2370 = vmatmul.bf16.gmra.mxu0 %v970
        %v2371 = vpop.f32.mrf.mxu0
        %v2372 = vadd.f32 %v2323, %v2371
        %v2373 = vpop.f32.mrf.mxu0
        %v2374 = vadd.f32 %v2325, %v2373
        %2375 = vmatmul.bf16.gmra.mxu0 %v976
        %v2376 = vpop.f32.mrf.mxu0
        %v2377 = vadd.f32 %v2328, %v2376
        %v2378 = vpop.f32.mrf.mxu0
        %v2379 = vadd.f32 %v2330, %v2378
        %2380 = vdwg.mxu0
        %2381 = vmatpush.bf16.msra.mxu0 %v1698
        %2382 = vmatpush.bf16.msra.mxu0 %v1694
        %2383 = vmatpush.bf16.msra.mxu0 %v1690
        %2384 = vmatpush.bf16.msra.mxu0 %v1686
        %2385 = vmatpush.bf16.msra.mxu0 %v1682
        %2386 = vmatpush.bf16.msra.mxu0 %v1678
        %2387 = vmatpush.bf16.msra.mxu0 %v1674
        %2388 = vmatpush.bf16.msra.mxu0 %v1670
        %2389 = vmatmul.bf16.gmra.mxu0 %v935
        %v2390 = vpop.f32.mrf.mxu0
        %v2391 = vadd.f32 %v2342, %v2390
        %v2392 = vpop.f32.mrf.mxu0
        %v2393 = vadd.f32 %v2344, %v2392
        %2394 = vmatmul.bf16.gmra.mxu0 %v941
        %v2395 = vpop.f32.mrf.mxu0
        %v2396 = vadd.f32 %v2347, %v2395
        %v2397 = vpop.f32.mrf.mxu0
        %v2398 = vadd.f32 %v2349, %v2397
        %2399 = vmatmul.bf16.gmra.mxu0 %v947
        %v2400 = vpop.f32.mrf.mxu0
        %v2401 = vadd.f32 %v2352, %v2400
        %v2402 = vpop.f32.mrf.mxu0
        %v2403 = vadd.f32 %v2354, %v2402
        %2404 = vmatmul.bf16.gmra.mxu0 %v953
        %v2405 = vpop.f32.mrf.mxu0
        %v2406 = vadd.f32 %v2357, %v2405
        %v2407 = vpop.f32.mrf.mxu0
        %v2408 = vadd.f32 %v2359, %v2407
        %2409 = vmatmul.bf16.gmra.mxu0 %v959
        %v2410 = vpop.f32.mrf.mxu0
        %v2411 = vadd.f32 %v2362, %v2410
        %v2412 = vpop.f32.mrf.mxu0
        %v2413 = vadd.f32 %v2364, %v2412
        %2414 = vmatmul.bf16.gmra.mxu0 %v965
        %v2415 = vpop.f32.mrf.mxu0
        %v2416 = vadd.f32 %v2367, %v2415
        %v2417 = vpop.f32.mrf.mxu0
        %v2418 = vadd.f32 %v2369, %v2417
        %2419 = vmatmul.bf16.gmra.mxu0 %v971
        %v2420 = vpop.f32.mrf.mxu0
        %v2421 = vadd.f32 %v2372, %v2420
        %v2422 = vpop.f32.mrf.mxu0
        %v2423 = vadd.f32 %v2374, %v2422
        %2424 = vmatmul.bf16.gmra.mxu0 %v977
        %v2425 = vpop.f32.mrf.mxu0
        %v2426 = vadd.f32 %v2377, %v2425
        %v2427 = vpop.f32.mrf.mxu0
        %v2428 = vadd.f32 %v2379, %v2427
        %2429 = vdwg.mxu0
        %2430 = vmatpush.bf16.msra.mxu0 %v1730
        %2431 = vmatpush.bf16.msra.mxu0 %v1726
        %2432 = vmatpush.bf16.msra.mxu0 %v1722
        %2433 = vmatpush.bf16.msra.mxu0 %v1718
        %2434 = vmatpush.bf16.msra.mxu0 %v1714
        %2435 = vmatpush.bf16.msra.mxu0 %v1710
        %2436 = vmatpush.bf16.msra.mxu0 %v1706
        %2437 = vmatpush.bf16.msra.mxu0 %v1702
        %2438 = vmatmul.bf16.gmra.mxu0 %v936
        %v2439 = vpop.f32.mrf.mxu0
        %v2440 = vadd.f32 %v2391, %v2439
        %v2441 = vpop.f32.mrf.mxu0
        %v2442 = vadd.f32 %v2393, %v2441
        %2443 = vmatmul.bf16.gmra.mxu0 %v942
        %v2444 = vpop.f32.mrf.mxu0
        %v2445 = vadd.f32 %v2396, %v2444
        %v2446 = vpop.f32.mrf.mxu0
        %v2447 = vadd.f32 %v2398, %v2446
        %2448 = vmatmul.bf16.gmra.mxu0 %v948
        %v2449 = vpop.f32.mrf.mxu0
        %v2450 = vadd.f32 %v2401, %v2449
        %v2451 = vpop.f32.mrf.mxu0
        %v2452 = vadd.f32 %v2403, %v2451
        %2453 = vmatmul.bf16.gmra.mxu0 %v954
        %v2454 = vpop.f32.mrf.mxu0
        %v2455 = vadd.f32 %v2406, %v2454
        %v2456 = vpop.f32.mrf.mxu0
        %v2457 = vadd.f32 %v2408, %v2456
        %2458 = vmatmul.bf16.gmra.mxu0 %v960
        %v2459 = vpop.f32.mrf.mxu0
        %v2460 = vadd.f32 %v2411, %v2459
        %v2461 = vpop.f32.mrf.mxu0
        %v2462 = vadd.f32 %v2413, %v2461
        %2463 = vmatmul.bf16.gmra.mxu0 %v966
        %v2464 = vpop.f32.mrf.mxu0
        %v2465 = vadd.f32 %v2416, %v2464
        %v2466 = vpop.f32.mrf.mxu0
        %v2467 = vadd.f32 %v2418, %v2466
        %2468 = vmatmul.bf16.gmra.mxu0 %v972
        %v2469 = vpop.f32.mrf.mxu0
        %v2470 = vadd.f32 %v2421, %v2469
        %v2471 = vpop.f32.mrf.mxu0
        %v2472 = vadd.f32 %v2423, %v2471
        %2473 = vmatmul.bf16.gmra.mxu0 %v978
        %v2474 = vpop.f32.mrf.mxu0
        %v2475 = vadd.f32 %v2426, %v2474
        %v2476 = vpop.f32.mrf.mxu0
        %v2477 = vadd.f32 %v2428, %v2476
        %2478 = vdwg.mxu0
        %2479 = vmatpush.bf16.msra.mxu0 %v1762
        %2480 = vmatpush.bf16.msra.mxu0 %v1758
        %2481 = vmatpush.bf16.msra.mxu0 %v1754
        %2482 = vmatpush.bf16.msra.mxu0 %v1750
        %2483 = vmatpush.bf16.msra.mxu0 %v1746
        %2484 = vmatpush.bf16.msra.mxu0 %v1742
        %2485 = vmatpush.bf16.msra.mxu0 %v1738
        %2486 = vmatpush.bf16.msra.mxu0 %v1734
        %2487 = vmatmul.bf16.gmra.mxu0 %v937
        %v2488 = vpop.f32.mrf.mxu0
        %v2489 = vadd.f32 %v2440, %v2488
        %v2490 = vpop.f32.mrf.mxu0
        %v2491 = vadd.f32 %v2442, %v2490
        %2492 = vmatmul.bf16.gmra.mxu0 %v943
        %v2493 = vpop.f32.mrf.mxu0
        %v2494 = vadd.f32 %v2445, %v2493
        %v2495 = vpop.f32.mrf.mxu0
        %v2496 = vadd.f32 %v2447, %v2495
        %2497 = vmatmul.bf16.gmra.mxu0 %v949
        %v2498 = vpop.f32.mrf.mxu0
        %v2499 = vadd.f32 %v2450, %v2498
        %v2500 = vpop.f32.mrf.mxu0
        %v2501 = vadd.f32 %v2452, %v2500
        %2502 = vmatmul.bf16.gmra.mxu0 %v955
        %v2503 = vpop.f32.mrf.mxu0
        %v2504 = vadd.f32 %v2455, %v2503
        %v2505 = vpop.f32.mrf.mxu0
        %v2506 = vadd.f32 %v2457, %v2505
        %2507 = vmatmul.bf16.gmra.mxu0 %v961
        %v2508 = vpop.f32.mrf.mxu0
        %v2509 = vadd.f32 %v2460, %v2508
        %v2510 = vpop.f32.mrf.mxu0
        %v2511 = vadd.f32 %v2462, %v2510
        %2512 = vmatmul.bf16.gmra.mxu0 %v967
        %v2513 = vpop.f32.mrf.mxu0
        %v2514 = vadd.f32 %v2465, %v2513
        %v2515 = vpop.f32.mrf.mxu0
        %v2516 = vadd.f32 %v2467, %v2515
        %2517 = vmatmul.bf16.gmra.mxu0 %v973
        %v2518 = vpop.f32.mrf.mxu0
        %v2519 = vadd.f32 %v2470, %v2518
        %v2520 = vpop.f32.mrf.mxu0
        %v2521 = vadd.f32 %v2472, %v2520
        %2522 = vmatmul.bf16.gmra.mxu0 %v979
        %v2523 = vpop.f32.mrf.mxu0
        %v2524 = vadd.f32 %v2475, %v2523
        %v2525 = vpop.f32.mrf.mxu0
        %v2526 = vadd.f32 %v2477, %v2525
        %2527 = vdwg.mxu0
        %2528 = vmatpush.bf16.msra.mxu0 %v1794
        %2529 = vmatpush.bf16.msra.mxu0 %v1790
        %2530 = vmatpush.bf16.msra.mxu0 %v1786
        %2531 = vmatpush.bf16.msra.mxu0 %v1782
        %2532 = vmatpush.bf16.msra.mxu0 %v1778
        %2533 = vmatpush.bf16.msra.mxu0 %v1774
        %2534 = vmatpush.bf16.msra.mxu0 %v1770
        %2535 = vmatpush.bf16.msra.mxu0 %v1766
        %2536 = vmatmul.bf16.gmra.mxu0 %v938
        %v2537 = vpop.f32.mrf.mxu0
        %v2538 = vadd.f32 %v2489, %v2537
        %v2539 = vpop.f32.mrf.mxu0
        %v2540 = vadd.f32 %v2491, %v2539
        %2541 = vmatmul.bf16.gmra.mxu0 %v944
        %v2542 = vpop.f32.mrf.mxu0
        %v2543 = vadd.f32 %v2494, %v2542
        %v2544 = vpop.f32.mrf.mxu0
        %v2545 = vadd.f32 %v2496, %v2544
        %2546 = vmatmul.bf16.gmra.mxu0 %v950
        %v2547 = vpop.f32.mrf.mxu0
        %v2548 = vadd.f32 %v2499, %v2547
        %v2549 = vpop.f32.mrf.mxu0
        %v2550 = vadd.f32 %v2501, %v2549
        %2551 = vmatmul.bf16.gmra.mxu0 %v956
        %v2552 = vpop.f32.mrf.mxu0
        %v2553 = vadd.f32 %v2504, %v2552
        %v2554 = vpop.f32.mrf.mxu0
        %v2555 = vadd.f32 %v2506, %v2554
        %2556 = vmatmul.bf16.gmra.mxu0 %v962
        %v2557 = vpop.f32.mrf.mxu0
        %v2558 = vadd.f32 %v2509, %v2557
        %v2559 = vpop.f32.mrf.mxu0
        %v2560 = vadd.f32 %v2511, %v2559
        %2561 = vmatmul.bf16.gmra.mxu0 %v968
        %v2562 = vpop.f32.mrf.mxu0
        %v2563 = vadd.f32 %v2514, %v2562
        %v2564 = vpop.f32.mrf.mxu0
        %v2565 = vadd.f32 %v2516, %v2564
        %2566 = vmatmul.bf16.gmra.mxu0 %v974
        %v2567 = vpop.f32.mrf.mxu0
        %v2568 = vadd.f32 %v2519, %v2567
        %v2569 = vpop.f32.mrf.mxu0
        %v2570 = vadd.f32 %v2521, %v2569
        %2571 = vmatmul.bf16.gmra.mxu0 %v980
        %v2572 = vpop.f32.mrf.mxu0
        %v2573 = vadd.f32 %v2524, %v2572
        %v2574 = vpop.f32.mrf.mxu0
        %v2575 = vadd.f32 %v2526, %v2574
        %2576 = vdwg.mxu0
        %2577 = vmatpush.bf16.msra.mxu0 %v1635
        %2578 = vmatpush.bf16.msra.mxu0 %v1631
        %2579 = vmatpush.bf16.msra.mxu0 %v1627
        %2580 = vmatpush.bf16.msra.mxu0 %v1623
        %2581 = vmatpush.bf16.msra.mxu0 %v1619
        %2582 = vmatpush.bf16.msra.mxu0 %v1615
        %2583 = vmatpush.bf16.msra.mxu0 %v1611
        %2584 = vmatpush.bf16.msra.mxu0 %v1607
        %2585 = vmatmul.bf16.gmra.mxu0 %v933
        %v2586 = vpop.f32.mrf.mxu0
        %v2587 = vadd.f32 0.0, %v2586
        %v2588 = vpop.f32.mrf.mxu0
        %v2589 = vadd.f32 0.0, %v2588
        %2590 = vmatmul.bf16.gmra.mxu0 %v939
        %v2591 = vpop.f32.mrf.mxu0
        %v2592 = vadd.f32 0.0, %v2591
        %v2593 = vpop.f32.mrf.mxu0
        %v2594 = vadd.f32 0.0, %v2593
        %2595 = vmatmul.bf16.gmra.mxu0 %v945
        %v2596 = vpop.f32.mrf.mxu0
        %v2597 = vadd.f32 0.0, %v2596
        %v2598 = vpop.f32.mrf.mxu0
        %v2599 = vadd.f32 0.0, %v2598
        %2600 = vmatmul.bf16.gmra.mxu0 %v951
        %v2601 = vpop.f32.mrf.mxu0
        %v2602 = vadd.f32 0.0, %v2601
        %v2603 = vpop.f32.mrf.mxu0
        %v2604 = vadd.f32 0.0, %v2603
        %2605 = vmatmul.bf16.gmra.mxu0 %v957
        %v2606 = vpop.f32.mrf.mxu0
        %v2607 = vadd.f32 0.0, %v2606
        %v2608 = vpop.f32.mrf.mxu0
        %v2609 = vadd.f32 0.0, %v2608
        %2610 = vmatmul.bf16.gmra.mxu0 %v963
        %v2611 = vpop.f32.mrf.mxu0
        %v2612 = vadd.f32 0.0, %v2611
        %v2613 = vpop.f32.mrf.mxu0
        %v2614 = vadd.f32 0.0, %v2613
        %2615 = vmatmul.bf16.gmra.mxu0 %v969
        %v2616 = vpop.f32.mrf.mxu0
        %v2617 = vadd.f32 0.0, %v2616
        %v2618 = vpop.f32.mrf.mxu0
        %v2619 = vadd.f32 0.0, %v2618
        %2620 = vmatmul.bf16.gmra.mxu0 %v975
        %v2621 = vpop.f32.mrf.mxu0
        %v2622 = vadd.f32 0.0, %v2621
        %v2623 = vpop.f32.mrf.mxu0
        %v2624 = vadd.f32 0.0, %v2623
        %2625 = vdwg.mxu0
        %2626 = vmatpush.bf16.msra.mxu0 %v1667
        %2627 = vmatpush.bf16.msra.mxu0 %v1663
        %2628 = vmatpush.bf16.msra.mxu0 %v1659
        %2629 = vmatpush.bf16.msra.mxu0 %v1655
        %2630 = vmatpush.bf16.msra.mxu0 %v1651
        %2631 = vmatpush.bf16.msra.mxu0 %v1647
        %2632 = vmatpush.bf16.msra.mxu0 %v1643
        %2633 = vmatpush.bf16.msra.mxu0 %v1639
        %2634 = vmatmul.bf16.gmra.mxu0 %v934
        %v2635 = vpop.f32.mrf.mxu0
        %v2636 = vadd.f32 %v2587, %v2635
        %v2637 = vpop.f32.mrf.mxu0
        %v2638 = vadd.f32 %v2589, %v2637
        %2639 = vmatmul.bf16.gmra.mxu0 %v940
        %v2640 = vpop.f32.mrf.mxu0
        %v2641 = vadd.f32 %v2592, %v2640
        %v2642 = vpop.f32.mrf.mxu0
        %v2643 = vadd.f32 %v2594, %v2642
        %2644 = vmatmul.bf16.gmra.mxu0 %v946
        %v2645 = vpop.f32.mrf.mxu0
        %v2646 = vadd.f32 %v2597, %v2645
        %v2647 = vpop.f32.mrf.mxu0
        %v2648 = vadd.f32 %v2599, %v2647
        %2649 = vmatmul.bf16.gmra.mxu0 %v952
        %v2650 = vpop.f32.mrf.mxu0
        %v2651 = vadd.f32 %v2602, %v2650
        %v2652 = vpop.f32.mrf.mxu0
        %v2653 = vadd.f32 %v2604, %v2652
        %2654 = vmatmul.bf16.gmra.mxu0 %v958
        %v2655 = vpop.f32.mrf.mxu0
        %v2656 = vadd.f32 %v2607, %v2655
        %v2657 = vpop.f32.mrf.mxu0
        %v2658 = vadd.f32 %v2609, %v2657
        %2659 = vmatmul.bf16.gmra.mxu0 %v964
        %v2660 = vpop.f32.mrf.mxu0
        %v2661 = vadd.f32 %v2612, %v2660
        %v2662 = vpop.f32.mrf.mxu0
        %v2663 = vadd.f32 %v2614, %v2662
        %2664 = vmatmul.bf16.gmra.mxu0 %v970
        %v2665 = vpop.f32.mrf.mxu0
        %v2666 = vadd.f32 %v2617, %v2665
        %v2667 = vpop.f32.mrf.mxu0
        %v2668 = vadd.f32 %v2619, %v2667
        %2669 = vmatmul.bf16.gmra.mxu0 %v976
        %v2670 = vpop.f32.mrf.mxu0
        %v2671 = vadd.f32 %v2622, %v2670
        %v2672 = vpop.f32.mrf.mxu0
        %v2673 = vadd.f32 %v2624, %v2672
        %2674 = vdwg.mxu0
        %2675 = vmatpush.bf16.msra.mxu0 %v1699
        %2676 = vmatpush.bf16.msra.mxu0 %v1695
        %2677 = vmatpush.bf16.msra.mxu0 %v1691
        %2678 = vmatpush.bf16.msra.mxu0 %v1687
        %2679 = vmatpush.bf16.msra.mxu0 %v1683
        %2680 = vmatpush.bf16.msra.mxu0 %v1679
        %2681 = vmatpush.bf16.msra.mxu0 %v1675
        %2682 = vmatpush.bf16.msra.mxu0 %v1671
        %2683 = vmatmul.bf16.gmra.mxu0 %v935
        %v2684 = vpop.f32.mrf.mxu0
        %v2685 = vadd.f32 %v2636, %v2684
        %v2686 = vpop.f32.mrf.mxu0
        %v2687 = vadd.f32 %v2638, %v2686
        %2688 = vmatmul.bf16.gmra.mxu0 %v941
        %v2689 = vpop.f32.mrf.mxu0
        %v2690 = vadd.f32 %v2641, %v2689
        %v2691 = vpop.f32.mrf.mxu0
        %v2692 = vadd.f32 %v2643, %v2691
        %2693 = vmatmul.bf16.gmra.mxu0 %v947
        %v2694 = vpop.f32.mrf.mxu0
        %v2695 = vadd.f32 %v2646, %v2694
        %v2696 = vpop.f32.mrf.mxu0
        %v2697 = vadd.f32 %v2648, %v2696
        %2698 = vmatmul.bf16.gmra.mxu0 %v953
        %v2699 = vpop.f32.mrf.mxu0
        %v2700 = vadd.f32 %v2651, %v2699
        %v2701 = vpop.f32.mrf.mxu0
        %v2702 = vadd.f32 %v2653, %v2701
        %2703 = vmatmul.bf16.gmra.mxu0 %v959
        %v2704 = vpop.f32.mrf.mxu0
        %v2705 = vadd.f32 %v2656, %v2704
        %v2706 = vpop.f32.mrf.mxu0
        %v2707 = vadd.f32 %v2658, %v2706
        %2708 = vmatmul.bf16.gmra.mxu0 %v965
        %v2709 = vpop.f32.mrf.mxu0
        %v2710 = vadd.f32 %v2661, %v2709
        %v2711 = vpop.f32.mrf.mxu0
        %v2712 = vadd.f32 %v2663, %v2711
        %2713 = vmatmul.bf16.gmra.mxu0 %v971
        %v2714 = vpop.f32.mrf.mxu0
        %v2715 = vadd.f32 %v2666, %v2714
        %v2716 = vpop.f32.mrf.mxu0
        %v2717 = vadd.f32 %v2668, %v2716
        %2718 = vmatmul.bf16.gmra.mxu0 %v977
        %v2719 = vpop.f32.mrf.mxu0
        %v2720 = vadd.f32 %v2671, %v2719
        %v2721 = vpop.f32.mrf.mxu0
        %v2722 = vadd.f32 %v2673, %v2721
        %2723 = vdwg.mxu0
        %2724 = vmatpush.bf16.msra.mxu0 %v1731
        %2725 = vmatpush.bf16.msra.mxu0 %v1727
        %2726 = vmatpush.bf16.msra.mxu0 %v1723
        %2727 = vmatpush.bf16.msra.mxu0 %v1719
        %2728 = vmatpush.bf16.msra.mxu0 %v1715
        %2729 = vmatpush.bf16.msra.mxu0 %v1711
        %2730 = vmatpush.bf16.msra.mxu0 %v1707
        %2731 = vmatpush.bf16.msra.mxu0 %v1703
        %2732 = vmatmul.bf16.gmra.mxu0 %v936
        %v2733 = vpop.f32.mrf.mxu0
        %v2734 = vadd.f32 %v2685, %v2733
        %v2735 = vpop.f32.mrf.mxu0
        %v2736 = vadd.f32 %v2687, %v2735
        %2737 = vmatmul.bf16.gmra.mxu0 %v942
        %v2738 = vpop.f32.mrf.mxu0
        %v2739 = vadd.f32 %v2690, %v2738
        %v2740 = vpop.f32.mrf.mxu0
        %v2741 = vadd.f32 %v2692, %v2740
        %2742 = vmatmul.bf16.gmra.mxu0 %v948
        %v2743 = vpop.f32.mrf.mxu0
        %v2744 = vadd.f32 %v2695, %v2743
        %v2745 = vpop.f32.mrf.mxu0
        %v2746 = vadd.f32 %v2697, %v2745
        %2747 = vmatmul.bf16.gmra.mxu0 %v954
        %v2748 = vpop.f32.mrf.mxu0
        %v2749 = vadd.f32 %v2700, %v2748
        %v2750 = vpop.f32.mrf.mxu0
        %v2751 = vadd.f32 %v2702, %v2750
        %2752 = vmatmul.bf16.gmra.mxu0 %v960
        %v2753 = vpop.f32.mrf.mxu0
        %v2754 = vadd.f32 %v2705, %v2753
        %v2755 = vpop.f32.mrf.mxu0
        %v2756 = vadd.f32 %v2707, %v2755
        %2757 = vmatmul.bf16.gmra.mxu0 %v966
        %v2758 = vpop.f32.mrf.mxu0
        %v2759 = vadd.f32 %v2710, %v2758
        %v2760 = vpop.f32.mrf.mxu0
        %v2761 = vadd.f32 %v2712, %v2760
        %2762 = vmatmul.bf16.gmra.mxu0 %v972
        %v2763 = vpop.f32.mrf.mxu0
        %v2764 = vadd.f32 %v2715, %v2763
        %v2765 = vpop.f32.mrf.mxu0
        %v2766 = vadd.f32 %v2717, %v2765
        %2767 = vmatmul.bf16.gmra.mxu0 %v978
        %v2768 = vpop.f32.mrf.mxu0
        %v2769 = vadd.f32 %v2720, %v2768
        %v2770 = vpop.f32.mrf.mxu0
        %v2771 = vadd.f32 %v2722, %v2770
        %2772 = vdwg.mxu0
        %2773 = vmatpush.bf16.msra.mxu0 %v1763
        %2774 = vmatpush.bf16.msra.mxu0 %v1759
        %2775 = vmatpush.bf16.msra.mxu0 %v1755
        %2776 = vmatpush.bf16.msra.mxu0 %v1751
        %2777 = vmatpush.bf16.msra.mxu0 %v1747
        %2778 = vmatpush.bf16.msra.mxu0 %v1743
        %2779 = vmatpush.bf16.msra.mxu0 %v1739
        %2780 = vmatpush.bf16.msra.mxu0 %v1735
        %2781 = vmatmul.bf16.gmra.mxu0 %v937
        %v2782 = vpop.f32.mrf.mxu0
        %v2783 = vadd.f32 %v2734, %v2782
        %v2784 = vpop.f32.mrf.mxu0
        %v2785 = vadd.f32 %v2736, %v2784
        %2786 = vmatmul.bf16.gmra.mxu0 %v943
        %v2787 = vpop.f32.mrf.mxu0
        %v2788 = vadd.f32 %v2739, %v2787
        %v2789 = vpop.f32.mrf.mxu0
        %v2790 = vadd.f32 %v2741, %v2789
        %2791 = vmatmul.bf16.gmra.mxu0 %v949
        %v2792 = vpop.f32.mrf.mxu0
        %v2793 = vadd.f32 %v2744, %v2792
        %v2794 = vpop.f32.mrf.mxu0
        %v2795 = vadd.f32 %v2746, %v2794
        %2796 = vmatmul.bf16.gmra.mxu0 %v955
        %v2797 = vpop.f32.mrf.mxu0
        %v2798 = vadd.f32 %v2749, %v2797
        %v2799 = vpop.f32.mrf.mxu0
        %v2800 = vadd.f32 %v2751, %v2799
        %2801 = vmatmul.bf16.gmra.mxu0 %v961
        %v2802 = vpop.f32.mrf.mxu0
        %v2803 = vadd.f32 %v2754, %v2802
        %v2804 = vpop.f32.mrf.mxu0
        %v2805 = vadd.f32 %v2756, %v2804
        %2806 = vmatmul.bf16.gmra.mxu0 %v967
        %v2807 = vpop.f32.mrf.mxu0
        %v2808 = vadd.f32 %v2759, %v2807
        %v2809 = vpop.f32.mrf.mxu0
        %v2810 = vadd.f32 %v2761, %v2809
        %2811 = vmatmul.bf16.gmra.mxu0 %v973
        %v2812 = vpop.f32.mrf.mxu0
        %v2813 = vadd.f32 %v2764, %v2812
        %v2814 = vpop.f32.mrf.mxu0
        %v2815 = vadd.f32 %v2766, %v2814
        %2816 = vmatmul.bf16.gmra.mxu0 %v979
        %v2817 = vpop.f32.mrf.mxu0
        %v2818 = vadd.f32 %v2769, %v2817
        %v2819 = vpop.f32.mrf.mxu0
        %v2820 = vadd.f32 %v2771, %v2819
        %2821 = vdwg.mxu0
        %2822 = vmatpush.bf16.msra.mxu0 %v1795
        %2823 = vmatpush.bf16.msra.mxu0 %v1791
        %2824 = vmatpush.bf16.msra.mxu0 %v1787
        %2825 = vmatpush.bf16.msra.mxu0 %v1783
        %2826 = vmatpush.bf16.msra.mxu0 %v1779
        %2827 = vmatpush.bf16.msra.mxu0 %v1775
        %2828 = vmatpush.bf16.msra.mxu0 %v1771
        %2829 = vmatpush.bf16.msra.mxu0 %v1767
        %2830 = vmatmul.bf16.gmra.mxu0 %v938
        %v2831 = vpop.f32.mrf.mxu0
        %v2832 = vadd.f32 %v2783, %v2831
        %v2833 = vpop.f32.mrf.mxu0
        %v2834 = vadd.f32 %v2785, %v2833
        %2835 = vmatmul.bf16.gmra.mxu0 %v944
        %v2836 = vpop.f32.mrf.mxu0
        %v2837 = vadd.f32 %v2788, %v2836
        %v2838 = vpop.f32.mrf.mxu0
        %v2839 = vadd.f32 %v2790, %v2838
        %2840 = vmatmul.bf16.gmra.mxu0 %v950
        %v2841 = vpop.f32.mrf.mxu0
        %v2842 = vadd.f32 %v2793, %v2841
        %v2843 = vpop.f32.mrf.mxu0
        %v2844 = vadd.f32 %v2795, %v2843
        %2845 = vmatmul.bf16.gmra.mxu0 %v956
        %v2846 = vpop.f32.mrf.mxu0
        %v2847 = vadd.f32 %v2798, %v2846
        %v2848 = vpop.f32.mrf.mxu0
        %v2849 = vadd.f32 %v2800, %v2848
        %2850 = vmatmul.bf16.gmra.mxu0 %v962
        %v2851 = vpop.f32.mrf.mxu0
        %v2852 = vadd.f32 %v2803, %v2851
        %v2853 = vpop.f32.mrf.mxu0
        %v2854 = vadd.f32 %v2805, %v2853
        %2855 = vmatmul.bf16.gmra.mxu0 %v968
        %v2856 = vpop.f32.mrf.mxu0
        %v2857 = vadd.f32 %v2808, %v2856
        %v2858 = vpop.f32.mrf.mxu0
        %v2859 = vadd.f32 %v2810, %v2858
        %2860 = vmatmul.bf16.gmra.mxu0 %v974
        %v2861 = vpop.f32.mrf.mxu0
        %v2862 = vadd.f32 %v2813, %v2861
        %v2863 = vpop.f32.mrf.mxu0
        %v2864 = vadd.f32 %v2815, %v2863
        %2865 = vmatmul.bf16.gmra.mxu0 %v980
        %v2866 = vpop.f32.mrf.mxu0
        %v2867 = vadd.f32 %v2818, %v2866
        %v2868 = vpop.f32.mrf.mxu0
        %v2869 = vadd.f32 %v2820, %v2868
        %2870 = vdwg.mxu0
        %2871 = vmatpush.bf16.msra.mxu0 %v1636
        %2872 = vmatpush.bf16.msra.mxu0 %v1632
        %2873 = vmatpush.bf16.msra.mxu0 %v1628
        %2874 = vmatpush.bf16.msra.mxu0 %v1624
        %2875 = vmatpush.bf16.msra.mxu0 %v1620
        %2876 = vmatpush.bf16.msra.mxu0 %v1616
        %2877 = vmatpush.bf16.msra.mxu0 %v1612
        %2878 = vmatpush.bf16.msra.mxu0 %v1608
        %2879 = vmatmul.bf16.gmra.mxu0 %v933
        %v2880 = vpop.f32.mrf.mxu0
        %v2881 = vadd.f32 0.0, %v2880
        %v2882 = vpop.f32.mrf.mxu0
        %v2883 = vadd.f32 0.0, %v2882
        %2884 = vmatmul.bf16.gmra.mxu0 %v939
        %v2885 = vpop.f32.mrf.mxu0
        %v2886 = vadd.f32 0.0, %v2885
        %v2887 = vpop.f32.mrf.mxu0
        %v2888 = vadd.f32 0.0, %v2887
        %2889 = vmatmul.bf16.gmra.mxu0 %v945
        %v2890 = vpop.f32.mrf.mxu0
        %v2891 = vadd.f32 0.0, %v2890
        %v2892 = vpop.f32.mrf.mxu0
        %v2893 = vadd.f32 0.0, %v2892
        %2894 = vmatmul.bf16.gmra.mxu0 %v951
        %v2895 = vpop.f32.mrf.mxu0
        %v2896 = vadd.f32 0.0, %v2895
        %v2897 = vpop.f32.mrf.mxu0
        %v2898 = vadd.f32 0.0, %v2897
        %2899 = vmatmul.bf16.gmra.mxu0 %v957
        %v2900 = vpop.f32.mrf.mxu0
        %v2901 = vadd.f32 0.0, %v2900
        %v2902 = vpop.f32.mrf.mxu0
        %v2903 = vadd.f32 0.0, %v2902
        %2904 = vmatmul.bf16.gmra.mxu0 %v963
        %v2905 = vpop.f32.mrf.mxu0
        %v2906 = vadd.f32 0.0, %v2905
        %v2907 = vpop.f32.mrf.mxu0
        %v2908 = vadd.f32 0.0, %v2907
        %2909 = vmatmul.bf16.gmra.mxu0 %v969
        %v2910 = vpop.f32.mrf.mxu0
        %v2911 = vadd.f32 0.0, %v2910
        %v2912 = vpop.f32.mrf.mxu0
        %v2913 = vadd.f32 0.0, %v2912
        %2914 = vmatmul.bf16.gmra.mxu0 %v975
        %v2915 = vpop.f32.mrf.mxu0
        %v2916 = vadd.f32 0.0, %v2915
        %v2917 = vpop.f32.mrf.mxu0
        %v2918 = vadd.f32 0.0, %v2917
        %2919 = vdwg.mxu0
        %2920 = vmatpush.bf16.msra.mxu0 %v1668
        %2921 = vmatpush.bf16.msra.mxu0 %v1664
        %2922 = vmatpush.bf16.msra.mxu0 %v1660
        %2923 = vmatpush.bf16.msra.mxu0 %v1656
        %2924 = vmatpush.bf16.msra.mxu0 %v1652
        %2925 = vmatpush.bf16.msra.mxu0 %v1648
        %2926 = vmatpush.bf16.msra.mxu0 %v1644
        %2927 = vmatpush.bf16.msra.mxu0 %v1640
        %2928 = vmatmul.bf16.gmra.mxu0 %v934
        %v2929 = vpop.f32.mrf.mxu0
        %v2930 = vadd.f32 %v2881, %v2929
        %v2931 = vpop.f32.mrf.mxu0
        %v2932 = vadd.f32 %v2883, %v2931
        %2933 = vmatmul.bf16.gmra.mxu0 %v940
        %v2934 = vpop.f32.mrf.mxu0
        %v2935 = vadd.f32 %v2886, %v2934
        %v2936 = vpop.f32.mrf.mxu0
        %v2937 = vadd.f32 %v2888, %v2936
        %2938 = vmatmul.bf16.gmra.mxu0 %v946
        %v2939 = vpop.f32.mrf.mxu0
        %v2940 = vadd.f32 %v2891, %v2939
        %v2941 = vpop.f32.mrf.mxu0
        %v2942 = vadd.f32 %v2893, %v2941
        %2943 = vmatmul.bf16.gmra.mxu0 %v952
        %v2944 = vpop.f32.mrf.mxu0
        %v2945 = vadd.f32 %v2896, %v2944
        %v2946 = vpop.f32.mrf.mxu0
        %v2947 = vadd.f32 %v2898, %v2946
        %2948 = vmatmul.bf16.gmra.mxu0 %v958
        %v2949 = vpop.f32.mrf.mxu0
        %v2950 = vadd.f32 %v2901, %v2949
        %v2951 = vpop.f32.mrf.mxu0
        %v2952 = vadd.f32 %v2903, %v2951
        %2953 = vmatmul.bf16.gmra.mxu0 %v964
        %v2954 = vpop.f32.mrf.mxu0
        %v2955 = vadd.f32 %v2906, %v2954
        %v2956 = vpop.f32.mrf.mxu0
        %v2957 = vadd.f32 %v2908, %v2956
        %2958 = vmatmul.bf16.gmra.mxu0 %v970
        %v2959 = vpop.f32.mrf.mxu0
        %v2960 = vadd.f32 %v2911, %v2959
        %v2961 = vpop.f32.mrf.mxu0
        %v2962 = vadd.f32 %v2913, %v2961
        %2963 = vmatmul.bf16.gmra.mxu0 %v976
        %v2964 = vpop.f32.mrf.mxu0
        %v2965 = vadd.f32 %v2916, %v2964
        %v2966 = vpop.f32.mrf.mxu0
        %v2967 = vadd.f32 %v2918, %v2966
        %2968 = vdwg.mxu0
        %2969 = vmatpush.bf16.msra.mxu0 %v1700
        %2970 = vmatpush.bf16.msra.mxu0 %v1696
        %2971 = vmatpush.bf16.msra.mxu0 %v1692
        %2972 = vmatpush.bf16.msra.mxu0 %v1688
        %2973 = vmatpush.bf16.msra.mxu0 %v1684
        %2974 = vmatpush.bf16.msra.mxu0 %v1680
        %2975 = vmatpush.bf16.msra.mxu0 %v1676
        %2976 = vmatpush.bf16.msra.mxu0 %v1672
        %2977 = vmatmul.bf16.gmra.mxu0 %v935
        %v2978 = vpop.f32.mrf.mxu0
        %v2979 = vadd.f32 %v2930, %v2978
        %v2980 = vpop.f32.mrf.mxu0
        %v2981 = vadd.f32 %v2932, %v2980
        %2982 = vmatmul.bf16.gmra.mxu0 %v941
        %v2983 = vpop.f32.mrf.mxu0
        %v2984 = vadd.f32 %v2935, %v2983
        %v2985 = vpop.f32.mrf.mxu0
        %v2986 = vadd.f32 %v2937, %v2985
        %2987 = vmatmul.bf16.gmra.mxu0 %v947
        %v2988 = vpop.f32.mrf.mxu0
        %v2989 = vadd.f32 %v2940, %v2988
        %v2990 = vpop.f32.mrf.mxu0
        %v2991 = vadd.f32 %v2942, %v2990
        %2992 = vmatmul.bf16.gmra.mxu0 %v953
        %v2993 = vpop.f32.mrf.mxu0
        %v2994 = vadd.f32 %v2945, %v2993
        %v2995 = vpop.f32.mrf.mxu0
        %v2996 = vadd.f32 %v2947, %v2995
        %2997 = vmatmul.bf16.gmra.mxu0 %v959
        %v2998 = vpop.f32.mrf.mxu0
        %v2999 = vadd.f32 %v2950, %v2998
        %v3000 = vpop.f32.mrf.mxu0
        %v3001 = vadd.f32 %v2952, %v3000
        %3002 = vmatmul.bf16.gmra.mxu0 %v965
        %v3003 = vpop.f32.mrf.mxu0
        %v3004 = vadd.f32 %v2955, %v3003
        %v3005 = vpop.f32.mrf.mxu0
        %v3006 = vadd.f32 %v2957, %v3005
        %3007 = vmatmul.bf16.gmra.mxu0 %v971
        %v3008 = vpop.f32.mrf.mxu0
        %v3009 = vadd.f32 %v2960, %v3008
        %v3010 = vpop.f32.mrf.mxu0
        %v3011 = vadd.f32 %v2962, %v3010
        %3012 = vmatmul.bf16.gmra.mxu0 %v977
        %v3013 = vpop.f32.mrf.mxu0
        %v3014 = vadd.f32 %v2965, %v3013
        %v3015 = vpop.f32.mrf.mxu0
        %v3016 = vadd.f32 %v2967, %v3015
        %3017 = vdwg.mxu0
        %3018 = vmatpush.bf16.msra.mxu0 %v1732
        %3019 = vmatpush.bf16.msra.mxu0 %v1728
        %3020 = vmatpush.bf16.msra.mxu0 %v1724
        %3021 = vmatpush.bf16.msra.mxu0 %v1720
        %3022 = vmatpush.bf16.msra.mxu0 %v1716
        %3023 = vmatpush.bf16.msra.mxu0 %v1712
        %3024 = vmatpush.bf16.msra.mxu0 %v1708
        %3025 = vmatpush.bf16.msra.mxu0 %v1704
        %3026 = vmatmul.bf16.gmra.mxu0 %v936
        %v3027 = vpop.f32.mrf.mxu0
        %v3028 = vadd.f32 %v2979, %v3027
        %v3029 = vpop.f32.mrf.mxu0
        %v3030 = vadd.f32 %v2981, %v3029
        %3031 = vmatmul.bf16.gmra.mxu0 %v942
        %v3032 = vpop.f32.mrf.mxu0
        %v3033 = vadd.f32 %v2984, %v3032
        %v3034 = vpop.f32.mrf.mxu0
        %v3035 = vadd.f32 %v2986, %v3034
        %3036 = vmatmul.bf16.gmra.mxu0 %v948
        %v3037 = vpop.f32.mrf.mxu0
        %v3038 = vadd.f32 %v2989, %v3037
        %v3039 = vpop.f32.mrf.mxu0
        %v3040 = vadd.f32 %v2991, %v3039
        %3041 = vmatmul.bf16.gmra.mxu0 %v954
        %v3042 = vpop.f32.mrf.mxu0
        %v3043 = vadd.f32 %v2994, %v3042
        %v3044 = vpop.f32.mrf.mxu0
        %v3045 = vadd.f32 %v2996, %v3044
        %3046 = vmatmul.bf16.gmra.mxu0 %v960
        %v3047 = vpop.f32.mrf.mxu0
        %v3048 = vadd.f32 %v2999, %v3047
        %v3049 = vpop.f32.mrf.mxu0
        %v3050 = vadd.f32 %v3001, %v3049
        %3051 = vmatmul.bf16.gmra.mxu0 %v966
        %v3052 = vpop.f32.mrf.mxu0
        %v3053 = vadd.f32 %v3004, %v3052
        %v3054 = vpop.f32.mrf.mxu0
        %v3055 = vadd.f32 %v3006, %v3054
        %3056 = vmatmul.bf16.gmra.mxu0 %v972
        %v3057 = vpop.f32.mrf.mxu0
        %v3058 = vadd.f32 %v3009, %v3057
        %v3059 = vpop.f32.mrf.mxu0
        %v3060 = vadd.f32 %v3011, %v3059
        %3061 = vmatmul.bf16.gmra.mxu0 %v978
        %v3062 = vpop.f32.mrf.mxu0
        %v3063 = vadd.f32 %v3014, %v3062
        %v3064 = vpop.f32.mrf.mxu0
        %v3065 = vadd.f32 %v3016, %v3064
        %3066 = vdwg.mxu0
        %3067 = vmatpush.bf16.msra.mxu0 %v1764
        %3068 = vmatpush.bf16.msra.mxu0 %v1760
        %3069 = vmatpush.bf16.msra.mxu0 %v1756
        %3070 = vmatpush.bf16.msra.mxu0 %v1752
        %3071 = vmatpush.bf16.msra.mxu0 %v1748
        %3072 = vmatpush.bf16.msra.mxu0 %v1744
        %3073 = vmatpush.bf16.msra.mxu0 %v1740
        %3074 = vmatpush.bf16.msra.mxu0 %v1736
        %3075 = vmatmul.bf16.gmra.mxu0 %v937
        %v3076 = vpop.f32.mrf.mxu0
        %v3077 = vadd.f32 %v3028, %v3076
        %v3078 = vpop.f32.mrf.mxu0
        %v3079 = vadd.f32 %v3030, %v3078
        %3080 = vmatmul.bf16.gmra.mxu0 %v943
        %v3081 = vpop.f32.mrf.mxu0
        %v3082 = vadd.f32 %v3033, %v3081
        %v3083 = vpop.f32.mrf.mxu0
        %v3084 = vadd.f32 %v3035, %v3083
        %3085 = vmatmul.bf16.gmra.mxu0 %v949
        %v3086 = vpop.f32.mrf.mxu0
        %v3087 = vadd.f32 %v3038, %v3086
        %v3088 = vpop.f32.mrf.mxu0
        %v3089 = vadd.f32 %v3040, %v3088
        %3090 = vmatmul.bf16.gmra.mxu0 %v955
        %v3091 = vpop.f32.mrf.mxu0
        %v3092 = vadd.f32 %v3043, %v3091
        %v3093 = vpop.f32.mrf.mxu0
        %v3094 = vadd.f32 %v3045, %v3093
        %3095 = vmatmul.bf16.gmra.mxu0 %v961
        %v3096 = vpop.f32.mrf.mxu0
        %v3097 = vadd.f32 %v3048, %v3096
        %v3098 = vpop.f32.mrf.mxu0
        %v3099 = vadd.f32 %v3050, %v3098
        %3100 = vmatmul.bf16.gmra.mxu0 %v967
        %v3101 = vpop.f32.mrf.mxu0
        %v3102 = vadd.f32 %v3053, %v3101
        %v3103 = vpop.f32.mrf.mxu0
        %v3104 = vadd.f32 %v3055, %v3103
        %3105 = vmatmul.bf16.gmra.mxu0 %v973
        %v3106 = vpop.f32.mrf.mxu0
        %v3107 = vadd.f32 %v3058, %v3106
        %v3108 = vpop.f32.mrf.mxu0
        %v3109 = vadd.f32 %v3060, %v3108
        %3110 = vmatmul.bf16.gmra.mxu0 %v979
        %v3111 = vpop.f32.mrf.mxu0
        %v3112 = vadd.f32 %v3063, %v3111
        %v3113 = vpop.f32.mrf.mxu0
        %v3114 = vadd.f32 %v3065, %v3113
        %3115 = vdwg.mxu0
        %3116 = vmatpush.bf16.msra.mxu0 %v1796
        %3117 = vmatpush.bf16.msra.mxu0 %v1792
        %3118 = vmatpush.bf16.msra.mxu0 %v1788
        %3119 = vmatpush.bf16.msra.mxu0 %v1784
        %3120 = vmatpush.bf16.msra.mxu0 %v1780
        %3121 = vmatpush.bf16.msra.mxu0 %v1776
        %3122 = vmatpush.bf16.msra.mxu0 %v1772
        %3123 = vmatpush.bf16.msra.mxu0 %v1768
        %3124 = vmatmul.bf16.gmra.mxu0 %v938
        %v3125 = vpop.f32.mrf.mxu0
        %v3126 = vadd.f32 %v3077, %v3125
        %v3127 = vpop.f32.mrf.mxu0
        %v3128 = vadd.f32 %v3079, %v3127
        %3129 = vmatmul.bf16.gmra.mxu0 %v944
        %v3130 = vpop.f32.mrf.mxu0
        %v3131 = vadd.f32 %v3082, %v3130
        %v3132 = vpop.f32.mrf.mxu0
        %v3133 = vadd.f32 %v3084, %v3132
        %3134 = vmatmul.bf16.gmra.mxu0 %v950
        %v3135 = vpop.f32.mrf.mxu0
        %v3136 = vadd.f32 %v3087, %v3135
        %v3137 = vpop.f32.mrf.mxu0
        %v3138 = vadd.f32 %v3089, %v3137
        %3139 = vmatmul.bf16.gmra.mxu0 %v956
        %v3140 = vpop.f32.mrf.mxu0
        %v3141 = vadd.f32 %v3092, %v3140
        %v3142 = vpop.f32.mrf.mxu0
        %v3143 = vadd.f32 %v3094, %v3142
        %3144 = vmatmul.bf16.gmra.mxu0 %v962
        %v3145 = vpop.f32.mrf.mxu0
        %v3146 = vadd.f32 %v3097, %v3145
        %v3147 = vpop.f32.mrf.mxu0
        %v3148 = vadd.f32 %v3099, %v3147
        %3149 = vmatmul.bf16.gmra.mxu0 %v968
        %v3150 = vpop.f32.mrf.mxu0
        %v3151 = vadd.f32 %v3102, %v3150
        %v3152 = vpop.f32.mrf.mxu0
        %v3153 = vadd.f32 %v3104, %v3152
        %3154 = vmatmul.bf16.gmra.mxu0 %v974
        %v3155 = vpop.f32.mrf.mxu0
        %v3156 = vadd.f32 %v3107, %v3155
        %v3157 = vpop.f32.mrf.mxu0
        %v3158 = vadd.f32 %v3109, %v3157
        %3159 = vmatmul.bf16.gmra.mxu0 %v980
        %v3160 = vpop.f32.mrf.mxu0
        %v3161 = vadd.f32 %v3112, %v3160
        %v3162 = vpop.f32.mrf.mxu0
        %v3163 = vadd.f32 %v3114, %v3162
        %3164 = vdwg.mxu0
        %v3165 = vadd.f32 %v725, %v2244
        %v3166 = vadd.f32 %v726, %v2538
        %v3167 = vadd.f32 %v727, %v2832
        %v3168 = vadd.f32 %v728, %v3126
        %v3169 = vadd.f32 %v729, %v2246
        %v3170 = vadd.f32 %v730, %v2540
        %v3171 = vadd.f32 %v731, %v2834
        %v3172 = vadd.f32 %v732, %v3128
        %v3173 = vadd.f32 %v733, %v2249
        %v3174 = vadd.f32 %v734, %v2543
        %v3175 = vadd.f32 %v735, %v2837
        %v3176 = vadd.f32 %v736, %v3131
        %v3177 = vadd.f32 %v737, %v2251
        %v3178 = vadd.f32 %v738, %v2545
        %v3179 = vadd.f32 %v739, %v2839
        %v3180 = vadd.f32 %v740, %v3133
        %v3181 = vadd.f32 %v741, %v2254
        %v3182 = vadd.f32 %v742, %v2548
        %v3183 = vadd.f32 %v743, %v2842
        %v3184 = vadd.f32 %v744, %v3136
        %v3185 = vadd.f32 %v745, %v2256
        %v3186 = vadd.f32 %v746, %v2550
        %v3187 = vadd.f32 %v747, %v2844
        %v3188 = vadd.f32 %v748, %v3138
        %v3189 = vadd.f32 %v749, %v2259
        %v3190 = vadd.f32 %v750, %v2553
        %v3191 = vadd.f32 %v751, %v2847
        %v3192 = vadd.f32 %v752, %v3141
        %v3193 = vadd.f32 %v753, %v2261
        %v3194 = vadd.f32 %v754, %v2555
        %v3195 = vadd.f32 %v755, %v2849
        %v3196 = vadd.f32 %v756, %v3143
        %v3197 = vadd.f32 %v757, %v2264
        %v3198 = vadd.f32 %v758, %v2558
        %v3199 = vadd.f32 %v759, %v2852
        %v3200 = vadd.f32 %v760, %v3146
        %v3201 = vadd.f32 %v761, %v2266
        %v3202 = vadd.f32 %v762, %v2560
        %v3203 = vadd.f32 %v763, %v2854
        %v3204 = vadd.f32 %v764, %v3148
        %v3205 = vadd.f32 %v765, %v2269
        %v3206 = vadd.f32 %v766, %v2563
        %v3207 = vadd.f32 %v767, %v2857
        %v3208 = vadd.f32 %v768, %v3151
        %v3209 = vadd.f32 %v769, %v2271
        %v3210 = vadd.f32 %v770, %v2565
        %v3211 = vadd.f32 %v771, %v2859
        %v3212 = vadd.f32 %v772, %v3153
        %v3213 = vadd.f32 %v773, %v2274
        %v3214 = vadd.f32 %v774, %v2568
        %v3215 = vadd.f32 %v775, %v2862
        %v3216 = vadd.f32 %v776, %v3156
        %v3217 = vadd.f32 %v777, %v2276
        %v3218 = vadd.f32 %v778, %v2570
        %v3219 = vadd.f32 %v779, %v2864
        %v3220 = vadd.f32 %v780, %v3158
        %v3221 = vadd.f32 %v781, %v2279
        %v3222 = vadd.f32 %v782, %v2573
        %v3223 = vadd.f32 %v783, %v2867
        %v3224 = vadd.f32 %v784, %v3161
        %v3225 = vadd.f32 %v785, %v2281
        %v3226 = vadd.f32 %v786, %v2575
        %v3227 = vadd.f32 %v787, %v2869
        %v3228 = vadd.f32 %v788, %v3163
        %3229 = vst [vmem:[#allocation2] sm:$0xff] %v3165
        %3230 = vst [vmem:[#allocation2 + $0x8] sm:$0xff] %v3166
        %3231 = vst [vmem:[#allocation2 + $0x10] sm:$0xff] %v3167
        %3232 = vst [vmem:[#allocation2 + $0x18] sm:$0xff] %v3168
        %3233 = vst [vmem:[#allocation2 + $0x20] sm:$0xff] %v3169
        %3234 = vst [vmem:[#allocation2 + $0x28] sm:$0xff] %v3170
        %3235 = vst [vmem:[#allocation2 + $0x30] sm:$0xff] %v3171
        %3236 = vst [vmem:[#allocation2 + $0x38] sm:$0xff] %v3172
        %3237 = vst [vmem:[#allocation2 + $0x40] sm:$0xff] %v3173
        %3238 = vst [vmem:[#allocation2 + $0x48] sm:$0xff] %v3174
        %3239 = vst [vmem:[#allocation2 + $0x50] sm:$0xff] %v3175
        %3240 = vst [vmem:[#allocation2 + $0x58] sm:$0xff] %v3176
        %3241 = vst [vmem:[#allocation2 + $0x60] sm:$0xff] %v3177
        %3242 = vst [vmem:[#allocation2 + $0x68] sm:$0xff] %v3178
        %3243 = vst [vmem:[#allocation2 + $0x70] sm:$0xff] %v3179
        %3244 = vst [vmem:[#allocation2 + $0x78] sm:$0xff] %v3180
        %3245 = vst [vmem:[#allocation2 + $0x80] sm:$0xff] %v3181
        %3246 = vst [vmem:[#allocation2 + $0x88] sm:$0xff] %v3182
        %3247 = vst [vmem:[#allocation2 + $0x90] sm:$0xff] %v3183
        %3248 = vst [vmem:[#allocation2 + $0x98] sm:$0xff] %v3184
        %3249 = vst [vmem:[#allocation2 + $0xa0] sm:$0xff] %v3185
        %3250 = vst [vmem:[#allocation2 + $0xa8] sm:$0xff] %v3186
        %3251 = vst [vmem:[#allocation2 + $0xb0] sm:$0xff] %v3187
        %3252 = vst [vmem:[#allocation2 + $0xb8] sm:$0xff] %v3188
        %3253 = vst [vmem:[#allocation2 + $0xc0] sm:$0xff] %v3189
        %3254 = vst [vmem:[#allocation2 + $0xc8] sm:$0xff] %v3190
        %3255 = vst [vmem:[#allocation2 + $0xd0] sm:$0xff] %v3191
        %3256 = vst [vmem:[#allocation2 + $0xd8] sm:$0xff] %v3192
        %3257 = vst [vmem:[#allocation2 + $0xe0] sm:$0xff] %v3193
        %3258 = vst [vmem:[#allocation2 + $0xe8] sm:$0xff] %v3194
        %3259 = vst [vmem:[#allocation2 + $0xf0] sm:$0xff] %v3195
        %3260 = vst [vmem:[#allocation2 + $0xf8] sm:$0xff] %v3196
        %3261 = vst [vmem:[#allocation2 + $0x100] sm:$0xff] %v3197
        %3262 = vst [vmem:[#allocation2 + $0x108] sm:$0xff] %v3198
        %3263 = vst [vmem:[#allocation2 + $0x110] sm:$0xff] %v3199
        %3264 = vst [vmem:[#allocation2 + $0x118] sm:$0xff] %v3200
        %3265 = vst [vmem:[#allocation2 + $0x120] sm:$0xff] %v3201
        %3266 = vst [vmem:[#allocation2 + $0x128] sm:$0xff] %v3202
        %3267 = vst [vmem:[#allocation2 + $0x130] sm:$0xff] %v3203
        %3268 = vst [vmem:[#allocation2 + $0x138] sm:$0xff] %v3204
        %3269 = vst [vmem:[#allocation2 + $0x140] sm:$0xff] %v3205
        %3270 = vst [vmem:[#allocation2 + $0x148] sm:$0xff] %v3206
        %3271 = vst [vmem:[#allocation2 + $0x150] sm:$0xff] %v3207
        %3272 = vst [vmem:[#allocation2 + $0x158] sm:$0xff] %v3208
        %3273 = vst [vmem:[#allocation2 + $0x160] sm:$0xff] %v3209
        %3274 = vst [vmem:[#allocation2 + $0x168] sm:$0xff] %v3210
        %3275 = vst [vmem:[#allocation2 + $0x170] sm:$0xff] %v3211
        %3276 = vst [vmem:[#allocation2 + $0x178] sm:$0xff] %v3212
        %3277 = vst [vmem:[#allocation2 + $0x180] sm:$0xff] %v3213
        %3278 = vst [vmem:[#allocation2 + $0x188] sm:$0xff] %v3214
        %3279 = vst [vmem:[#allocation2 + $0x190] sm:$0xff] %v3215
        %3280 = vst [vmem:[#allocation2 + $0x198] sm:$0xff] %v3216
        %3281 = vst [vmem:[#allocation2 + $0x1a0] sm:$0xff] %v3217
        %3282 = vst [vmem:[#allocation2 + $0x1a8] sm:$0xff] %v3218
        %3283 = vst [vmem:[#allocation2 + $0x1b0] sm:$0xff] %v3219
        %3284 = vst [vmem:[#allocation2 + $0x1b8] sm:$0xff] %v3220
        %3285 = vst [vmem:[#allocation2 + $0x1c0] sm:$0xff] %v3221
        %3286 = vst [vmem:[#allocation2 + $0x1c8] sm:$0xff] %v3222
        %3287 = vst [vmem:[#allocation2 + $0x1d0] sm:$0xff] %v3223
        %3288 = vst [vmem:[#allocation2 + $0x1d8] sm:$0xff] %v3224
        %3289 = vst [vmem:[#allocation2 + $0x1e0] sm:$0xff] %v3225
        %3290 = vst [vmem:[#allocation2 + $0x1e8] sm:$0xff] %v3226
        %3291 = vst [vmem:[#allocation2 + $0x1f0] sm:$0xff] %v3227
        %3292 = vst [vmem:[#allocation2 + $0x1f8] sm:$0xff] %v3228
        // Predicated region
        $region61: #{_forward_impl.1} parent=55 // pred_check
          %p3293 = pneg %p417
        $region62: #{_forward_impl.1} parent=55 // pred_check_branch
          %3295 = sbr.rel (%p3293) target = $region64
        $region63: #{_forward_impl.1} parent=55 // pred_region
          %v3296 = vld [vmem:[#allocation2] sm:$0xff]
          %v3297 = vld [vmem:[#allocation2 + $0x8] sm:$0xff]
          %v3298 = vld [vmem:[#allocation2 + $0x10] sm:$0xff]
          %v3299 = vld [vmem:[#allocation2 + $0x18] sm:$0xff]
          %v3300 = vld [vmem:[#allocation2 + $0x20] sm:$0xff]
          %v3301 = vld [vmem:[#allocation2 + $0x28] sm:$0xff]
          %v3302 = vld [vmem:[#allocation2 + $0x30] sm:$0xff]
          %v3303 = vld [vmem:[#allocation2 + $0x38] sm:$0xff]
          %v3304 = vld [vmem:[#allocation2 + $0x40] sm:$0xff]
          %v3305 = vld [vmem:[#allocation2 + $0x48] sm:$0xff]
          %v3306 = vld [vmem:[#allocation2 + $0x50] sm:$0xff]
          %v3307 = vld [vmem:[#allocation2 + $0x58] sm:$0xff]
          %v3308 = vld [vmem:[#allocation2 + $0x60] sm:$0xff]
          %v3309 = vld [vmem:[#allocation2 + $0x68] sm:$0xff]
          %v3310 = vld [vmem:[#allocation2 + $0x70] sm:$0xff]
          %v3311 = vld [vmem:[#allocation2 + $0x78] sm:$0xff]
          %v3312 = vld [vmem:[#allocation2 + $0x80] sm:$0xff]
          %v3313 = vld [vmem:[#allocation2 + $0x88] sm:$0xff]
          %v3314 = vld [vmem:[#allocation2 + $0x90] sm:$0xff]
          %v3315 = vld [vmem:[#allocation2 + $0x98] sm:$0xff]
          %v3316 = vld [vmem:[#allocation2 + $0xa0] sm:$0xff]
          %v3317 = vld [vmem:[#allocation2 + $0xa8] sm:$0xff]
          %v3318 = vld [vmem:[#allocation2 + $0xb0] sm:$0xff]
          %v3319 = vld [vmem:[#allocation2 + $0xb8] sm:$0xff]
          %v3320 = vld [vmem:[#allocation2 + $0xc0] sm:$0xff]
          %v3321 = vld [vmem:[#allocation2 + $0xc8] sm:$0xff]
          %v3322 = vld [vmem:[#allocation2 + $0xd0] sm:$0xff]
          %v3323 = vld [vmem:[#allocation2 + $0xd8] sm:$0xff]
          %v3324 = vld [vmem:[#allocation2 + $0xe0] sm:$0xff]
          %v3325 = vld [vmem:[#allocation2 + $0xe8] sm:$0xff]
          %v3326 = vld [vmem:[#allocation2 + $0xf0] sm:$0xff]
          %v3327 = vld [vmem:[#allocation2 + $0xf8] sm:$0xff]
          %v3328 = vld [vmem:[#allocation2 + $0x100] sm:$0xff]
          %v3329 = vld [vmem:[#allocation2 + $0x108] sm:$0xff]
          %v3330 = vld [vmem:[#allocation2 + $0x110] sm:$0xff]
          %v3331 = vld [vmem:[#allocation2 + $0x118] sm:$0xff]
          %v3332 = vld [vmem:[#allocation2 + $0x120] sm:$0xff]
          %v3333 = vld [vmem:[#allocation2 + $0x128] sm:$0xff]
          %v3334 = vld [vmem:[#allocation2 + $0x130] sm:$0xff]
          %v3335 = vld [vmem:[#allocation2 + $0x138] sm:$0xff]
          %v3336 = vld [vmem:[#allocation2 + $0x140] sm:$0xff]
          %v3337 = vld [vmem:[#allocation2 + $0x148] sm:$0xff]
          %v3338 = vld [vmem:[#allocation2 + $0x150] sm:$0xff]
          %v3339 = vld [vmem:[#allocation2 + $0x158] sm:$0xff]
          %v3340 = vld [vmem:[#allocation2 + $0x160] sm:$0xff]
          %v3341 = vld [vmem:[#allocation2 + $0x168] sm:$0xff]
          %v3342 = vld [vmem:[#allocation2 + $0x170] sm:$0xff]
          %v3343 = vld [vmem:[#allocation2 + $0x178] sm:$0xff]
          %v3344 = vld [vmem:[#allocation2 + $0x180] sm:$0xff]
          %v3345 = vld [vmem:[#allocation2 + $0x188] sm:$0xff]
          %v3346 = vld [vmem:[#allocation2 + $0x190] sm:$0xff]
          %v3347 = vld [vmem:[#allocation2 + $0x198] sm:$0xff]
          %v3348 = vld [vmem:[#allocation2 + $0x1a0] sm:$0xff]
          %v3349 = vld [vmem:[#allocation2 + $0x1a8] sm:$0xff]
          %v3350 = vld [vmem:[#allocation2 + $0x1b0] sm:$0xff]
          %v3351 = vld [vmem:[#allocation2 + $0x1b8] sm:$0xff]
          %v3352 = vld [vmem:[#allocation2 + $0x1c0] sm:$0xff]
          %v3353 = vld [vmem:[#allocation2 + $0x1c8] sm:$0xff]
          %v3354 = vld [vmem:[#allocation2 + $0x1d0] sm:$0xff]
          %v3355 = vld [vmem:[#allocation2 + $0x1d8] sm:$0xff]
          %v3356 = vld [vmem:[#allocation2 + $0x1e0] sm:$0xff]
          %v3357 = vld [vmem:[#allocation2 + $0x1e8] sm:$0xff]
          %v3358 = vld [vmem:[#allocation2 + $0x1f0] sm:$0xff]
          %v3359 = vld [vmem:[#allocation2 + $0x1f8] sm:$0xff]
          %v3360 = vld [vmem:[%s2] sm:$0xf]
          %v3362 = vperm.slane %v3360, 0
          %v3363 = vperm.slane %v3360, 1
          %v3364 = vperm.slane %v3360, 2
          %v3365 = vperm.slane %v3360, 3
          %v3370 = vadd.f32 %v3296, %v3362
          %v3371 = vadd.f32 %v3297, %v3363
          %v3372 = vadd.f32 %v3298, %v3364
          %v3373 = vadd.f32 %v3299, %v3365
          %v3374 = vadd.f32 %v3300, %v3362
          %v3375 = vadd.f32 %v3301, %v3363
          %v3376 = vadd.f32 %v3302, %v3364
          %v3377 = vadd.f32 %v3303, %v3365
          %v3378 = vadd.f32 %v3304, %v3362
          %v3379 = vadd.f32 %v3305, %v3363
          %v3380 = vadd.f32 %v3306, %v3364
          %v3381 = vadd.f32 %v3307, %v3365
          %v3382 = vadd.f32 %v3308, %v3362
          %v3383 = vadd.f32 %v3309, %v3363
          %v3384 = vadd.f32 %v3310, %v3364
          %v3385 = vadd.f32 %v3311, %v3365
          %v3386 = vadd.f32 %v3312, %v3362
          %v3387 = vadd.f32 %v3313, %v3363
          %v3388 = vadd.f32 %v3314, %v3364
          %v3389 = vadd.f32 %v3315, %v3365
          %v3390 = vadd.f32 %v3316, %v3362
          %v3391 = vadd.f32 %v3317, %v3363
          %v3392 = vadd.f32 %v3318, %v3364
          %v3393 = vadd.f32 %v3319, %v3365
          %v3394 = vadd.f32 %v3320, %v3362
          %v3395 = vadd.f32 %v3321, %v3363
          %v3396 = vadd.f32 %v3322, %v3364
          %v3397 = vadd.f32 %v3323, %v3365
          %v3398 = vadd.f32 %v3324, %v3362
          %v3399 = vadd.f32 %v3325, %v3363
          %v3400 = vadd.f32 %v3326, %v3364
          %v3401 = vadd.f32 %v3327, %v3365
          %v3402 = vadd.f32 %v3328, %v3362
          %v3403 = vadd.f32 %v3329, %v3363
          %v3404 = vadd.f32 %v3330, %v3364
          %v3405 = vadd.f32 %v3331, %v3365
          %v3406 = vadd.f32 %v3332, %v3362
          %v3407 = vadd.f32 %v3333, %v3363
          %v3408 = vadd.f32 %v3334, %v3364
          %v3409 = vadd.f32 %v3335, %v3365
          %v3410 = vadd.f32 %v3336, %v3362
          %v3411 = vadd.f32 %v3337, %v3363
          %v3412 = vadd.f32 %v3338, %v3364
          %v3413 = vadd.f32 %v3339, %v3365
          %v3414 = vadd.f32 %v3340, %v3362
          %v3415 = vadd.f32 %v3341, %v3363
          %v3416 = vadd.f32 %v3342, %v3364
          %v3417 = vadd.f32 %v3343, %v3365
          %v3418 = vadd.f32 %v3344, %v3362
          %v3419 = vadd.f32 %v3345, %v3363
          %v3420 = vadd.f32 %v3346, %v3364
          %v3421 = vadd.f32 %v3347, %v3365
          %v3422 = vadd.f32 %v3348, %v3362
          %v3423 = vadd.f32 %v3349, %v3363
          %v3424 = vadd.f32 %v3350, %v3364
          %v3425 = vadd.f32 %v3351, %v3365
          %v3426 = vadd.f32 %v3352, %v3362
          %v3427 = vadd.f32 %v3353, %v3363
          %v3428 = vadd.f32 %v3354, %v3364
          %v3429 = vadd.f32 %v3355, %v3365
          %v3430 = vadd.f32 %v3356, %v3362
          %v3431 = vadd.f32 %v3357, %v3363
          %v3432 = vadd.f32 %v3358, %v3364
          %v3433 = vadd.f32 %v3359, %v3365
          %vm3434 = vcmp.ge.f32.partialorder %v3370, 0.0
          %vm3435 = vcmp.ge.f32.partialorder %v3371, 0.0
          %vm3436 = vcmp.ge.f32.partialorder %v3372, 0.0
          %vm3437 = vcmp.ge.f32.partialorder %v3373, 0.0
          %vm3438 = vcmp.ge.f32.partialorder %v3374, 0.0
          %vm3439 = vcmp.ge.f32.partialorder %v3375, 0.0
          %vm3440 = vcmp.ge.f32.partialorder %v3376, 0.0
          %vm3441 = vcmp.ge.f32.partialorder %v3377, 0.0
          %vm3442 = vcmp.ge.f32.partialorder %v3378, 0.0
          %vm3443 = vcmp.ge.f32.partialorder %v3379, 0.0
          %vm3444 = vcmp.ge.f32.partialorder %v3380, 0.0
          %vm3445 = vcmp.ge.f32.partialorder %v3381, 0.0
          %vm3446 = vcmp.ge.f32.partialorder %v3382, 0.0
          %vm3447 = vcmp.ge.f32.partialorder %v3383, 0.0
          %vm3448 = vcmp.ge.f32.partialorder %v3384, 0.0
          %vm3449 = vcmp.ge.f32.partialorder %v3385, 0.0
          %vm3450 = vcmp.ge.f32.partialorder %v3386, 0.0
          %vm3451 = vcmp.ge.f32.partialorder %v3387, 0.0
          %vm3452 = vcmp.ge.f32.partialorder %v3388, 0.0
          %vm3453 = vcmp.ge.f32.partialorder %v3389, 0.0
          %vm3454 = vcmp.ge.f32.partialorder %v3390, 0.0
          %vm3455 = vcmp.ge.f32.partialorder %v3391, 0.0
          %vm3456 = vcmp.ge.f32.partialorder %v3392, 0.0
          %vm3457 = vcmp.ge.f32.partialorder %v3393, 0.0
          %vm3458 = vcmp.ge.f32.partialorder %v3394, 0.0
          %vm3459 = vcmp.ge.f32.partialorder %v3395, 0.0
          %vm3460 = vcmp.ge.f32.partialorder %v3396, 0.0
          %vm3461 = vcmp.ge.f32.partialorder %v3397, 0.0
          %vm3462 = vcmp.ge.f32.partialorder %v3398, 0.0
          %vm3463 = vcmp.ge.f32.partialorder %v3399, 0.0
          %vm3464 = vcmp.ge.f32.partialorder %v3400, 0.0
          %vm3465 = vcmp.ge.f32.partialorder %v3401, 0.0
          %vm3466 = vcmp.ge.f32.partialorder %v3402, 0.0
          %vm3467 = vcmp.ge.f32.partialorder %v3403, 0.0
          %vm3468 = vcmp.ge.f32.partialorder %v3404, 0.0
          %vm3469 = vcmp.ge.f32.partialorder %v3405, 0.0
          %vm3470 = vcmp.ge.f32.partialorder %v3406, 0.0
          %vm3471 = vcmp.ge.f32.partialorder %v3407, 0.0
          %vm3472 = vcmp.ge.f32.partialorder %v3408, 0.0
          %vm3473 = vcmp.ge.f32.partialorder %v3409, 0.0
          %vm3474 = vcmp.ge.f32.partialorder %v3410, 0.0
          %vm3475 = vcmp.ge.f32.partialorder %v3411, 0.0
          %vm3476 = vcmp.ge.f32.partialorder %v3412, 0.0
          %vm3477 = vcmp.ge.f32.partialorder %v3413, 0.0
          %vm3478 = vcmp.ge.f32.partialorder %v3414, 0.0
          %vm3479 = vcmp.ge.f32.partialorder %v3415, 0.0
          %vm3480 = vcmp.ge.f32.partialorder %v3416, 0.0
          %vm3481 = vcmp.ge.f32.partialorder %v3417, 0.0
          %vm3482 = vcmp.ge.f32.partialorder %v3418, 0.0
          %vm3483 = vcmp.ge.f32.partialorder %v3419, 0.0
          %vm3484 = vcmp.ge.f32.partialorder %v3420, 0.0
          %vm3485 = vcmp.ge.f32.partialorder %v3421, 0.0
          %vm3486 = vcmp.ge.f32.partialorder %v3422, 0.0
          %vm3487 = vcmp.ge.f32.partialorder %v3423, 0.0
          %vm3488 = vcmp.ge.f32.partialorder %v3424, 0.0
          %vm3489 = vcmp.ge.f32.partialorder %v3425, 0.0
          %vm3490 = vcmp.ge.f32.partialorder %v3426, 0.0
          %vm3491 = vcmp.ge.f32.partialorder %v3427, 0.0
          %vm3492 = vcmp.ge.f32.partialorder %v3428, 0.0
          %vm3493 = vcmp.ge.f32.partialorder %v3429, 0.0
          %vm3494 = vcmp.ge.f32.partialorder %v3430, 0.0
          %vm3495 = vcmp.ge.f32.partialorder %v3431, 0.0
          %vm3496 = vcmp.ge.f32.partialorder %v3432, 0.0
          %vm3497 = vcmp.ge.f32.partialorder %v3433, 0.0
          %v3498 = vmul.f32 %v3370, 0.2
          %v3499 = vmul.f32 %v3371, 0.2
          %v3500 = vmul.f32 %v3372, 0.2
          %v3501 = vmul.f32 %v3373, 0.2
          %v3502 = vmul.f32 %v3374, 0.2
          %v3503 = vmul.f32 %v3375, 0.2
          %v3504 = vmul.f32 %v3376, 0.2
          %v3505 = vmul.f32 %v3377, 0.2
          %v3506 = vmul.f32 %v3378, 0.2
          %v3507 = vmul.f32 %v3379, 0.2
          %v3508 = vmul.f32 %v3380, 0.2
          %v3509 = vmul.f32 %v3381, 0.2
          %v3510 = vmul.f32 %v3382, 0.2
          %v3511 = vmul.f32 %v3383, 0.2
          %v3512 = vmul.f32 %v3384, 0.2
          %v3513 = vmul.f32 %v3385, 0.2
          %v3514 = vmul.f32 %v3386, 0.2
          %v3515 = vmul.f32 %v3387, 0.2
          %v3516 = vmul.f32 %v3388, 0.2
          %v3517 = vmul.f32 %v3389, 0.2
          %v3518 = vmul.f32 %v3390, 0.2
          %v3519 = vmul.f32 %v3391, 0.2
          %v3520 = vmul.f32 %v3392, 0.2
          %v3521 = vmul.f32 %v3393, 0.2
          %v3522 = vmul.f32 %v3394, 0.2
          %v3523 = vmul.f32 %v3395, 0.2
          %v3524 = vmul.f32 %v3396, 0.2
          %v3525 = vmul.f32 %v3397, 0.2
          %v3526 = vmul.f32 %v3398, 0.2
          %v3527 = vmul.f32 %v3399, 0.2
          %v3528 = vmul.f32 %v3400, 0.2
          %v3529 = vmul.f32 %v3401, 0.2
          %v3530 = vmul.f32 %v3402, 0.2
          %v3531 = vmul.f32 %v3403, 0.2
          %v3532 = vmul.f32 %v3404, 0.2
          %v3533 = vmul.f32 %v3405, 0.2
          %v3534 = vmul.f32 %v3406, 0.2
          %v3535 = vmul.f32 %v3407, 0.2
          %v3536 = vmul.f32 %v3408, 0.2
          %v3537 = vmul.f32 %v3409, 0.2
          %v3538 = vmul.f32 %v3410, 0.2
          %v3539 = vmul.f32 %v3411, 0.2
          %v3540 = vmul.f32 %v3412, 0.2
          %v3541 = vmul.f32 %v3413, 0.2
          %v3542 = vmul.f32 %v3414, 0.2
          %v3543 = vmul.f32 %v3415, 0.2
          %v3544 = vmul.f32 %v3416, 0.2
          %v3545 = vmul.f32 %v3417, 0.2
          %v3546 = vmul.f32 %v3418, 0.2
          %v3547 = vmul.f32 %v3419, 0.2
          %v3548 = vmul.f32 %v3420, 0.2
          %v3549 = vmul.f32 %v3421, 0.2
          %v3550 = vmul.f32 %v3422, 0.2
          %v3551 = vmul.f32 %v3423, 0.2
          %v3552 = vmul.f32 %v3424, 0.2
          %v3553 = vmul.f32 %v3425, 0.2
          %v3554 = vmul.f32 %v3426, 0.2
          %v3555 = vmul.f32 %v3427, 0.2
          %v3556 = vmul.f32 %v3428, 0.2
          %v3557 = vmul.f32 %v3429, 0.2
          %v3558 = vmul.f32 %v3430, 0.2
          %v3559 = vmul.f32 %v3431, 0.2
          %v3560 = vmul.f32 %v3432, 0.2
          %v3561 = vmul.f32 %v3433, 0.2
          %v3562 = vsel %vm3434, %v3370, %v3498
          %v3563 = vsel %vm3435, %v3371, %v3499
          %v3564 = vsel %vm3436, %v3372, %v3500
          %v3565 = vsel %vm3437, %v3373, %v3501
          %v3566 = vsel %vm3438, %v3374, %v3502
          %v3567 = vsel %vm3439, %v3375, %v3503
          %v3568 = vsel %vm3440, %v3376, %v3504
          %v3569 = vsel %vm3441, %v3377, %v3505
          %v3570 = vsel %vm3442, %v3378, %v3506
          %v3571 = vsel %vm3443, %v3379, %v3507
          %v3572 = vsel %vm3444, %v3380, %v3508
          %v3573 = vsel %vm3445, %v3381, %v3509
          %v3574 = vsel %vm3446, %v3382, %v3510
          %v3575 = vsel %vm3447, %v3383, %v3511
          %v3576 = vsel %vm3448, %v3384, %v3512
          %v3577 = vsel %vm3449, %v3385, %v3513
          %v3578 = vsel %vm3450, %v3386, %v3514
          %v3579 = vsel %vm3451, %v3387, %v3515
          %v3580 = vsel %vm3452, %v3388, %v3516
          %v3581 = vsel %vm3453, %v3389, %v3517
          %v3582 = vsel %vm3454, %v3390, %v3518
          %v3583 = vsel %vm3455, %v3391, %v3519
          %v3584 = vsel %vm3456, %v3392, %v3520
          %v3585 = vsel %vm3457, %v3393, %v3521
          %v3586 = vsel %vm3458, %v3394, %v3522
          %v3587 = vsel %vm3459, %v3395, %v3523
          %v3588 = vsel %vm3460, %v3396, %v3524
          %v3589 = vsel %vm3461, %v3397, %v3525
          %v3590 = vsel %vm3462, %v3398, %v3526
          %v3591 = vsel %vm3463, %v3399, %v3527
          %v3592 = vsel %vm3464, %v3400, %v3528
          %v3593 = vsel %vm3465, %v3401, %v3529
          %v3594 = vsel %vm3466, %v3402, %v3530
          %v3595 = vsel %vm3467, %v3403, %v3531
          %v3596 = vsel %vm3468, %v3404, %v3532
          %v3597 = vsel %vm3469, %v3405, %v3533
          %v3598 = vsel %vm3470, %v3406, %v3534
          %v3599 = vsel %vm3471, %v3407, %v3535
          %v3600 = vsel %vm3472, %v3408, %v3536
          %v3601 = vsel %vm3473, %v3409, %v3537
          %v3602 = vsel %vm3474, %v3410, %v3538
          %v3603 = vsel %vm3475, %v3411, %v3539
          %v3604 = vsel %vm3476, %v3412, %v3540
          %v3605 = vsel %vm3477, %v3413, %v3541
          %v3606 = vsel %vm3478, %v3414, %v3542
          %v3607 = vsel %vm3479, %v3415, %v3543
          %v3608 = vsel %vm3480, %v3416, %v3544
          %v3609 = vsel %vm3481, %v3417, %v3545
          %v3610 = vsel %vm3482, %v3418, %v3546
          %v3611 = vsel %vm3483, %v3419, %v3547
          %v3612 = vsel %vm3484, %v3420, %v3548
          %v3613 = vsel %vm3485, %v3421, %v3549
          %v3614 = vsel %vm3486, %v3422, %v3550
          %v3615 = vsel %vm3487, %v3423, %v3551
          %v3616 = vsel %vm3488, %v3424, %v3552
          %v3617 = vsel %vm3489, %v3425, %v3553
          %v3618 = vsel %vm3490, %v3426, %v3554
          %v3619 = vsel %vm3491, %v3427, %v3555
          %v3620 = vsel %vm3492, %v3428, %v3556
          %v3621 = vsel %vm3493, %v3429, %v3557
          %v3622 = vsel %vm3494, %v3430, %v3558
          %v3623 = vsel %vm3495, %v3431, %v3559
          %v3624 = vsel %vm3496, %v3432, %v3560
          %v3625 = vsel %vm3497, %v3433, %v3561
          %v3626 = vpack.c.bf16 %v3566, %v3562
          %v3627 = vpack.c.bf16 %v3567, %v3563
          %v3628 = vpack.c.bf16 %v3568, %v3564
          %v3629 = vpack.c.bf16 %v3569, %v3565
          %v3630 = vpack.c.bf16 %v3574, %v3570
          %v3631 = vpack.c.bf16 %v3575, %v3571
          %v3632 = vpack.c.bf16 %v3576, %v3572
          %v3633 = vpack.c.bf16 %v3577, %v3573
          %v3634 = vpack.c.bf16 %v3582, %v3578
          %v3635 = vpack.c.bf16 %v3583, %v3579
          %v3636 = vpack.c.bf16 %v3584, %v3580
          %v3637 = vpack.c.bf16 %v3585, %v3581
          %v3638 = vpack.c.bf16 %v3590, %v3586
          %v3639 = vpack.c.bf16 %v3591, %v3587
          %v3640 = vpack.c.bf16 %v3592, %v3588
          %v3641 = vpack.c.bf16 %v3593, %v3589
          %v3642 = vpack.c.bf16 %v3598, %v3594
          %v3643 = vpack.c.bf16 %v3599, %v3595
          %v3644 = vpack.c.bf16 %v3600, %v3596
          %v3645 = vpack.c.bf16 %v3601, %v3597
          %v3646 = vpack.c.bf16 %v3606, %v3602
          %v3647 = vpack.c.bf16 %v3607, %v3603
          %v3648 = vpack.c.bf16 %v3608, %v3604
          %v3649 = vpack.c.bf16 %v3609, %v3605
          %v3650 = vpack.c.bf16 %v3614, %v3610
          %v3651 = vpack.c.bf16 %v3615, %v3611
          %v3652 = vpack.c.bf16 %v3616, %v3612
          %v3653 = vpack.c.bf16 %v3617, %v3613
          %v3654 = vpack.c.bf16 %v3622, %v3618
          %v3655 = vpack.c.bf16 %v3623, %v3619
          %v3656 = vpack.c.bf16 %v3624, %v3620
          %v3657 = vpack.c.bf16 %v3625, %v3621
          %v3658 = vld [vmem:[%s3] sm:$0xff]
          %v3659 = vld [vmem:[%s3 + $0x8] sm:$0xff]
          %v3660 = vld [vmem:[%s3 + $0x10] sm:$0xff]
          %v3661 = vld [vmem:[%s3 + $0x18] sm:$0xff]
          %v3662 = vld [vmem:[%s3 + $0x20] sm:$0xff]
          %v3663 = vld [vmem:[%s3 + $0x28] sm:$0xff]
          %v3664 = vld [vmem:[%s3 + $0x30] sm:$0xff]
          %v3665 = vld [vmem:[%s3 + $0x38] sm:$0xff]
          %v3666 = vld [vmem:[%s3 + $0x40] sm:$0xff]
          %v3667 = vld [vmem:[%s3 + $0x48] sm:$0xff]
          %v3668 = vld [vmem:[%s3 + $0x50] sm:$0xff]
          %v3669 = vld [vmem:[%s3 + $0x58] sm:$0xff]
          %v3670 = vld [vmem:[%s3 + $0x60] sm:$0xff]
          %v3671 = vld [vmem:[%s3 + $0x68] sm:$0xff]
          %v3672 = vld [vmem:[%s3 + $0x70] sm:$0xff]
          %v3673 = vld [vmem:[%s3 + $0x78] sm:$0xff]
          %v3674 = vld [vmem:[%s3 + $0x80] sm:$0xff]
          %v3675 = vld [vmem:[%s3 + $0x88] sm:$0xff]
          %v3676 = vld [vmem:[%s3 + $0x90] sm:$0xff]
          %v3677 = vld [vmem:[%s3 + $0x98] sm:$0xff]
          %v3678 = vld [vmem:[%s3 + $0xa0] sm:$0xff]
          %v3679 = vld [vmem:[%s3 + $0xa8] sm:$0xff]
          %v3680 = vld [vmem:[%s3 + $0xb0] sm:$0xff]
          %v3681 = vld [vmem:[%s3 + $0xb8] sm:$0xff]
          %v3682 = vld [vmem:[%s3 + $0xc0] sm:$0xff]
          %v3683 = vld [vmem:[%s3 + $0xc8] sm:$0xff]
          %v3684 = vld [vmem:[%s3 + $0xd0] sm:$0xff]
          %v3685 = vld [vmem:[%s3 + $0xd8] sm:$0xff]
          %v3686 = vld [vmem:[%s3 + $0xe0] sm:$0xff]
          %v3687 = vld [vmem:[%s3 + $0xe8] sm:$0xff]
          %v3688 = vld [vmem:[%s3 + $0xf0] sm:$0xff]
          %v3689 = vld [vmem:[%s3 + $0xf8] sm:$0xff]
          %v3690 = vld [vmem:[%s3 + $0x100] sm:$0xff]
          %v3691 = vld [vmem:[%s3 + $0x108] sm:$0xff]
          %v3692 = vld [vmem:[%s3 + $0x110] sm:$0xff]
          %v3693 = vld [vmem:[%s3 + $0x118] sm:$0xff]
          %v3694 = vld [vmem:[%s3 + $0x120] sm:$0xff]
          %v3695 = vld [vmem:[%s3 + $0x128] sm:$0xff]
          %v3696 = vld [vmem:[%s3 + $0x130] sm:$0xff]
          %v3697 = vld [vmem:[%s3 + $0x138] sm:$0xff]
          %v3698 = vld [vmem:[%s3 + $0x140] sm:$0xff]
          %v3699 = vld [vmem:[%s3 + $0x148] sm:$0xff]
          %v3700 = vld [vmem:[%s3 + $0x150] sm:$0xff]
          %v3701 = vld [vmem:[%s3 + $0x158] sm:$0xff]
          %v3702 = vld [vmem:[%s3 + $0x160] sm:$0xff]
          %v3703 = vld [vmem:[%s3 + $0x168] sm:$0xff]
          %v3704 = vld [vmem:[%s3 + $0x170] sm:$0xff]
          %v3705 = vld [vmem:[%s3 + $0x178] sm:$0xff]
          %v3706 = vld [vmem:[%s3 + $0x180] sm:$0xff]
          %v3707 = vld [vmem:[%s3 + $0x188] sm:$0xff]
          %v3708 = vld [vmem:[%s3 + $0x190] sm:$0xff]
          %v3709 = vld [vmem:[%s3 + $0x198] sm:$0xff]
          %v3710 = vld [vmem:[%s3 + $0x1a0] sm:$0xff]
          %v3711 = vld [vmem:[%s3 + $0x1a8] sm:$0xff]
          %v3712 = vld [vmem:[%s3 + $0x1b0] sm:$0xff]
          %v3713 = vld [vmem:[%s3 + $0x1b8] sm:$0xff]
          %v3714 = vld [vmem:[%s3 + $0x1c0] sm:$0xff]
          %v3715 = vld [vmem:[%s3 + $0x1c8] sm:$0xff]
          %v3716 = vld [vmem:[%s3 + $0x1d0] sm:$0xff]
          %v3717 = vld [vmem:[%s3 + $0x1d8] sm:$0xff]
          %v3718 = vld [vmem:[%s3 + $0x1e0] sm:$0xff]
          %v3719 = vld [vmem:[%s3 + $0x1e8] sm:$0xff]
          %v3720 = vld [vmem:[%s3 + $0x1f0] sm:$0xff]
          %v3721 = vld [vmem:[%s3 + $0x1f8] sm:$0xff]
          %v3722 = vld [vmem:[%s4] sm:$0x3]
          %v3724 = vperm.slane %v3722, 0
          %v3725 = vperm.slane %v3722, 1
          %v3792 = vunpack.c.l.b16 %v3658
          %v3793 = vunpack.c.h.b16 %v3658
          %v3794 = vunpack.c.l.b16 %v3659
          %v3795 = vunpack.c.h.b16 %v3659
          %v3796 = vunpack.c.l.b16 %v3660
          %v3797 = vunpack.c.h.b16 %v3660
          %v3798 = vunpack.c.l.b16 %v3661
          %v3799 = vunpack.c.h.b16 %v3661
          %v3800 = vunpack.c.l.b16 %v3662
          %v3801 = vunpack.c.h.b16 %v3662
          %v3802 = vunpack.c.l.b16 %v3663
          %v3803 = vunpack.c.h.b16 %v3663
          %v3804 = vunpack.c.l.b16 %v3664
          %v3805 = vunpack.c.h.b16 %v3664
          %v3806 = vunpack.c.l.b16 %v3665
          %v3807 = vunpack.c.h.b16 %v3665
          %v3808 = vunpack.c.l.b16 %v3666
          %v3809 = vunpack.c.h.b16 %v3666
          %v3810 = vunpack.c.l.b16 %v3667
          %v3811 = vunpack.c.h.b16 %v3667
          %v3812 = vunpack.c.l.b16 %v3668
          %v3813 = vunpack.c.h.b16 %v3668
          %v3814 = vunpack.c.l.b16 %v3669
          %v3815 = vunpack.c.h.b16 %v3669
          %v3816 = vunpack.c.l.b16 %v3670
          %v3817 = vunpack.c.h.b16 %v3670
          %v3818 = vunpack.c.l.b16 %v3671
          %v3819 = vunpack.c.h.b16 %v3671
          %v3820 = vunpack.c.l.b16 %v3672
          %v3821 = vunpack.c.h.b16 %v3672
          %v3822 = vunpack.c.l.b16 %v3673
          %v3823 = vunpack.c.h.b16 %v3673
          %v3824 = vunpack.c.l.b16 %v3674
          %v3825 = vunpack.c.h.b16 %v3674
          %v3826 = vunpack.c.l.b16 %v3675
          %v3827 = vunpack.c.h.b16 %v3675
          %v3828 = vunpack.c.l.b16 %v3676
          %v3829 = vunpack.c.h.b16 %v3676
          %v3830 = vunpack.c.l.b16 %v3677
          %v3831 = vunpack.c.h.b16 %v3677
          %v3832 = vunpack.c.l.b16 %v3678
          %v3833 = vunpack.c.h.b16 %v3678
          %v3834 = vunpack.c.l.b16 %v3679
          %v3835 = vunpack.c.h.b16 %v3679
          %v3836 = vunpack.c.l.b16 %v3680
          %v3837 = vunpack.c.h.b16 %v3680
          %v3838 = vunpack.c.l.b16 %v3681
          %v3839 = vunpack.c.h.b16 %v3681
          %v3840 = vunpack.c.l.b16 %v3682
          %v3841 = vunpack.c.h.b16 %v3682
          %v3842 = vunpack.c.l.b16 %v3683
          %v3843 = vunpack.c.h.b16 %v3683
          %v3844 = vunpack.c.l.b16 %v3684
          %v3845 = vunpack.c.h.b16 %v3684
          %v3846 = vunpack.c.l.b16 %v3685
          %v3847 = vunpack.c.h.b16 %v3685
          %v3848 = vunpack.c.l.b16 %v3686
          %v3849 = vunpack.c.h.b16 %v3686
          %v3850 = vunpack.c.l.b16 %v3687
          %v3851 = vunpack.c.h.b16 %v3687
          %v3852 = vunpack.c.l.b16 %v3688
          %v3853 = vunpack.c.h.b16 %v3688
          %v3854 = vunpack.c.l.b16 %v3689
          %v3855 = vunpack.c.h.b16 %v3689
          %v3856 = vunpack.c.l.b16 %v3690
          %v3857 = vunpack.c.h.b16 %v3690
          %v3858 = vunpack.c.l.b16 %v3691
          %v3859 = vunpack.c.h.b16 %v3691
          %v3860 = vunpack.c.l.b16 %v3692
          %v3861 = vunpack.c.h.b16 %v3692
          %v3862 = vunpack.c.l.b16 %v3693
          %v3863 = vunpack.c.h.b16 %v3693
          %v3864 = vunpack.c.l.b16 %v3694
          %v3865 = vunpack.c.h.b16 %v3694
          %v3866 = vunpack.c.l.b16 %v3695
          %v3867 = vunpack.c.h.b16 %v3695
          %v3868 = vunpack.c.l.b16 %v3696
          %v3869 = vunpack.c.h.b16 %v3696
          %v3870 = vunpack.c.l.b16 %v3697
          %v3871 = vunpack.c.h.b16 %v3697
          %v3872 = vunpack.c.l.b16 %v3698
          %v3873 = vunpack.c.h.b16 %v3698
          %v3874 = vunpack.c.l.b16 %v3699
          %v3875 = vunpack.c.h.b16 %v3699
          %v3876 = vunpack.c.l.b16 %v3700
          %v3877 = vunpack.c.h.b16 %v3700
          %v3878 = vunpack.c.l.b16 %v3701
          %v3879 = vunpack.c.h.b16 %v3701
          %v3880 = vunpack.c.l.b16 %v3702
          %v3881 = vunpack.c.h.b16 %v3702
          %v3882 = vunpack.c.l.b16 %v3703
          %v3883 = vunpack.c.h.b16 %v3703
          %v3884 = vunpack.c.l.b16 %v3704
          %v3885 = vunpack.c.h.b16 %v3704
          %v3886 = vunpack.c.l.b16 %v3705
          %v3887 = vunpack.c.h.b16 %v3705
          %v3888 = vunpack.c.l.b16 %v3706
          %v3889 = vunpack.c.h.b16 %v3706
          %v3890 = vunpack.c.l.b16 %v3707
          %v3891 = vunpack.c.h.b16 %v3707
          %v3892 = vunpack.c.l.b16 %v3708
          %v3893 = vunpack.c.h.b16 %v3708
          %v3894 = vunpack.c.l.b16 %v3709
          %v3895 = vunpack.c.h.b16 %v3709
          %v3896 = vunpack.c.l.b16 %v3710
          %v3897 = vunpack.c.h.b16 %v3710
          %v3898 = vunpack.c.l.b16 %v3711
          %v3899 = vunpack.c.h.b16 %v3711
          %v3900 = vunpack.c.l.b16 %v3712
          %v3901 = vunpack.c.h.b16 %v3712
          %v3902 = vunpack.c.l.b16 %v3713
          %v3903 = vunpack.c.h.b16 %v3713
          %v3904 = vunpack.c.l.b16 %v3714
          %v3905 = vunpack.c.h.b16 %v3714
          %v3906 = vunpack.c.l.b16 %v3715
          %v3907 = vunpack.c.h.b16 %v3715
          %v3908 = vunpack.c.l.b16 %v3716
          %v3909 = vunpack.c.h.b16 %v3716
          %v3910 = vunpack.c.l.b16 %v3717
          %v3911 = vunpack.c.h.b16 %v3717
          %v3912 = vunpack.c.l.b16 %v3718
          %v3913 = vunpack.c.h.b16 %v3718
          %v3914 = vunpack.c.l.b16 %v3719
          %v3915 = vunpack.c.h.b16 %v3719
          %v3916 = vunpack.c.l.b16 %v3720
          %v3917 = vunpack.c.h.b16 %v3720
          %v3918 = vunpack.c.l.b16 %v3721
          %v3919 = vunpack.c.h.b16 %v3721
          %v3920 = vpack.c.b16 %v3794, %v3792
          %v3921 = vpack.c.b16 %v3795, %v3793
          %v3922 = vpack.c.b16 %v3798, %v3796
          %v3923 = vpack.c.b16 %v3799, %v3797
          %v3924 = vpack.c.b16 %v3802, %v3800
          %v3925 = vpack.c.b16 %v3803, %v3801
          %v3926 = vpack.c.b16 %v3806, %v3804
          %v3927 = vpack.c.b16 %v3807, %v3805
          %v3928 = vpack.c.b16 %v3810, %v3808
          %v3929 = vpack.c.b16 %v3811, %v3809
          %v3930 = vpack.c.b16 %v3814, %v3812
          %v3931 = vpack.c.b16 %v3815, %v3813
          %v3932 = vpack.c.b16 %v3818, %v3816
          %v3933 = vpack.c.b16 %v3819, %v3817
          %v3934 = vpack.c.b16 %v3822, %v3820
          %v3935 = vpack.c.b16 %v3823, %v3821
          %v3936 = vpack.c.b16 %v3826, %v3824
          %v3937 = vpack.c.b16 %v3827, %v3825
          %v3938 = vpack.c.b16 %v3830, %v3828
          %v3939 = vpack.c.b16 %v3831, %v3829
          %v3940 = vpack.c.b16 %v3834, %v3832
          %v3941 = vpack.c.b16 %v3835, %v3833
          %v3942 = vpack.c.b16 %v3838, %v3836
          %v3943 = vpack.c.b16 %v3839, %v3837
          %v3944 = vpack.c.b16 %v3842, %v3840
          %v3945 = vpack.c.b16 %v3843, %v3841
          %v3946 = vpack.c.b16 %v3846, %v3844
          %v3947 = vpack.c.b16 %v3847, %v3845
          %v3948 = vpack.c.b16 %v3850, %v3848
          %v3949 = vpack.c.b16 %v3851, %v3849
          %v3950 = vpack.c.b16 %v3854, %v3852
          %v3951 = vpack.c.b16 %v3855, %v3853
          %v3952 = vpack.c.b16 %v3858, %v3856
          %v3953 = vpack.c.b16 %v3859, %v3857
          %v3954 = vpack.c.b16 %v3862, %v3860
          %v3955 = vpack.c.b16 %v3863, %v3861
          %v3956 = vpack.c.b16 %v3866, %v3864
          %v3957 = vpack.c.b16 %v3867, %v3865
          %v3958 = vpack.c.b16 %v3870, %v3868
          %v3959 = vpack.c.b16 %v3871, %v3869
          %v3960 = vpack.c.b16 %v3874, %v3872
          %v3961 = vpack.c.b16 %v3875, %v3873
          %v3962 = vpack.c.b16 %v3878, %v3876
          %v3963 = vpack.c.b16 %v3879, %v3877
          %v3964 = vpack.c.b16 %v3882, %v3880
          %v3965 = vpack.c.b16 %v3883, %v3881
          %v3966 = vpack.c.b16 %v3886, %v3884
          %v3967 = vpack.c.b16 %v3887, %v3885
          %v3968 = vpack.c.b16 %v3890, %v3888
          %v3969 = vpack.c.b16 %v3891, %v3889
          %v3970 = vpack.c.b16 %v3894, %v3892
          %v3971 = vpack.c.b16 %v3895, %v3893
          %v3972 = vpack.c.b16 %v3898, %v3896
          %v3973 = vpack.c.b16 %v3899, %v3897
          %v3974 = vpack.c.b16 %v3902, %v3900
          %v3975 = vpack.c.b16 %v3903, %v3901
          %v3976 = vpack.c.b16 %v3906, %v3904
          %v3977 = vpack.c.b16 %v3907, %v3905
          %v3978 = vpack.c.b16 %v3910, %v3908
          %v3979 = vpack.c.b16 %v3911, %v3909
          %v3980 = vpack.c.b16 %v3914, %v3912
          %v3981 = vpack.c.b16 %v3915, %v3913
          %v3982 = vpack.c.b16 %v3918, %v3916
          %v3983 = vpack.c.b16 %v3919, %v3917
          %4048 = vmatpush.bf16.msra.mxu0 %v3934
          %4049 = vmatpush.bf16.msra.mxu0 %v3932
          %4050 = vmatpush.bf16.msra.mxu0 %v3930
          %4051 = vmatpush.bf16.msra.mxu0 %v3928
          %4052 = vmatpush.bf16.msra.mxu0 %v3926
          %4053 = vmatpush.bf16.msra.mxu0 %v3924
          %4054 = vmatpush.bf16.msra.mxu0 %v3922
          %4055 = vmatpush.bf16.msra.mxu0 %v3920
          %4056 = vmatmul.bf16.gmra.mxu0 %v3626
          %v4057 = vpop.f32.mrf.mxu0
          %v4058 = vadd.f32 %v3724, %v4057
          %v4059 = vpop.f32.mrf.mxu0
          %v4060 = vadd.f32 %v3724, %v4059
          %4061 = vmatmul.bf16.gmra.mxu0 %v3630
          %v4062 = vpop.f32.mrf.mxu0
          %v4063 = vadd.f32 %v3724, %v4062
          %v4064 = vpop.f32.mrf.mxu0
          %v4065 = vadd.f32 %v3724, %v4064
          %4066 = vmatmul.bf16.gmra.mxu0 %v3634
          %v4067 = vpop.f32.mrf.mxu0
          %v4068 = vadd.f32 %v3724, %v4067
          %v4069 = vpop.f32.mrf.mxu0
          %v4070 = vadd.f32 %v3724, %v4069
          %4071 = vmatmul.bf16.gmra.mxu0 %v3638
          %v4072 = vpop.f32.mrf.mxu0
          %v4073 = vadd.f32 %v3724, %v4072
          %v4074 = vpop.f32.mrf.mxu0
          %v4075 = vadd.f32 %v3724, %v4074
          %4076 = vmatmul.bf16.gmra.mxu0 %v3642
          %v4077 = vpop.f32.mrf.mxu0
          %v4078 = vadd.f32 %v3724, %v4077
          %v4079 = vpop.f32.mrf.mxu0
          %v4080 = vadd.f32 %v3724, %v4079
          %4081 = vmatmul.bf16.gmra.mxu0 %v3646
          %v4082 = vpop.f32.mrf.mxu0
          %v4083 = vadd.f32 %v3724, %v4082
          %v4084 = vpop.f32.mrf.mxu0
          %v4085 = vadd.f32 %v3724, %v4084
          %4086 = vmatmul.bf16.gmra.mxu0 %v3650
          %v4087 = vpop.f32.mrf.mxu0
          %v4088 = vadd.f32 %v3724, %v4087
          %v4089 = vpop.f32.mrf.mxu0
          %v4090 = vadd.f32 %v3724, %v4089
          %4091 = vmatmul.bf16.gmra.mxu0 %v3654
          %v4092 = vpop.f32.mrf.mxu0
          %v4093 = vadd.f32 %v3724, %v4092
          %v4094 = vpop.f32.mrf.mxu0
          %v4095 = vadd.f32 %v3724, %v4094
          %4096 = vdwg.mxu0
          %4097 = vmatpush.bf16.msra.mxu0 %v3950
          %4098 = vmatpush.bf16.msra.mxu0 %v3948
          %4099 = vmatpush.bf16.msra.mxu0 %v3946
          %4100 = vmatpush.bf16.msra.mxu0 %v3944
          %4101 = vmatpush.bf16.msra.mxu0 %v3942
          %4102 = vmatpush.bf16.msra.mxu0 %v3940
          %4103 = vmatpush.bf16.msra.mxu0 %v3938
          %4104 = vmatpush.bf16.msra.mxu0 %v3936
          %4105 = vmatmul.bf16.gmra.mxu0 %v3627
          %v4106 = vpop.f32.mrf.mxu0
          %v4107 = vadd.f32 %v4058, %v4106
          %v4108 = vpop.f32.mrf.mxu0
          %v4109 = vadd.f32 %v4060, %v4108
          %4110 = vmatmul.bf16.gmra.mxu0 %v3631
          %v4111 = vpop.f32.mrf.mxu0
          %v4112 = vadd.f32 %v4063, %v4111
          %v4113 = vpop.f32.mrf.mxu0
          %v4114 = vadd.f32 %v4065, %v4113
          %4115 = vmatmul.bf16.gmra.mxu0 %v3635
          %v4116 = vpop.f32.mrf.mxu0
          %v4117 = vadd.f32 %v4068, %v4116
          %v4118 = vpop.f32.mrf.mxu0
          %v4119 = vadd.f32 %v4070, %v4118
          %4120 = vmatmul.bf16.gmra.mxu0 %v3639
          %v4121 = vpop.f32.mrf.mxu0
          %v4122 = vadd.f32 %v4073, %v4121
          %v4123 = vpop.f32.mrf.mxu0
          %v4124 = vadd.f32 %v4075, %v4123
          %4125 = vmatmul.bf16.gmra.mxu0 %v3643
          %v4126 = vpop.f32.mrf.mxu0
          %v4127 = vadd.f32 %v4078, %v4126
          %v4128 = vpop.f32.mrf.mxu0
          %v4129 = vadd.f32 %v4080, %v4128
          %4130 = vmatmul.bf16.gmra.mxu0 %v3647
          %v4131 = vpop.f32.mrf.mxu0
          %v4132 = vadd.f32 %v4083, %v4131
          %v4133 = vpop.f32.mrf.mxu0
          %v4134 = vadd.f32 %v4085, %v4133
          %4135 = vmatmul.bf16.gmra.mxu0 %v3651
          %v4136 = vpop.f32.mrf.mxu0
          %v4137 = vadd.f32 %v4088, %v4136
          %v4138 = vpop.f32.mrf.mxu0
          %v4139 = vadd.f32 %v4090, %v4138
          %4140 = vmatmul.bf16.gmra.mxu0 %v3655
          %v4141 = vpop.f32.mrf.mxu0
          %v4142 = vadd.f32 %v4093, %v4141
          %v4143 = vpop.f32.mrf.mxu0
          %v4144 = vadd.f32 %v4095, %v4143
          %4145 = vdwg.mxu0
          %4146 = vmatpush.bf16.msra.mxu0 %v3966
          %4147 = vmatpush.bf16.msra.mxu0 %v3964
          %4148 = vmatpush.bf16.msra.mxu0 %v3962
          %4149 = vmatpush.bf16.msra.mxu0 %v3960
          %4150 = vmatpush.bf16.msra.mxu0 %v3958
          %4151 = vmatpush.bf16.msra.mxu0 %v3956
          %4152 = vmatpush.bf16.msra.mxu0 %v3954
          %4153 = vmatpush.bf16.msra.mxu0 %v3952
          %4154 = vmatmul.bf16.gmra.mxu0 %v3628
          %v4155 = vpop.f32.mrf.mxu0
          %v4156 = vadd.f32 %v4107, %v4155
          %v4157 = vpop.f32.mrf.mxu0
          %v4158 = vadd.f32 %v4109, %v4157
          %4159 = vmatmul.bf16.gmra.mxu0 %v3632
          %v4160 = vpop.f32.mrf.mxu0
          %v4161 = vadd.f32 %v4112, %v4160
          %v4162 = vpop.f32.mrf.mxu0
          %v4163 = vadd.f32 %v4114, %v4162
          %4164 = vmatmul.bf16.gmra.mxu0 %v3636
          %v4165 = vpop.f32.mrf.mxu0
          %v4166 = vadd.f32 %v4117, %v4165
          %v4167 = vpop.f32.mrf.mxu0
          %v4168 = vadd.f32 %v4119, %v4167
          %4169 = vmatmul.bf16.gmra.mxu0 %v3640
          %v4170 = vpop.f32.mrf.mxu0
          %v4171 = vadd.f32 %v4122, %v4170
          %v4172 = vpop.f32.mrf.mxu0
          %v4173 = vadd.f32 %v4124, %v4172
          %4174 = vmatmul.bf16.gmra.mxu0 %v3644
          %v4175 = vpop.f32.mrf.mxu0
          %v4176 = vadd.f32 %v4127, %v4175
          %v4177 = vpop.f32.mrf.mxu0
          %v4178 = vadd.f32 %v4129, %v4177
          %4179 = vmatmul.bf16.gmra.mxu0 %v3648
          %v4180 = vpop.f32.mrf.mxu0
          %v4181 = vadd.f32 %v4132, %v4180
          %v4182 = vpop.f32.mrf.mxu0
          %v4183 = vadd.f32 %v4134, %v4182
          %4184 = vmatmul.bf16.gmra.mxu0 %v3652
          %v4185 = vpop.f32.mrf.mxu0
          %v4186 = vadd.f32 %v4137, %v4185
          %v4187 = vpop.f32.mrf.mxu0
          %v4188 = vadd.f32 %v4139, %v4187
          %4189 = vmatmul.bf16.gmra.mxu0 %v3656
          %v4190 = vpop.f32.mrf.mxu0
          %v4191 = vadd.f32 %v4142, %v4190
          %v4192 = vpop.f32.mrf.mxu0
          %v4193 = vadd.f32 %v4144, %v4192
          %4194 = vdwg.mxu0
          %4195 = vmatpush.bf16.msra.mxu0 %v3982
          %4196 = vmatpush.bf16.msra.mxu0 %v3980
          %4197 = vmatpush.bf16.msra.mxu0 %v3978
          %4198 = vmatpush.bf16.msra.mxu0 %v3976
          %4199 = vmatpush.bf16.msra.mxu0 %v3974
          %4200 = vmatpush.bf16.msra.mxu0 %v3972
          %4201 = vmatpush.bf16.msra.mxu0 %v3970
          %4202 = vmatpush.bf16.msra.mxu0 %v3968
          %4203 = vmatmul.bf16.gmra.mxu0 %v3629
          %v4204 = vpop.f32.mrf.mxu0
          %v4205 = vadd.f32 %v4156, %v4204
          %v4206 = vpop.f32.mrf.mxu0
          %v4207 = vadd.f32 %v4158, %v4206
          %4208 = vmatmul.bf16.gmra.mxu0 %v3633
          %v4209 = vpop.f32.mrf.mxu0
          %v4210 = vadd.f32 %v4161, %v4209
          %v4211 = vpop.f32.mrf.mxu0
          %v4212 = vadd.f32 %v4163, %v4211
          %4213 = vmatmul.bf16.gmra.mxu0 %v3637
          %v4214 = vpop.f32.mrf.mxu0
          %v4215 = vadd.f32 %v4166, %v4214
          %v4216 = vpop.f32.mrf.mxu0
          %v4217 = vadd.f32 %v4168, %v4216
          %4218 = vmatmul.bf16.gmra.mxu0 %v3641
          %v4219 = vpop.f32.mrf.mxu0
          %v4220 = vadd.f32 %v4171, %v4219
          %v4221 = vpop.f32.mrf.mxu0
          %v4222 = vadd.f32 %v4173, %v4221
          %4223 = vmatmul.bf16.gmra.mxu0 %v3645
          %v4224 = vpop.f32.mrf.mxu0
          %v4225 = vadd.f32 %v4176, %v4224
          %v4226 = vpop.f32.mrf.mxu0
          %v4227 = vadd.f32 %v4178, %v4226
          %4228 = vmatmul.bf16.gmra.mxu0 %v3649
          %v4229 = vpop.f32.mrf.mxu0
          %v4230 = vadd.f32 %v4181, %v4229
          %v4231 = vpop.f32.mrf.mxu0
          %v4232 = vadd.f32 %v4183, %v4231
          %4233 = vmatmul.bf16.gmra.mxu0 %v3653
          %v4234 = vpop.f32.mrf.mxu0
          %v4235 = vadd.f32 %v4186, %v4234
          %v4236 = vpop.f32.mrf.mxu0
          %v4237 = vadd.f32 %v4188, %v4236
          %4238 = vmatmul.bf16.gmra.mxu0 %v3657
          %v4239 = vpop.f32.mrf.mxu0
          %v4240 = vadd.f32 %v4191, %v4239
          %v4241 = vpop.f32.mrf.mxu0
          %v4242 = vadd.f32 %v4193, %v4241
          %4243 = vdwg.mxu0
          %4244 = vmatpush.bf16.msra.mxu0 %v3935
          %4245 = vmatpush.bf16.msra.mxu0 %v3933
          %4246 = vmatpush.bf16.msra.mxu0 %v3931
          %4247 = vmatpush.bf16.msra.mxu0 %v3929
          %4248 = vmatpush.bf16.msra.mxu0 %v3927
          %4249 = vmatpush.bf16.msra.mxu0 %v3925
          %4250 = vmatpush.bf16.msra.mxu0 %v3923
          %4251 = vmatpush.bf16.msra.mxu0 %v3921
          %4252 = vmatmul.bf16.gmra.mxu0 %v3626
          %v4253 = vpop.f32.mrf.mxu0
          %v4254 = vadd.f32 %v3725, %v4253
          %v4255 = vpop.f32.mrf.mxu0
          %v4256 = vadd.f32 %v3725, %v4255
          %4257 = vmatmul.bf16.gmra.mxu0 %v3630
          %v4258 = vpop.f32.mrf.mxu0
          %v4259 = vadd.f32 %v3725, %v4258
          %v4260 = vpop.f32.mrf.mxu0
          %v4261 = vadd.f32 %v3725, %v4260
          %4262 = vmatmul.bf16.gmra.mxu0 %v3634
          %v4263 = vpop.f32.mrf.mxu0
          %v4264 = vadd.f32 %v3725, %v4263
          %v4265 = vpop.f32.mrf.mxu0
          %v4266 = vadd.f32 %v3725, %v4265
          %4267 = vmatmul.bf16.gmra.mxu0 %v3638
          %v4268 = vpop.f32.mrf.mxu0
          %v4269 = vadd.f32 %v3725, %v4268
          %v4270 = vpop.f32.mrf.mxu0
          %v4271 = vadd.f32 %v3725, %v4270
          %4272 = vmatmul.bf16.gmra.mxu0 %v3642
          %v4273 = vpop.f32.mrf.mxu0
          %v4274 = vadd.f32 %v3725, %v4273
          %v4275 = vpop.f32.mrf.mxu0
          %v4276 = vadd.f32 %v3725, %v4275
          %4277 = vmatmul.bf16.gmra.mxu0 %v3646
          %v4278 = vpop.f32.mrf.mxu0
          %v4279 = vadd.f32 %v3725, %v4278
          %v4280 = vpop.f32.mrf.mxu0
          %v4281 = vadd.f32 %v3725, %v4280
          %4282 = vmatmul.bf16.gmra.mxu0 %v3650
          %v4283 = vpop.f32.mrf.mxu0
          %v4284 = vadd.f32 %v3725, %v4283
          %v4285 = vpop.f32.mrf.mxu0
          %v4286 = vadd.f32 %v3725, %v4285
          %4287 = vmatmul.bf16.gmra.mxu0 %v3654
          %v4288 = vpop.f32.mrf.mxu0
          %v4289 = vadd.f32 %v3725, %v4288
          %v4290 = vpop.f32.mrf.mxu0
          %v4291 = vadd.f32 %v3725, %v4290
          %4292 = vdwg.mxu0
          %4293 = vmatpush.bf16.msra.mxu0 %v3951
          %4294 = vmatpush.bf16.msra.mxu0 %v3949
          %4295 = vmatpush.bf16.msra.mxu0 %v3947
          %4296 = vmatpush.bf16.msra.mxu0 %v3945
          %4297 = vmatpush.bf16.msra.mxu0 %v3943
          %4298 = vmatpush.bf16.msra.mxu0 %v3941
          %4299 = vmatpush.bf16.msra.mxu0 %v3939
          %4300 = vmatpush.bf16.msra.mxu0 %v3937
          %4301 = vmatmul.bf16.gmra.mxu0 %v3627
          %v4302 = vpop.f32.mrf.mxu0
          %v4303 = vadd.f32 %v4254, %v4302
          %v4304 = vpop.f32.mrf.mxu0
          %v4305 = vadd.f32 %v4256, %v4304
          %4306 = vmatmul.bf16.gmra.mxu0 %v3631
          %v4307 = vpop.f32.mrf.mxu0
          %v4308 = vadd.f32 %v4259, %v4307
          %v4309 = vpop.f32.mrf.mxu0
          %v4310 = vadd.f32 %v4261, %v4309
          %4311 = vmatmul.bf16.gmra.mxu0 %v3635
          %v4312 = vpop.f32.mrf.mxu0
          %v4313 = vadd.f32 %v4264, %v4312
          %v4314 = vpop.f32.mrf.mxu0
          %v4315 = vadd.f32 %v4266, %v4314
          %4316 = vmatmul.bf16.gmra.mxu0 %v3639
          %v4317 = vpop.f32.mrf.mxu0
          %v4318 = vadd.f32 %v4269, %v4317
          %v4319 = vpop.f32.mrf.mxu0
          %v4320 = vadd.f32 %v4271, %v4319
          %4321 = vmatmul.bf16.gmra.mxu0 %v3643
          %v4322 = vpop.f32.mrf.mxu0
          %v4323 = vadd.f32 %v4274, %v4322
          %v4324 = vpop.f32.mrf.mxu0
          %v4325 = vadd.f32 %v4276, %v4324
          %4326 = vmatmul.bf16.gmra.mxu0 %v3647
          %v4327 = vpop.f32.mrf.mxu0
          %v4328 = vadd.f32 %v4279, %v4327
          %v4329 = vpop.f32.mrf.mxu0
          %v4330 = vadd.f32 %v4281, %v4329
          %4331 = vmatmul.bf16.gmra.mxu0 %v3651
          %v4332 = vpop.f32.mrf.mxu0
          %v4333 = vadd.f32 %v4284, %v4332
          %v4334 = vpop.f32.mrf.mxu0
          %v4335 = vadd.f32 %v4286, %v4334
          %4336 = vmatmul.bf16.gmra.mxu0 %v3655
          %v4337 = vpop.f32.mrf.mxu0
          %v4338 = vadd.f32 %v4289, %v4337
          %v4339 = vpop.f32.mrf.mxu0
          %v4340 = vadd.f32 %v4291, %v4339
          %4341 = vdwg.mxu0
          %4342 = vmatpush.bf16.msra.mxu0 %v3967
          %4343 = vmatpush.bf16.msra.mxu0 %v3965
          %4344 = vmatpush.bf16.msra.mxu0 %v3963
          %4345 = vmatpush.bf16.msra.mxu0 %v3961
          %4346 = vmatpush.bf16.msra.mxu0 %v3959
          %4347 = vmatpush.bf16.msra.mxu0 %v3957
          %4348 = vmatpush.bf16.msra.mxu0 %v3955
          %4349 = vmatpush.bf16.msra.mxu0 %v3953
          %4350 = vmatmul.bf16.gmra.mxu0 %v3628
          %v4351 = vpop.f32.mrf.mxu0
          %v4352 = vadd.f32 %v4303, %v4351
          %v4353 = vpop.f32.mrf.mxu0
          %v4354 = vadd.f32 %v4305, %v4353
          %4355 = vmatmul.bf16.gmra.mxu0 %v3632
          %v4356 = vpop.f32.mrf.mxu0
          %v4357 = vadd.f32 %v4308, %v4356
          %v4358 = vpop.f32.mrf.mxu0
          %v4359 = vadd.f32 %v4310, %v4358
          %4360 = vmatmul.bf16.gmra.mxu0 %v3636
          %v4361 = vpop.f32.mrf.mxu0
          %v4362 = vadd.f32 %v4313, %v4361
          %v4363 = vpop.f32.mrf.mxu0
          %v4364 = vadd.f32 %v4315, %v4363
          %4365 = vmatmul.bf16.gmra.mxu0 %v3640
          %v4366 = vpop.f32.mrf.mxu0
          %v4367 = vadd.f32 %v4318, %v4366
          %v4368 = vpop.f32.mrf.mxu0
          %v4369 = vadd.f32 %v4320, %v4368
          %4370 = vmatmul.bf16.gmra.mxu0 %v3644
          %v4371 = vpop.f32.mrf.mxu0
          %v4372 = vadd.f32 %v4323, %v4371
          %v4373 = vpop.f32.mrf.mxu0
          %v4374 = vadd.f32 %v4325, %v4373
          %4375 = vmatmul.bf16.gmra.mxu0 %v3648
          %v4376 = vpop.f32.mrf.mxu0
          %v4377 = vadd.f32 %v4328, %v4376
          %v4378 = vpop.f32.mrf.mxu0
          %v4379 = vadd.f32 %v4330, %v4378
          %4380 = vmatmul.bf16.gmra.mxu0 %v3652
          %v4381 = vpop.f32.mrf.mxu0
          %v4382 = vadd.f32 %v4333, %v4381
          %v4383 = vpop.f32.mrf.mxu0
          %v4384 = vadd.f32 %v4335, %v4383
          %4385 = vmatmul.bf16.gmra.mxu0 %v3656
          %v4386 = vpop.f32.mrf.mxu0
          %v4387 = vadd.f32 %v4338, %v4386
          %v4388 = vpop.f32.mrf.mxu0
          %v4389 = vadd.f32 %v4340, %v4388
          %4390 = vdwg.mxu0
          %4391 = vmatpush.bf16.msra.mxu0 %v3983
          %4392 = vmatpush.bf16.msra.mxu0 %v3981
          %4393 = vmatpush.bf16.msra.mxu0 %v3979
          %4394 = vmatpush.bf16.msra.mxu0 %v3977
          %4395 = vmatpush.bf16.msra.mxu0 %v3975
          %4396 = vmatpush.bf16.msra.mxu0 %v3973
          %4397 = vmatpush.bf16.msra.mxu0 %v3971
          %4398 = vmatpush.bf16.msra.mxu0 %v3969
          %4399 = vmatmul.bf16.gmra.mxu0 %v3629
          %v4400 = vpop.f32.mrf.mxu0
          %v4401 = vadd.f32 %v4352, %v4400
          %v4402 = vpop.f32.mrf.mxu0
          %v4403 = vadd.f32 %v4354, %v4402
          %4404 = vmatmul.bf16.gmra.mxu0 %v3633
          %v4405 = vpop.f32.mrf.mxu0
          %v4406 = vadd.f32 %v4357, %v4405
          %v4407 = vpop.f32.mrf.mxu0
          %v4408 = vadd.f32 %v4359, %v4407
          %4409 = vmatmul.bf16.gmra.mxu0 %v3637
          %v4410 = vpop.f32.mrf.mxu0
          %v4411 = vadd.f32 %v4362, %v4410
          %v4412 = vpop.f32.mrf.mxu0
          %v4413 = vadd.f32 %v4364, %v4412
          %4414 = vmatmul.bf16.gmra.mxu0 %v3641
          %v4415 = vpop.f32.mrf.mxu0
          %v4416 = vadd.f32 %v4367, %v4415
          %v4417 = vpop.f32.mrf.mxu0
          %v4418 = vadd.f32 %v4369, %v4417
          %4419 = vmatmul.bf16.gmra.mxu0 %v3645
          %v4420 = vpop.f32.mrf.mxu0
          %v4421 = vadd.f32 %v4372, %v4420
          %v4422 = vpop.f32.mrf.mxu0
          %v4423 = vadd.f32 %v4374, %v4422
          %4424 = vmatmul.bf16.gmra.mxu0 %v3649
          %v4425 = vpop.f32.mrf.mxu0
          %v4426 = vadd.f32 %v4377, %v4425
          %v4427 = vpop.f32.mrf.mxu0
          %v4428 = vadd.f32 %v4379, %v4427
          %4429 = vmatmul.bf16.gmra.mxu0 %v3653
          %v4430 = vpop.f32.mrf.mxu0
          %v4431 = vadd.f32 %v4382, %v4430
          %v4432 = vpop.f32.mrf.mxu0
          %v4433 = vadd.f32 %v4384, %v4432
          %4434 = vmatmul.bf16.gmra.mxu0 %v3657
          %v4435 = vpop.f32.mrf.mxu0
          %v4436 = vadd.f32 %v4387, %v4435
          %v4437 = vpop.f32.mrf.mxu0
          %v4438 = vadd.f32 %v4389, %v4437
          %4439 = vdwg.mxu0
          %vm4440 = vcmp.ge.f32.partialorder %v4205, 0.0
          %vm4441 = vcmp.ge.f32.partialorder %v4401, 0.0
          %vm4442 = vcmp.ge.f32.partialorder %v4207, 0.0
          %vm4443 = vcmp.ge.f32.partialorder %v4403, 0.0
          %vm4444 = vcmp.ge.f32.partialorder %v4210, 0.0
          %vm4445 = vcmp.ge.f32.partialorder %v4406, 0.0
          %vm4446 = vcmp.ge.f32.partialorder %v4212, 0.0
          %vm4447 = vcmp.ge.f32.partialorder %v4408, 0.0
          %vm4448 = vcmp.ge.f32.partialorder %v4215, 0.0
          %vm4449 = vcmp.ge.f32.partialorder %v4411, 0.0
          %vm4450 = vcmp.ge.f32.partialorder %v4217, 0.0
          %vm4451 = vcmp.ge.f32.partialorder %v4413, 0.0
          %vm4452 = vcmp.ge.f32.partialorder %v4220, 0.0
          %vm4453 = vcmp.ge.f32.partialorder %v4416, 0.0
          %vm4454 = vcmp.ge.f32.partialorder %v4222, 0.0
          %vm4455 = vcmp.ge.f32.partialorder %v4418, 0.0
          %vm4456 = vcmp.ge.f32.partialorder %v4225, 0.0
          %vm4457 = vcmp.ge.f32.partialorder %v4421, 0.0
          %vm4458 = vcmp.ge.f32.partialorder %v4227, 0.0
          %vm4459 = vcmp.ge.f32.partialorder %v4423, 0.0
          %vm4460 = vcmp.ge.f32.partialorder %v4230, 0.0
          %vm4461 = vcmp.ge.f32.partialorder %v4426, 0.0
          %vm4462 = vcmp.ge.f32.partialorder %v4232, 0.0
          %vm4463 = vcmp.ge.f32.partialorder %v4428, 0.0
          %vm4464 = vcmp.ge.f32.partialorder %v4235, 0.0
          %vm4465 = vcmp.ge.f32.partialorder %v4431, 0.0
          %vm4466 = vcmp.ge.f32.partialorder %v4237, 0.0
          %vm4467 = vcmp.ge.f32.partialorder %v4433, 0.0
          %vm4468 = vcmp.ge.f32.partialorder %v4240, 0.0
          %vm4469 = vcmp.ge.f32.partialorder %v4436, 0.0
          %vm4470 = vcmp.ge.f32.partialorder %v4242, 0.0
          %vm4471 = vcmp.ge.f32.partialorder %v4438, 0.0
          %v4472 = vmul.f32 %v4205, 0.2
          %v4473 = vmul.f32 %v4401, 0.2
          %v4474 = vmul.f32 %v4207, 0.2
          %v4475 = vmul.f32 %v4403, 0.2
          %v4476 = vmul.f32 %v4210, 0.2
          %v4477 = vmul.f32 %v4406, 0.2
          %v4478 = vmul.f32 %v4212, 0.2
          %v4479 = vmul.f32 %v4408, 0.2
          %v4480 = vmul.f32 %v4215, 0.2
          %v4481 = vmul.f32 %v4411, 0.2
          %v4482 = vmul.f32 %v4217, 0.2
          %v4483 = vmul.f32 %v4413, 0.2
          %v4484 = vmul.f32 %v4220, 0.2
          %v4485 = vmul.f32 %v4416, 0.2
          %v4486 = vmul.f32 %v4222, 0.2
          %v4487 = vmul.f32 %v4418, 0.2
          %v4488 = vmul.f32 %v4225, 0.2
          %v4489 = vmul.f32 %v4421, 0.2
          %v4490 = vmul.f32 %v4227, 0.2
          %v4491 = vmul.f32 %v4423, 0.2
          %v4492 = vmul.f32 %v4230, 0.2
          %v4493 = vmul.f32 %v4426, 0.2
          %v4494 = vmul.f32 %v4232, 0.2
          %v4495 = vmul.f32 %v4428, 0.2
          %v4496 = vmul.f32 %v4235, 0.2
          %v4497 = vmul.f32 %v4431, 0.2
          %v4498 = vmul.f32 %v4237, 0.2
          %v4499 = vmul.f32 %v4433, 0.2
          %v4500 = vmul.f32 %v4240, 0.2
          %v4501 = vmul.f32 %v4436, 0.2
          %v4502 = vmul.f32 %v4242, 0.2
          %v4503 = vmul.f32 %v4438, 0.2
          %v4504 = vsel %vm4440, %v4205, %v4472
          %v4505 = vsel %vm4441, %v4401, %v4473
          %v4506 = vsel %vm4442, %v4207, %v4474
          %v4507 = vsel %vm4443, %v4403, %v4475
          %v4508 = vsel %vm4444, %v4210, %v4476
          %v4509 = vsel %vm4445, %v4406, %v4477
          %v4510 = vsel %vm4446, %v4212, %v4478
          %v4511 = vsel %vm4447, %v4408, %v4479
          %v4512 = vsel %vm4448, %v4215, %v4480
          %v4513 = vsel %vm4449, %v4411, %v4481
          %v4514 = vsel %vm4450, %v4217, %v4482
          %v4515 = vsel %vm4451, %v4413, %v4483
          %v4516 = vsel %vm4452, %v4220, %v4484
          %v4517 = vsel %vm4453, %v4416, %v4485
          %v4518 = vsel %vm4454, %v4222, %v4486
          %v4519 = vsel %vm4455, %v4418, %v4487
          %v4520 = vsel %vm4456, %v4225, %v4488
          %v4521 = vsel %vm4457, %v4421, %v4489
          %v4522 = vsel %vm4458, %v4227, %v4490
          %v4523 = vsel %vm4459, %v4423, %v4491
          %v4524 = vsel %vm4460, %v4230, %v4492
          %v4525 = vsel %vm4461, %v4426, %v4493
          %v4526 = vsel %vm4462, %v4232, %v4494
          %v4527 = vsel %vm4463, %v4428, %v4495
          %v4528 = vsel %vm4464, %v4235, %v4496
          %v4529 = vsel %vm4465, %v4431, %v4497
          %v4530 = vsel %vm4466, %v4237, %v4498
          %v4531 = vsel %vm4467, %v4433, %v4499
          %v4532 = vsel %vm4468, %v4240, %v4500
          %v4533 = vsel %vm4469, %v4436, %v4501
          %v4534 = vsel %vm4470, %v4242, %v4502
          %v4535 = vsel %vm4471, %v4438, %v4503
          %v4536 = vpack.c.bf16 %v4506, %v4504
          %v4537 = vpack.c.bf16 %v4507, %v4505
          %v4538 = vpack.c.bf16 %v4510, %v4508
          %v4539 = vpack.c.bf16 %v4511, %v4509
          %v4540 = vpack.c.bf16 %v4514, %v4512
          %v4541 = vpack.c.bf16 %v4515, %v4513
          %v4542 = vpack.c.bf16 %v4518, %v4516
          %v4543 = vpack.c.bf16 %v4519, %v4517
          %v4544 = vpack.c.bf16 %v4522, %v4520
          %v4545 = vpack.c.bf16 %v4523, %v4521
          %v4546 = vpack.c.bf16 %v4526, %v4524
          %v4547 = vpack.c.bf16 %v4527, %v4525
          %v4548 = vpack.c.bf16 %v4530, %v4528
          %v4549 = vpack.c.bf16 %v4531, %v4529
          %v4550 = vpack.c.bf16 %v4534, %v4532
          %v4551 = vpack.c.bf16 %v4535, %v4533
          %v4552 = vld [vmem:[%s5] sm:$0xf]
          %v4553 = vld [vmem:[%s5 + $0x4] sm:$0xf]
          %v4554 = vld [vmem:[%s5 + $0x8] sm:$0xf]
          %v4555 = vld [vmem:[%s5 + $0xc] sm:$0xf]
          %v4556 = vld [vmem:[%s5 + $0x10] sm:$0xf]
          %v4557 = vld [vmem:[%s5 + $0x14] sm:$0xf]
          %v4558 = vld [vmem:[%s5 + $0x18] sm:$0xf]
          %v4559 = vld [vmem:[%s5 + $0x1c] sm:$0xf]
          %v4560 = vld [vmem:[%s5 + $0x20] sm:$0xf]
          %v4561 = vld [vmem:[%s5 + $0x24] sm:$0xf]
          %v4562 = vld [vmem:[%s5 + $0x28] sm:$0xf]
          %v4563 = vld [vmem:[%s5 + $0x2c] sm:$0xf]
          %v4564 = vld [vmem:[%s5 + $0x30] sm:$0xf]
          %v4565 = vld [vmem:[%s5 + $0x34] sm:$0xf]
          %v4566 = vld [vmem:[%s5 + $0x38] sm:$0xf]
          %v4567 = vld [vmem:[%s5 + $0x3c] sm:$0xf]
          %v4568 = vld [vmem:[%s5 + $0x40] sm:$0xf]
          %v4569 = vld [vmem:[%s5 + $0x44] sm:$0xf]
          %v4570 = vld [vmem:[%s5 + $0x48] sm:$0xf]
          %v4571 = vld [vmem:[%s5 + $0x4c] sm:$0xf]
          %v4572 = vld [vmem:[%s5 + $0x50] sm:$0xf]
          %v4573 = vld [vmem:[%s5 + $0x54] sm:$0xf]
          %v4574 = vld [vmem:[%s5 + $0x58] sm:$0xf]
          %v4575 = vld [vmem:[%s5 + $0x5c] sm:$0xf]
          %v4576 = vld [vmem:[%s5 + $0x60] sm:$0xf]
          %v4577 = vld [vmem:[%s5 + $0x64] sm:$0xf]
          %v4578 = vld [vmem:[%s5 + $0x68] sm:$0xf]
          %v4579 = vld [vmem:[%s5 + $0x6c] sm:$0xf]
          %v4580 = vld [vmem:[%s5 + $0x70] sm:$0xf]
          %v4581 = vld [vmem:[%s5 + $0x74] sm:$0xf]
          %v4582 = vld [vmem:[%s5 + $0x78] sm:$0xf]
          %v4583 = vld [vmem:[%s5 + $0x7c] sm:$0xf]
          %v4584 = vld [vmem:[%s6] sm:$0x1]
          %v4586 = vperm.slane %v4584, 0
          %v4620 = vunpack.c.l.b16 %v4552
          %v4621 = vunpack.c.l.b16 %v4553
          %v4622 = vunpack.c.l.b16 %v4554
          %v4623 = vunpack.c.l.b16 %v4555
          %v4624 = vunpack.c.l.b16 %v4556
          %v4625 = vunpack.c.l.b16 %v4557
          %v4626 = vunpack.c.l.b16 %v4558
          %v4627 = vunpack.c.l.b16 %v4559
          %v4628 = vunpack.c.l.b16 %v4560
          %v4629 = vunpack.c.l.b16 %v4561
          %v4630 = vunpack.c.l.b16 %v4562
          %v4631 = vunpack.c.l.b16 %v4563
          %v4632 = vunpack.c.l.b16 %v4564
          %v4633 = vunpack.c.l.b16 %v4565
          %v4634 = vunpack.c.l.b16 %v4566
          %v4635 = vunpack.c.l.b16 %v4567
          %v4636 = vunpack.c.l.b16 %v4568
          %v4637 = vunpack.c.l.b16 %v4569
          %v4638 = vunpack.c.l.b16 %v4570
          %v4639 = vunpack.c.l.b16 %v4571
          %v4640 = vunpack.c.l.b16 %v4572
          %v4641 = vunpack.c.l.b16 %v4573
          %v4642 = vunpack.c.l.b16 %v4574
          %v4643 = vunpack.c.l.b16 %v4575
          %v4644 = vunpack.c.l.b16 %v4576
          %v4645 = vunpack.c.l.b16 %v4577
          %v4646 = vunpack.c.l.b16 %v4578
          %v4647 = vunpack.c.l.b16 %v4579
          %v4648 = vunpack.c.l.b16 %v4580
          %v4649 = vunpack.c.l.b16 %v4581
          %v4650 = vunpack.c.l.b16 %v4582
          %v4651 = vunpack.c.l.b16 %v4583
          %v4652 = vpack.c.b16 %v4621, %v4620
          %v4653 = vpack.c.b16 %v4623, %v4622
          %v4654 = vpack.c.b16 %v4625, %v4624
          %v4655 = vpack.c.b16 %v4627, %v4626
          %v4656 = vpack.c.b16 %v4629, %v4628
          %v4657 = vpack.c.b16 %v4631, %v4630
          %v4658 = vpack.c.b16 %v4633, %v4632
          %v4659 = vpack.c.b16 %v4635, %v4634
          %v4660 = vpack.c.b16 %v4637, %v4636
          %v4661 = vpack.c.b16 %v4639, %v4638
          %v4662 = vpack.c.b16 %v4641, %v4640
          %v4663 = vpack.c.b16 %v4643, %v4642
          %v4664 = vpack.c.b16 %v4645, %v4644
          %v4665 = vpack.c.b16 %v4647, %v4646
          %v4666 = vpack.c.b16 %v4649, %v4648
          %v4667 = vpack.c.b16 %v4651, %v4650
          %4684 = vmatpush.bf16.msra.mxu0 %v4659
          %4685 = vmatpush.bf16.msra.mxu0 %v4658
          %4686 = vmatpush.bf16.msra.mxu0 %v4657
          %4687 = vmatpush.bf16.msra.mxu0 %v4656
          %4688 = vmatpush.bf16.msra.mxu0 %v4655
          %4689 = vmatpush.bf16.msra.mxu0 %v4654
          %4690 = vmatpush.bf16.msra.mxu0 %v4653
          %4691 = vmatpush.bf16.msra.mxu0 %v4652
          %4692 = vmatmul.bf16.gmra.mxu0 %v4536
          %v4693 = vpop.f32.mrf.mxu0
          %v4694 = vadd.f32 %v4586, %v4693
          %v4695 = vpop.f32.mrf.mxu0
          %v4696 = vadd.f32 %v4586, %v4695
          %4697 = vmatmul.bf16.gmra.mxu0 %v4538
          %v4698 = vpop.f32.mrf.mxu0
          %v4699 = vadd.f32 %v4586, %v4698
          %v4700 = vpop.f32.mrf.mxu0
          %v4701 = vadd.f32 %v4586, %v4700
          %4702 = vmatmul.bf16.gmra.mxu0 %v4540
          %v4703 = vpop.f32.mrf.mxu0
          %v4704 = vadd.f32 %v4586, %v4703
          %v4705 = vpop.f32.mrf.mxu0
          %v4706 = vadd.f32 %v4586, %v4705
          %4707 = vmatmul.bf16.gmra.mxu0 %v4542
          %v4708 = vpop.f32.mrf.mxu0
          %v4709 = vadd.f32 %v4586, %v4708
          %v4710 = vpop.f32.mrf.mxu0
          %v4711 = vadd.f32 %v4586, %v4710
          %4712 = vmatmul.bf16.gmra.mxu0 %v4544
          %v4713 = vpop.f32.mrf.mxu0
          %v4714 = vadd.f32 %v4586, %v4713
          %v4715 = vpop.f32.mrf.mxu0
          %v4716 = vadd.f32 %v4586, %v4715
          %4717 = vmatmul.bf16.gmra.mxu0 %v4546
          %v4718 = vpop.f32.mrf.mxu0
          %v4719 = vadd.f32 %v4586, %v4718
          %v4720 = vpop.f32.mrf.mxu0
          %v4721 = vadd.f32 %v4586, %v4720
          %4722 = vmatmul.bf16.gmra.mxu0 %v4548
          %v4723 = vpop.f32.mrf.mxu0
          %v4724 = vadd.f32 %v4586, %v4723
          %v4725 = vpop.f32.mrf.mxu0
          %v4726 = vadd.f32 %v4586, %v4725
          %4727 = vmatmul.bf16.gmra.mxu0 %v4550
          %v4728 = vpop.f32.mrf.mxu0
          %v4729 = vadd.f32 %v4586, %v4728
          %v4730 = vpop.f32.mrf.mxu0
          %v4731 = vadd.f32 %v4586, %v4730
          %4732 = vdwg.mxu0
          %4733 = vmatpush.bf16.msra.mxu0 %v4667
          %4734 = vmatpush.bf16.msra.mxu0 %v4666
          %4735 = vmatpush.bf16.msra.mxu0 %v4665
          %4736 = vmatpush.bf16.msra.mxu0 %v4664
          %4737 = vmatpush.bf16.msra.mxu0 %v4663
          %4738 = vmatpush.bf16.msra.mxu0 %v4662
          %4739 = vmatpush.bf16.msra.mxu0 %v4661
          %4740 = vmatpush.bf16.msra.mxu0 %v4660
          %4741 = vmatmul.bf16.gmra.mxu0 %v4537
          %v4742 = vpop.f32.mrf.mxu0
          %v4743 = vadd.f32 %v4694, %v4742
          %v4744 = vpop.f32.mrf.mxu0
          %v4745 = vadd.f32 %v4696, %v4744
          %4746 = vmatmul.bf16.gmra.mxu0 %v4539
          %v4747 = vpop.f32.mrf.mxu0
          %v4748 = vadd.f32 %v4699, %v4747
          %v4749 = vpop.f32.mrf.mxu0
          %v4750 = vadd.f32 %v4701, %v4749
          %4751 = vmatmul.bf16.gmra.mxu0 %v4541
          %v4752 = vpop.f32.mrf.mxu0
          %v4753 = vadd.f32 %v4704, %v4752
          %v4754 = vpop.f32.mrf.mxu0
          %v4755 = vadd.f32 %v4706, %v4754
          %4756 = vmatmul.bf16.gmra.mxu0 %v4543
          %v4757 = vpop.f32.mrf.mxu0
          %v4758 = vadd.f32 %v4709, %v4757
          %v4759 = vpop.f32.mrf.mxu0
          %v4760 = vadd.f32 %v4711, %v4759
          %4761 = vmatmul.bf16.gmra.mxu0 %v4545
          %v4762 = vpop.f32.mrf.mxu0
          %v4763 = vadd.f32 %v4714, %v4762
          %v4764 = vpop.f32.mrf.mxu0
          %v4765 = vadd.f32 %v4716, %v4764
          %4766 = vmatmul.bf16.gmra.mxu0 %v4547
          %v4767 = vpop.f32.mrf.mxu0
          %v4768 = vadd.f32 %v4719, %v4767
          %v4769 = vpop.f32.mrf.mxu0
          %v4770 = vadd.f32 %v4721, %v4769
          %4771 = vmatmul.bf16.gmra.mxu0 %v4549
          %v4772 = vpop.f32.mrf.mxu0
          %v4773 = vadd.f32 %v4724, %v4772
          %v4774 = vpop.f32.mrf.mxu0
          %v4775 = vadd.f32 %v4726, %v4774
          %4776 = vmatmul.bf16.gmra.mxu0 %v4551
          %v4777 = vpop.f32.mrf.mxu0
          %v4778 = vadd.f32 %v4729, %v4777
          %v4779 = vpop.f32.mrf.mxu0
          %v4780 = vadd.f32 %v4731, %v4779
          %4781 = vdwg.mxu0
          %vm4782 = vcmp.ge.f32.partialorder %v4743, 0.0
          %vm4783 = vcmp.ge.f32.partialorder %v4745, 0.0
          %vm4784 = vcmp.ge.f32.partialorder %v4748, 0.0
          %vm4785 = vcmp.ge.f32.partialorder %v4750, 0.0
          %vm4786 = vcmp.ge.f32.partialorder %v4753, 0.0
          %vm4787 = vcmp.ge.f32.partialorder %v4755, 0.0
          %vm4788 = vcmp.ge.f32.partialorder %v4758, 0.0
          %vm4789 = vcmp.ge.f32.partialorder %v4760, 0.0
          %vm4790 = vcmp.ge.f32.partialorder %v4763, 0.0
          %vm4791 = vcmp.ge.f32.partialorder %v4765, 0.0
          %vm4792 = vcmp.ge.f32.partialorder %v4768, 0.0
          %vm4793 = vcmp.ge.f32.partialorder %v4770, 0.0
          %vm4794 = vcmp.ge.f32.partialorder %v4773, 0.0
          %vm4795 = vcmp.ge.f32.partialorder %v4775, 0.0
          %vm4796 = vcmp.ge.f32.partialorder %v4778, 0.0
          %vm4797 = vcmp.ge.f32.partialorder %v4780, 0.0
          %v4798 = vmul.f32 %v4743, 0.2
          %v4799 = vmul.f32 %v4745, 0.2
          %v4800 = vmul.f32 %v4748, 0.2
          %v4801 = vmul.f32 %v4750, 0.2
          %v4802 = vmul.f32 %v4753, 0.2
          %v4803 = vmul.f32 %v4755, 0.2
          %v4804 = vmul.f32 %v4758, 0.2
          %v4805 = vmul.f32 %v4760, 0.2
          %v4806 = vmul.f32 %v4763, 0.2
          %v4807 = vmul.f32 %v4765, 0.2
          %v4808 = vmul.f32 %v4768, 0.2
          %v4809 = vmul.f32 %v4770, 0.2
          %v4810 = vmul.f32 %v4773, 0.2
          %v4811 = vmul.f32 %v4775, 0.2
          %v4812 = vmul.f32 %v4778, 0.2
          %v4813 = vmul.f32 %v4780, 0.2
          %v4814 = vsel %vm4782, %v4743, %v4798
          %v4815 = vsel %vm4783, %v4745, %v4799
          %v4816 = vsel %vm4784, %v4748, %v4800
          %v4817 = vsel %vm4785, %v4750, %v4801
          %v4818 = vsel %vm4786, %v4753, %v4802
          %v4819 = vsel %vm4787, %v4755, %v4803
          %v4820 = vsel %vm4788, %v4758, %v4804
          %v4821 = vsel %vm4789, %v4760, %v4805
          %v4822 = vsel %vm4790, %v4763, %v4806
          %v4823 = vsel %vm4791, %v4765, %v4807
          %v4824 = vsel %vm4792, %v4768, %v4808
          %v4825 = vsel %vm4793, %v4770, %v4809
          %v4826 = vsel %vm4794, %v4773, %v4810
          %v4827 = vsel %vm4795, %v4775, %v4811
          %v4828 = vsel %vm4796, %v4778, %v4812
          %v4829 = vsel %vm4797, %v4780, %v4813
          %v4830 = vld [vmem:[%s7] sm:$0x1]
          %v4832 = vperm.slane %v4830, 0
          %v4834 = vmul.f32 %v4814, %v4832
          %v4835 = vmul.f32 %v4815, %v4832
          %v4836 = vmul.f32 %v4816, %v4832
          %v4837 = vmul.f32 %v4817, %v4832
          %v4838 = vmul.f32 %v4818, %v4832
          %v4839 = vmul.f32 %v4819, %v4832
          %v4840 = vmul.f32 %v4820, %v4832
          %v4841 = vmul.f32 %v4821, %v4832
          %v4842 = vmul.f32 %v4822, %v4832
          %v4843 = vmul.f32 %v4823, %v4832
          %v4844 = vmul.f32 %v4824, %v4832
          %v4845 = vmul.f32 %v4825, %v4832
          %v4846 = vmul.f32 %v4826, %v4832
          %v4847 = vmul.f32 %v4827, %v4832
          %v4848 = vmul.f32 %v4828, %v4832
          %v4849 = vmul.f32 %v4829, %v4832
          %4850 = vadd.xlane.f32.xlu0 %v4834
          %v4851 = vpop.xlane.xlu0 %4850
          %4852 = vadd.xlane.f32.xlu0 %v4835
          %v4853 = vpop.xlane.xlu0 %4852
          %4854 = vadd.xlane.f32.xlu0 %v4836
          %v4855 = vpop.xlane.xlu0 %4854
          %4856 = vadd.xlane.f32.xlu0 %v4837
          %v4857 = vpop.xlane.xlu0 %4856
          %4858 = vadd.xlane.f32.xlu0 %v4838
          %v4859 = vpop.xlane.xlu0 %4858
          %4860 = vadd.xlane.f32.xlu0 %v4839
          %v4861 = vpop.xlane.xlu0 %4860
          %4862 = vadd.xlane.f32.xlu0 %v4840
          %v4863 = vpop.xlane.xlu0 %4862
          %4864 = vadd.xlane.f32.xlu0 %v4841
          %v4865 = vpop.xlane.xlu0 %4864
          %4866 = vadd.xlane.f32.xlu0 %v4842
          %v4867 = vpop.xlane.xlu0 %4866
          %4868 = vadd.xlane.f32.xlu0 %v4843
          %v4869 = vpop.xlane.xlu0 %4868
          %4870 = vadd.xlane.f32.xlu0 %v4844
          %v4871 = vpop.xlane.xlu0 %4870
          %4872 = vadd.xlane.f32.xlu0 %v4845
          %v4873 = vpop.xlane.xlu0 %4872
          %4874 = vadd.xlane.f32.xlu0 %v4846
          %v4875 = vpop.xlane.xlu0 %4874
          %4876 = vadd.xlane.f32.xlu0 %v4847
          %v4877 = vpop.xlane.xlu0 %4876
          %4878 = vadd.xlane.f32.xlu0 %v4848
          %v4879 = vpop.xlane.xlu0 %4878
          %4880 = vadd.xlane.f32.xlu0 %v4849
          %v4881 = vpop.xlane.xlu0 %4880
          %v4882 = vld [vmem:[#allocation3] sm:$0x1]
          %v4884 = vperm.slane %v4882, 0
          %v4886 = vadd.f32 %v4851, %v4884
          %v4887 = vadd.f32 %v4853, %v4884
          %v4888 = vadd.f32 %v4855, %v4884
          %v4889 = vadd.f32 %v4857, %v4884
          %v4890 = vadd.f32 %v4859, %v4884
          %v4891 = vadd.f32 %v4861, %v4884
          %v4892 = vadd.f32 %v4863, %v4884
          %v4893 = vadd.f32 %v4865, %v4884
          %v4894 = vadd.f32 %v4867, %v4884
          %v4895 = vadd.f32 %v4869, %v4884
          %v4896 = vadd.f32 %v4871, %v4884
          %v4897 = vadd.f32 %v4873, %v4884
          %v4898 = vadd.f32 %v4875, %v4884
          %v4899 = vadd.f32 %v4877, %v4884
          %v4900 = vadd.f32 %v4879, %v4884
          %v4901 = vadd.f32 %v4881, %v4884
          %vm4902 = vcmask 7168
          %4903 = vst.msk [vmem:[%s382] sm:$0xff] %vm4902, %v4886
          %4904 = vst.msk [vmem:[%s382 + $0x8] sm:$0xff] %vm4902, %v4887
          %4905 = vst.msk [vmem:[%s382 + $0x10] sm:$0xff] %vm4902, %v4888
          %4906 = vst.msk [vmem:[%s382 + $0x18] sm:$0xff] %vm4902, %v4889
          %4907 = vst.msk [vmem:[%s382 + $0x20] sm:$0xff] %vm4902, %v4890
          %4908 = vst.msk [vmem:[%s382 + $0x28] sm:$0xff] %vm4902, %v4891
          %4909 = vst.msk [vmem:[%s382 + $0x30] sm:$0xff] %vm4902, %v4892
          %4910 = vst.msk [vmem:[%s382 + $0x38] sm:$0xff] %vm4902, %v4893
          %4911 = vst.msk [vmem:[%s382 + $0x40] sm:$0xff] %vm4902, %v4894
          %4912 = vst.msk [vmem:[%s382 + $0x48] sm:$0xff] %vm4902, %v4895
          %4913 = vst.msk [vmem:[%s382 + $0x50] sm:$0xff] %vm4902, %v4896
          %4914 = vst.msk [vmem:[%s382 + $0x58] sm:$0xff] %vm4902, %v4897
          %4915 = vst.msk [vmem:[%s382 + $0x60] sm:$0xff] %vm4902, %v4898
          %4916 = vst.msk [vmem:[%s382 + $0x68] sm:$0xff] %vm4902, %v4899
          %4917 = vst.msk [vmem:[%s382 + $0x70] sm:$0xff] %vm4902, %v4900
          %4918 = vst.msk [vmem:[%s382 + $0x78] sm:$0xff] %vm4902, %v4901
        $region64: #{_forward_impl.1} parent=55 // pred_fallthru
          _
        %s4919 = sand.u32 %s243, 1
        %s4920 = sand.u32 %s243, 1
        %s4921 = smul.addr %s4920, 128
        %s4922 = scalar_lea.vmem [#allocation4], %s4921
        // Predicated region
        $region65: #{_forward_impl.1} parent=55 // pred_check
          %p4923 = pneg %p253
        $region66: #{_forward_impl.1} parent=55 // pred_check_branch
          %4925 = sbr.rel (%p4923) target = $region68
        $region67: #{_forward_impl.1} parent=55 // pred_region
          %s4926 = smul.u32 16, %s26
          %s4927 = ssub.s32 38, %s4926
          %p4928 = scmp.lt.s32.totalorder %s4927, 16
          %s4929 = scalar_select %p4928, %s4927, 16
          %s4930 = smul.u32 8, %s4929
          %p4931 = scmp.ne.s32.totalorder 0, %s4930
          %s4932 = smul.addr %s4926, 8
          %s4933 = scalar_lea.vmem %s9, %s4932
          // Predicated region
          $region69: #{_forward_impl.1} parent=67 // pred_check
            %p4934 = pneg %p4931
          $region70: #{_forward_impl.1} parent=67 // pred_check_branch
            %4936 = sbr.rel (%p4934) target = $region72
          $region71: #{_forward_impl.1} parent=67 // pred_region
            // Predicated region
            $region73: #{_forward_impl.1} parent=71 // pred_check
              _
            $region74: #{_forward_impl.1} parent=71 // pred_check_branch
              %4938 = sbr.rel (0) target = $region76
            $region75: #{_forward_impl.1} parent=71 // pred_region
              // Predicated region
              $region95: #{_forward_impl.1} parent=75 // pred_check
                _
              $region96: #{_forward_impl.1} parent=75 // pred_check_branch
                %5018 = sbr.rel (0) target = $region98
              $region97: #{_forward_impl.1} parent=75 // pred_region
                %s5019 = sshrl.u32 %s4929, 4
                // While loop
                $region99: #{_forward_impl.1} parent=97 // loop_pre_header
                  _
                $region100: #{_forward_impl.1} parent=97 // loop_header
                  %s5021 = sphi 0, %s5023
                  %p5022 = scmp.ge.s32.totalorder %s5021, %s5019
                  %s5026 = sphi 0, %s5063
                  %s5027 = sphi %s4922, %s5066
                  %s5028 = sphi %s4933, %s5067
                $region101: #{_forward_impl.1} parent=97 // loop_header_branch
                  %5025 = sbr.rel (%p5022) target = $region105
                $region102: #{_forward_impl.1} parent=97 // loop_body
                  %v5029 = vld [vmem:[%s5027] sm:$0xff]
                  %5030 = vst [vmem:[%s5028] sm:$0xff] %v5029
                  %v5031 = vld [vmem:[%s5027 + $0x8] sm:$0xff]
                  %5032 = vst [vmem:[%s5028 + $0x8] sm:$0xff] %v5031
                  %v5033 = vld [vmem:[%s5027 + $0x10] sm:$0xff]
                  %5034 = vst [vmem:[%s5028 + $0x10] sm:$0xff] %v5033
                  %v5035 = vld [vmem:[%s5027 + $0x18] sm:$0xff]
                  %5036 = vst [vmem:[%s5028 + $0x18] sm:$0xff] %v5035
                  %v5037 = vld [vmem:[%s5027 + $0x20] sm:$0xff]
                  %5038 = vst [vmem:[%s5028 + $0x20] sm:$0xff] %v5037
                  %v5039 = vld [vmem:[%s5027 + $0x28] sm:$0xff]
                  %5040 = vst [vmem:[%s5028 + $0x28] sm:$0xff] %v5039
                  %v5041 = vld [vmem:[%s5027 + $0x30] sm:$0xff]
                  %5042 = vst [vmem:[%s5028 + $0x30] sm:$0xff] %v5041
                  %v5043 = vld [vmem:[%s5027 + $0x38] sm:$0xff]
                  %5044 = vst [vmem:[%s5028 + $0x38] sm:$0xff] %v5043
                  %v5045 = vld [vmem:[%s5027 + $0x40] sm:$0xff]
                  %5046 = vst [vmem:[%s5028 + $0x40] sm:$0xff] %v5045
                  %v5047 = vld [vmem:[%s5027 + $0x48] sm:$0xff]
                  %5048 = vst [vmem:[%s5028 + $0x48] sm:$0xff] %v5047
                  %v5049 = vld [vmem:[%s5027 + $0x50] sm:$0xff]
                  %5050 = vst [vmem:[%s5028 + $0x50] sm:$0xff] %v5049
                  %v5051 = vld [vmem:[%s5027 + $0x58] sm:$0xff]
                  %5052 = vst [vmem:[%s5028 + $0x58] sm:$0xff] %v5051
                  %v5053 = vld [vmem:[%s5027 + $0x60] sm:$0xff]
                  %5054 = vst [vmem:[%s5028 + $0x60] sm:$0xff] %v5053
                  %v5055 = vld [vmem:[%s5027 + $0x68] sm:$0xff]
                  %5056 = vst [vmem:[%s5028 + $0x68] sm:$0xff] %v5055
                  %v5057 = vld [vmem:[%s5027 + $0x70] sm:$0xff]
                  %5058 = vst [vmem:[%s5028 + $0x70] sm:$0xff] %v5057
                  %v5059 = vld [vmem:[%s5027 + $0x78] sm:$0xff]
                  %5060 = vst [vmem:[%s5028 + $0x78] sm:$0xff] %v5059
                  %s5061 = sadd.s32 1, %s5026
                  %p5062 = scmp.ge.s32.totalorder %s5061, %s5019
                  %s5063 = scalar_select %p5062, 0, %s5061
                  %s5064 = smul.u32 %s5063, 128
                  %s5065 = smul.u32 %s5063, 128
                  %s5066 = scalar_lea.vmem %s4922, %s5064 [#allocation4]
                  %s5067 = scalar_lea.vmem %s4933, %s5065
                $region103: #{_forward_impl.1} parent=97 // loop_footer
                  %s5023 = sadd.s32 %s5021, 1
                $region104: #{_forward_impl.1} parent=97 // loop_footer_branch
                  %5020 = sbr.rel target = $region100
                $region105: #{_forward_impl.1} parent=97 // loop_exit
                  _
                %s5068 = sshrl.u32 %s4929, 4
                %s5069 = sand.u32 %s4929, 15
                %s5070 = smul.u32 %s5068, 16
                %s5071 = smul.u32 8, %s5070
                %s5072 = scalar_lea.vmem %s4922, %s5071 [#allocation4]
                %s5073 = smul.u32 8, %s5070
                %s5074 = scalar_lea.vmem %s4933, %s5073
                // While loop
                $region106: #{_forward_impl.1} parent=97 // loop_pre_header
                  _
                $region107: #{_forward_impl.1} parent=97 // loop_header
                  %s5076 = sphi 0, %s5078
                  %p5077 = scmp.ge.s32.totalorder %s5076, %s5069
                  %s5081 = sphi 0, %s5088
                  %s5082 = sphi %s5072, %s5091
                  %s5083 = sphi %s5074, %s5092
                $region108: #{_forward_impl.1} parent=97 // loop_header_branch
                  %5080 = sbr.rel (%p5077) target = $region112
                $region109: #{_forward_impl.1} parent=97 // loop_body
                  %v5084 = vld [vmem:[%s5082] sm:$0xff]
                  %5085 = vst [vmem:[%s5083] sm:$0xff] %v5084
                  %s5086 = sadd.s32 1, %s5081
                  %p5087 = scmp.ge.s32.totalorder %s5086, %s5069
                  %s5088 = scalar_select %p5087, 0, %s5086
                  %s5089 = smul.u32 %s5088, 8
                  %s5090 = smul.u32 %s5088, 8
                  %s5091 = scalar_lea.vmem %s5072, %s5089 [#allocation4]
                  %s5092 = scalar_lea.vmem %s5074, %s5090
                $region110: #{_forward_impl.1} parent=97 // loop_footer
                  %s5078 = sadd.s32 %s5076, 1
                $region111: #{_forward_impl.1} parent=97 // loop_footer_branch
                  %5075 = sbr.rel target = $region107
                $region112: #{_forward_impl.1} parent=97 // loop_exit
                  _
              $region98: #{_forward_impl.1} parent=75 // pred_fallthru
                _
              // Predicated region
              $region113: #{_forward_impl.1} parent=75 // pred_check
                _
              $region114: #{_forward_impl.1} parent=75 // pred_check_branch
                %5094 = sbr.rel target = $region116
              $region115: #{_forward_impl.1} parent=75 // pred_region
                _
              $region116: #{_forward_impl.1} parent=75 // pred_fallthru
                _
            $region76: #{_forward_impl.1} parent=71 // pred_fallthru
              _
            // Predicated region
            $region77: #{_forward_impl.1} parent=71 // pred_check
              _
            $region78: #{_forward_impl.1} parent=71 // pred_check_branch
              %4940 = sbr.rel target = $region80
            $region79: #{_forward_impl.1} parent=71 // pred_region
              %s4942 = ssub.s32 256, 1
              %s4943 = sshrl.u32 %s4929, 4
              // While loop
              $region81: #{_forward_impl.1} parent=79 // loop_pre_header
                _
              $region82: #{_forward_impl.1} parent=79 // loop_header
                %s4945 = sphi 0, %s4947
                %p4946 = scmp.ge.s32.totalorder %s4945, %s4943
                %s4950 = sphi 0, %s4987
                %s4951 = sphi %s4922, %s4990
                %s4952 = sphi %s4933, %s4991
              $region83: #{_forward_impl.1} parent=79 // loop_header_branch
                %4949 = sbr.rel (%p4946) target = $region87
              $region84: #{_forward_impl.1} parent=79 // loop_body
                %v4953 = vld [vmem:[%s4951] sm:%s4942]
                %4954 = vst [vmem:[%s4952] sm:%s4942] %v4953
                %v4955 = vld [vmem:[%s4951 + $0x8] sm:%s4942]
                %4956 = vst [vmem:[%s4952 + $0x8] sm:%s4942] %v4955
                %v4957 = vld [vmem:[%s4951 + $0x10] sm:%s4942]
                %4958 = vst [vmem:[%s4952 + $0x10] sm:%s4942] %v4957
                %v4959 = vld [vmem:[%s4951 + $0x18] sm:%s4942]
                %4960 = vst [vmem:[%s4952 + $0x18] sm:%s4942] %v4959
                %v4961 = vld [vmem:[%s4951 + $0x20] sm:%s4942]
                %4962 = vst [vmem:[%s4952 + $0x20] sm:%s4942] %v4961
                %v4963 = vld [vmem:[%s4951 + $0x28] sm:%s4942]
                %4964 = vst [vmem:[%s4952 + $0x28] sm:%s4942] %v4963
                %v4965 = vld [vmem:[%s4951 + $0x30] sm:%s4942]
                %4966 = vst [vmem:[%s4952 + $0x30] sm:%s4942] %v4965
                %v4967 = vld [vmem:[%s4951 + $0x38] sm:%s4942]
                %4968 = vst [vmem:[%s4952 + $0x38] sm:%s4942] %v4967
                %v4969 = vld [vmem:[%s4951 + $0x40] sm:%s4942]
                %4970 = vst [vmem:[%s4952 + $0x40] sm:%s4942] %v4969
                %v4971 = vld [vmem:[%s4951 + $0x48] sm:%s4942]
                %4972 = vst [vmem:[%s4952 + $0x48] sm:%s4942] %v4971
                %v4973 = vld [vmem:[%s4951 + $0x50] sm:%s4942]
                %4974 = vst [vmem:[%s4952 + $0x50] sm:%s4942] %v4973
                %v4975 = vld [vmem:[%s4951 + $0x58] sm:%s4942]
                %4976 = vst [vmem:[%s4952 + $0x58] sm:%s4942] %v4975
                %v4977 = vld [vmem:[%s4951 + $0x60] sm:%s4942]
                %4978 = vst [vmem:[%s4952 + $0x60] sm:%s4942] %v4977
                %v4979 = vld [vmem:[%s4951 + $0x68] sm:%s4942]
                %4980 = vst [vmem:[%s4952 + $0x68] sm:%s4942] %v4979
                %v4981 = vld [vmem:[%s4951 + $0x70] sm:%s4942]
                %4982 = vst [vmem:[%s4952 + $0x70] sm:%s4942] %v4981
                %v4983 = vld [vmem:[%s4951 + $0x78] sm:%s4942]
                %4984 = vst [vmem:[%s4952 + $0x78] sm:%s4942] %v4983
                %s4985 = sadd.s32 1, %s4950
                %p4986 = scmp.ge.s32.totalorder %s4985, %s4943
                %s4987 = scalar_select %p4986, 0, %s4985
                %s4988 = smul.u32 %s4987, 128
                %s4989 = smul.u32 %s4987, 128
                %s4990 = scalar_lea.vmem %s4922, %s4988 [#allocation4]
                %s4991 = scalar_lea.vmem %s4933, %s4989
              $region85: #{_forward_impl.1} parent=79 // loop_footer
                %s4947 = sadd.s32 %s4945, 1
              $region86: #{_forward_impl.1} parent=79 // loop_footer_branch
                %4944 = sbr.rel target = $region82
              $region87: #{_forward_impl.1} parent=79 // loop_exit
                _
              %s4992 = sshrl.u32 %s4929, 4
              %s4993 = sand.u32 %s4929, 15
              %s4994 = smul.u32 %s4992, 16
              %s4995 = smul.u32 8, %s4994
              %s4996 = scalar_lea.vmem %s4922, %s4995 [#allocation4]
              %s4997 = smul.u32 8, %s4994
              %s4998 = scalar_lea.vmem %s4933, %s4997
              // While loop
              $region88: #{_forward_impl.1} parent=79 // loop_pre_header
                _
              $region89: #{_forward_impl.1} parent=79 // loop_header
                %s5000 = sphi 0, %s5002
                %p5001 = scmp.ge.s32.totalorder %s5000, %s4993
                %s5005 = sphi 0, %s5012
                %s5006 = sphi %s4996, %s5015
                %s5007 = sphi %s4998, %s5016
              $region90: #{_forward_impl.1} parent=79 // loop_header_branch
                %5004 = sbr.rel (%p5001) target = $region94
              $region91: #{_forward_impl.1} parent=79 // loop_body
                %v5008 = vld [vmem:[%s5006] sm:%s4942]
                %5009 = vst [vmem:[%s5007] sm:%s4942] %v5008
                %s5010 = sadd.s32 1, %s5005
                %p5011 = scmp.ge.s32.totalorder %s5010, %s4993
                %s5012 = scalar_select %p5011, 0, %s5010
                %s5013 = smul.u32 %s5012, 8
                %s5014 = smul.u32 %s5012, 8
                %s5015 = scalar_lea.vmem %s4996, %s5013 [#allocation4]
                %s5016 = scalar_lea.vmem %s4998, %s5014
              $region92: #{_forward_impl.1} parent=79 // loop_footer
                %s5002 = sadd.s32 %s5000, 1
              $region93: #{_forward_impl.1} parent=79 // loop_footer_branch
                %4999 = sbr.rel target = $region89
              $region94: #{_forward_impl.1} parent=79 // loop_exit
                _
            $region80: #{_forward_impl.1} parent=71 // pred_fallthru
              _
          $region72: #{_forward_impl.1} parent=67 // pred_fallthru
            _
          %5095 = vnop
        $region68: #{_forward_impl.1} parent=55 // pred_fallthru
          _
      $region56: #{_forward_impl.1} parent=5 // pred_fallthru
        _
      %p5096 = scmp.le.s32.totalorder 2, %s17
      // Predicated region
      $region117: #{_forward_impl.1} parent=5 // pred_check
        %p5097 = pneg %p5096
      $region118: #{_forward_impl.1} parent=5 // pred_check_branch
        %5099 = sbr.rel (%p5097) target = $region120
      $region119: #{_forward_impl.1} parent=5 // pred_region
        %s5100 = ssub.s32 %s17, 2
        // Predicated region
        $region121: #{_forward_impl.1} parent=119 // pred_check
          %p5101 = pneg %p259
        $region122: #{_forward_impl.1} parent=119 // pred_check_branch
          %5103 = sbr.rel (%p5101) target = $region124
        $region123: #{_forward_impl.1} parent=119 // pred_region
          %s5104 = sand.u32 %s244, 1
          %s5105 = sand.u32 %s244, 1
          %s5106 = smul.addr %s5105, 128
          %s5107 = scalar_lea.vmem [#allocation4], %s5106
        $region124: #{_forward_impl.1} parent=119 // pred_fallthru
          _
      $region120: #{_forward_impl.1} parent=5 // pred_fallthru
        _
    $region6: #{_forward_impl.1} parent=1 // loop_footer
      %s21 = sadd.s32 1, %s17
    $region7: #{_forward_impl.1} parent=1 // loop_footer_branch
      %16 = sbr.rel target = $region3
    $region8: #{_forward_impl.1} parent=1 // loop_exit
      _

</llo_original>
